<compile_context>
chip_gen: v7x
topology: tpu7x:2x2x1
jax: 0.10.0
libtpu: 0.0.40
codegen_flags: <defaults>
</compile_context>

<pallas_src>
import jax
import jax.numpy as jnp
from jax.experimental import pallas as pl
from jax.experimental.pallas import tpu as pltpu


HIDDEN = 64
LANE = 128


def _round_up(n, m):
    return ((n + m - 1) // m) * m


def actor_critic_kernel(x_ref, w1_ref, b1_ref, w2_ref, b2_ref, wh_ref, bh_ref,
                        mask_ref, out_ref):
    """Forward for one batch tile.

    x_ref   : (tile, obs_dim) f32
    w1 / b1 : f32 (obs_dim, 64) / (1, 64)        -- first matmul stays f32
    w2 / b2 : bf16 (64, 64)     / f32 (1, 64)
    wh / bh : fused [mean | std | value | pad] head, padded to 128 lanes
    mask_ref: (1, 128) f32, 1.0 on std columns, 0.0 elsewhere
    out_ref : (tile, 128) bf16 lane-dense slab: [mean | std | value | pad]
    """
    x = x_ref[...]

    # shared trunk: Linear -> Tanh -> Linear -> Tanh (f32 accumulation on MXU)
    h1 = jnp.tanh(
        jnp.dot(x, w1_ref[...], preferred_element_type=jnp.float32) + b1_ref[...])
    h2 = jnp.tanh(
        jnp.dot(h1.astype(jnp.bfloat16), w2_ref[...],
                preferred_element_type=jnp.float32) + b2_ref[...])

    # single fused head matmul (mean | std | value | pad), one MXU push
    heads = jnp.dot(h2.astype(jnp.bfloat16), wh_ref[...],
                    preferred_element_type=jnp.float32) + bh_ref[...]

    # std columns: clamp(softplus(z, threshold=20) + 1e-5, 0.001, 1.0),
    # blended in via the precomputed 0/1 lane mask so the store stays one
    # dense 128-wide slab (no masked vst.msk stores, no per-step iota).
    sp = jnp.where(heads > 20.0, heads,
                   jnp.log1p(jnp.exp(jnp.minimum(heads, 20.0))))
    std = jnp.clip(sp + 1e-5, 0.001, 1.0)
    mask = mask_ref[...]

    out_ref[...] = (heads + mask * (std - heads)).astype(out_ref.dtype)


def prepare_params(params):
    """One-time layout plumbing (fuse heads, pad to 128 lanes, cast to bf16).

    Call once after init / weight update; pass the result to
    actor_critic_forward so no per-call concat/pad/cast XLA ops are launched.
    """
    act_dim = params["wm"].shape[1]
    head_w = 2 * act_dim + 1
    head_pad = _round_up(head_w, LANE)

    wh = jnp.concatenate([params["wm"], params["ws"], params["wv"]], axis=1)
    wh = jnp.pad(wh, ((0, 0), (0, head_pad - head_w))).astype(jnp.bfloat16)
    bh = jnp.concatenate([params["bm"], params["bs"], params["bv"]], axis=1)
    bh = jnp.pad(bh, ((0, 0), (0, head_pad - head_w)))  # f32 bias

    col = jnp.arange(head_pad)
    std_mask = ((col >= act_dim) & (col < 2 * act_dim)).astype(jnp.float32)[None, :]

    return dict(
        w1=params["w1"],                         # f32 (first matmul stays f32)
        b1=params["b1"],
        w2=params["w2"].astype(jnp.bfloat16),
        b2=params["b2"],
        wh=wh, bh=bh, std_mask=std_mask,
        act_dim=act_dim, head_pad=head_pad, obs_dim=params["w1"].shape[0],
    )


def actor_critic_forward(x, prep, *, batch_tile=512):
    """prep = prepare_params(params); returns (mean, std, value)."""
    B, obs_dim = x.shape
    act_dim = prep["act_dim"]
    head_pad = prep["head_pad"]

    # Pad the batch to a tile multiple (padded zero-rows are sliced off below).
    b_padded = _round_up(B, batch_tile)
    if b_padded != B:
        x = jnp.pad(x, ((0, b_padded - B), (0, 0)))
    grid = (b_padded // batch_tile,)

    # Grid-invariant params: untiled, resident in VMEM (no double-buffering).
    vmem_full = pl.BlockSpec(memory_space=pltpu.MemorySpace.VMEM)

    # Advisory cost hint so XLA overlaps surrounding pad/slice ops.
    flops = 2 * b_padded * (obs_dim * HIDDEN + HIDDEN * HIDDEN + HIDDEN * head_pad)
    transcendentals = b_padded * (2 * HIDDEN + 2 * head_pad)
    bytes_accessed = (b_padded * obs_dim * 4                 # x in (f32)
                      + b_padded * head_pad * 2              # out (bf16)
                      + (obs_dim * HIDDEN + HIDDEN * HIDDEN) * 4
                      + HIDDEN * head_pad * 2)

    out = pl.pallas_call(
        actor_critic_kernel,
        grid=grid,
        in_specs=[
            pl.BlockSpec((batch_tile, obs_dim), lambda i: (i, 0)),  # x tile
            vmem_full, vmem_full,   # w1, b1
            vmem_full, vmem_full,   # w2, b2
            vmem_full, vmem_full,   # fused head weight / bias
            vmem_full,              # std lane mask
        ],
        out_specs=pl.BlockSpec((batch_tile, head_pad), lambda i: (i, 0)),
        out_shape=jax.ShapeDtypeStruct((b_padded, head_pad), jnp.bfloat16),
        compiler_params=pltpu.CompilerParams(
            dimension_semantics=("parallel",)),
        cost_estimate=pl.CostEstimate(flops=flops,
                                      transcendentals=transcendentals,
                                      bytes_accessed=bytes_accessed),
    )(x, prep["w1"], prep["b1"], prep["w2"], prep["b2"],
      prep["wh"], prep["bh"], prep["std_mask"])

    out = out[:B].astype(jnp.float32)
    mean = out[:, :act_dim]
    std = out[:, act_dim:2 * act_dim]
    value = out[:, 2 * act_dim]          # .squeeze(-1)
    return mean, std, value


def init_params(key, obs_dim, act_dim):
    """PyTorch-Linear-style init: U(-1/sqrt(fan_in), 1/sqrt(fan_in))."""
    def linear(key, fan_in, fan_out):
        kw, kb = jax.random.split(key)
        bound = 1.0 / jnp.sqrt(fan_in)
        w = jax.random.uniform(kw, (fan_in, fan_out), jnp.float32, -bound, bound)
        b = jax.random.uniform(kb, (1, fan_out), jnp.float32, -bound, bound)
        return w, b

    k1, k2, km, ks, kv = jax.random.split(key, 5)
    w1, b1 = linear(k1, obs_dim, HIDDEN)
    w2, b2 = linear(k2, HIDDEN, HIDDEN)
    wm, bm = linear(km, HIDDEN, act_dim)
    ws, bs = linear(ks, HIDDEN, act_dim)
    wv, bv = linear(kv, HIDDEN, 1)
    return dict(w1=w1, b1=b1, w2=w2, b2=b2,
                wm=wm, bm=bm, ws=ws, bs=bs, wv=wv, bv=bv)


def reference_forward(x, p):
    """Pure-JAX f32 reference of the same math (for a sanity check)."""
    h = jnp.tanh(x @ p["w1"] + p["b1"])
    h = jnp.tanh(h @ p["w2"] + p["b2"])
    mean = h @ p["wm"] + p["bm"]
    z = h @ p["ws"] + p["bs"]
    sp = jnp.where(z > 20.0, z, jnp.log1p(jnp.exp(jnp.minimum(z, 20.0))))
    std = jnp.clip(sp + 1e-5, 0.001, 1.0)
    value = (h @ p["wv"] + p["bv"])[:, 0]
    return mean, std, value


if __name__ == "__main__":
    # Non-multiple batch exercises the padded-tail path; with batch_tile=512
    # the padded grid length is 2, which splits evenly across v7x's two TCs.
    B, OBS_DIM, ACT_DIM = 600, 16, 4

    key = jax.random.PRNGKey(0)
    kx, kp = jax.random.split(key)
    x = jax.random.normal(kx, (B, OBS_DIM), dtype=jnp.float32)
    params = init_params(kp, OBS_DIM, ACT_DIM)

    # One-time fused/padded/bf16 weight prep (hoisted out of the hot path).
    prep = prepare_params(params)

    mean, std, value = actor_critic_forward(x, prep, batch_tile=512)
    jax.block_until_ready((mean, std, value))

    # Compare against an f32 reference (kernel uses bf16 weights/activations
    # for the 2nd/3rd matmuls and a bf16 output slab, with f32 accumulation,
    # so allow bf16-level tolerance).
    r_mean, r_std, r_value = reference_forward(x, params)
    assert mean.shape == (B, ACT_DIM) and std.shape == (B, ACT_DIM) and value.shape == (B,)
    assert jnp.allclose(mean, r_mean, atol=2e-2, rtol=2e-2)
    assert jnp.allclose(std, r_std, atol=2e-2, rtol=2e-2)
    assert jnp.allclose(value, r_value, atol=2e-2, rtol=2e-2)

    print("KERNEL_OK")
</pallas_src>

<mosaic_0001>
module attributes {stable_mosaic.version = 11 : i64} {
  func.func @actor_critic_kernel(%arg0: i32, %arg1: memref<512x16xf32, #tpu.memory_space<vmem>>, %arg2: memref<16x64xf32, #tpu.memory_space<vmem>>, %arg3: memref<1x64xf32, #tpu.memory_space<vmem>>, %arg4: memref<64x64xbf16, #tpu.memory_space<vmem>>, %arg5: memref<1x64xf32, #tpu.memory_space<vmem>>, %arg6: memref<64x128xbf16, #tpu.memory_space<vmem>>, %arg7: memref<1x128xf32, #tpu.memory_space<vmem>>, %arg8: memref<1x128xf32, #tpu.memory_space<vmem>>, %arg9: memref<512x128xbf16, #tpu.memory_space<vmem>>) attributes {dimension_semantics = [#tpu.dimension_semantics<parallel>], iteration_bounds = array<i64: 2>, scalar_prefetch = 0 : i64, scratch_operands = 0 : i64, tpu.core_type = #tpu.core_type<tc>, window_params = [{transform_indices = @transform_0, window_bounds = array<i64: 512, 16>}, {pipeline_mode = #tpu.pipeline_mode<synchronous>, transform_indices = @transform_1, window_bounds = array<i64: 16, 64>}, {pipeline_mode = #tpu.pipeline_mode<synchronous>, transform_indices = @transform_2, window_bounds = array<i64: 1, 64>}, {pipeline_mode = #tpu.pipeline_mode<synchronous>, transform_indices = @transform_3, window_bounds = array<i64: 64, 64>}, {pipeline_mode = #tpu.pipeline_mode<synchronous>, transform_indices = @transform_4, window_bounds = array<i64: 1, 64>}, {pipeline_mode = #tpu.pipeline_mode<synchronous>, transform_indices = @transform_5, window_bounds = array<i64: 64, 128>}, {pipeline_mode = #tpu.pipeline_mode<synchronous>, transform_indices = @transform_6, window_bounds = array<i64: 1, 128>}, {pipeline_mode = #tpu.pipeline_mode<synchronous>, transform_indices = @transform_7, window_bounds = array<i64: 1, 128>}, {transform_indices = @transform_8, window_bounds = array<i64: 512, 128>}]} {
    %c0 = arith.constant 0 : index
    %c0_0 = arith.constant 0 : index
    %0 = vector.load %arg1[%c0, %c0_0] : memref<512x16xf32, #tpu.memory_space<vmem>>, vector<512x16xf32>
    %c0_1 = arith.constant 0 : index
    %c0_2 = arith.constant 0 : index
    %1 = vector.load %arg2[%c0_1, %c0_2] : memref<16x64xf32, #tpu.memory_space<vmem>>, vector<16x64xf32>
    %cst = arith.constant dense<0.000000e+00> : vector<512x64xf32>
    %2 = tpu.matmul %0, %1, %cst {dimension_numbers = #tpu.dot_dimension_numbers<[1], [0], [0], [1], [0, 0, 1, 1], [], []>} : vector<512x16xf32>, vector<16x64xf32>, vector<512x64xf32> -> vector<512x64xf32>
    %c0_3 = arith.constant 0 : index
    %c0_4 = arith.constant 0 : index
    %3 = vector.load %arg3[%c0_3, %c0_4] : memref<1x64xf32, #tpu.memory_space<vmem>>, vector<1x64xf32>
    %4 = vector.broadcast %3 : vector<1x64xf32> to vector<512x64xf32>
    %5 = arith.addf %2, %4 : vector<512x64xf32>
    %6 = math.tanh %5 : vector<512x64xf32>
    %7 = arith.truncf %6 : vector<512x64xf32> to vector<512x64xbf16>
    %c0_5 = arith.constant 0 : index
    %c0_6 = arith.constant 0 : index
    %8 = vector.load %arg4[%c0_5, %c0_6] : memref<64x64xbf16, #tpu.memory_space<vmem>>, vector<64x64xbf16>
    %cst_7 = arith.constant dense<0.000000e+00> : vector<512x64xf32>
    %9 = tpu.matmul %7, %8, %cst_7 {dimension_numbers = #tpu.dot_dimension_numbers<[1], [0], [0], [1], [0, 0, 1, 1], [], []>} : vector<512x64xbf16>, vector<64x64xbf16>, vector<512x64xf32> -> vector<512x64xf32>
    %c0_8 = arith.constant 0 : index
    %c0_9 = arith.constant 0 : index
    %10 = vector.load %arg5[%c0_8, %c0_9] : memref<1x64xf32, #tpu.memory_space<vmem>>, vector<1x64xf32>
    %11 = vector.broadcast %10 : vector<1x64xf32> to vector<512x64xf32>
    %12 = arith.addf %9, %11 : vector<512x64xf32>
    %13 = math.tanh %12 : vector<512x64xf32>
    %14 = arith.truncf %13 : vector<512x64xf32> to vector<512x64xbf16>
    %c0_10 = arith.constant 0 : index
    %c0_11 = arith.constant 0 : index
    %15 = vector.load %arg6[%c0_10, %c0_11] : memref<64x128xbf16, #tpu.memory_space<vmem>>, vector<64x128xbf16>
    %cst_12 = arith.constant dense<0.000000e+00> : vector<512x128xf32>
    %16 = tpu.matmul %14, %15, %cst_12 {dimension_numbers = #tpu.dot_dimension_numbers<[1], [0], [0], [1], [0, 0, 1, 1], [], []>} : vector<512x64xbf16>, vector<64x128xbf16>, vector<512x128xf32> -> vector<512x128xf32>
    %c0_13 = arith.constant 0 : index
    %c0_14 = arith.constant 0 : index
    %17 = vector.load %arg7[%c0_13, %c0_14] : memref<1x128xf32, #tpu.memory_space<vmem>>, vector<1x128xf32>
    %18 = vector.broadcast %17 : vector<1x128xf32> to vector<512x128xf32>
    %19 = arith.addf %16, %18 : vector<512x128xf32>
    %cst_15 = arith.constant 2.000000e+01 : f32
    %20 = vector.broadcast %cst_15 : f32 to vector<512x128xf32>
    %21 = arith.cmpf ogt, %19, %20 : vector<512x128xf32>
    %cst_16 = arith.constant 2.000000e+01 : f32
    %22 = vector.broadcast %cst_16 : f32 to vector<512x128xf32>
    %23 = arith.minimumf %19, %22 : vector<512x128xf32>
    %24 = math.exp %23 : vector<512x128xf32>
    %25 = math.log1p %24 : vector<512x128xf32>
    %26 = arith.select %21, %19, %25 : vector<512x128xi1>, vector<512x128xf32>
    %cst_17 = arith.constant 9.99999974E-6 : f32
    %27 = vector.broadcast %cst_17 : f32 to vector<512x128xf32>
    %28 = arith.addf %26, %27 : vector<512x128xf32>
    %cst_18 = arith.constant 1.000000e-03 : f32
    %cst_19 = arith.constant 1.000000e+00 : f32
    %29 = vector.broadcast %cst_18 : f32 to vector<512x128xf32>
    %30 = arith.maximumf %29, %28 : vector<512x128xf32>
    %31 = vector.broadcast %cst_19 : f32 to vector<512x128xf32>
    %32 = arith.minimumf %31, %30 : vector<512x128xf32>
    %c0_20 = arith.constant 0 : index
    %c0_21 = arith.constant 0 : index
    %33 = vector.load %arg8[%c0_20, %c0_21] : memref<1x128xf32, #tpu.memory_space<vmem>>, vector<1x128xf32>
    %34 = arith.subf %32, %19 : vector<512x128xf32>
    %35 = vector.broadcast %33 : vector<1x128xf32> to vector<512x128xf32>
    %36 = arith.mulf %35, %34 : vector<512x128xf32>
    %37 = arith.addf %19, %36 : vector<512x128xf32>
    %38 = arith.truncf %37 : vector<512x128xf32> to vector<512x128xbf16>
    %c0_22 = arith.constant 0 : index
    %c0_23 = arith.constant 0 : index
    %39 = vector.load %arg9[%c0_22, %c0_23] : memref<512x128xbf16, #tpu.memory_space<vmem>>, vector<512x128xbf16>
    tpu.vector_store %arg9[%c0_22, %c0_23], %38 {strides = array<i32>} : memref<512x128xbf16, #tpu.memory_space<vmem>>, vector<512x128xbf16>,
    return
  }
  func.func @transform_0(%arg0: i32) -> (i32, i32) {
    %c0_i32 = arith.constant 0 : i32
    %c0_i32_0 = arith.constant 0 : i32
    return %arg0, %c0_i32 : i32, i32
  }
  func.func @transform_1(%arg0: i32) -> (i32, i32) {
    %c0_i32 = arith.constant 0 : i32
    %c0_i32_0 = arith.constant 0 : i32
    %c0_i32_1 = arith.constant 0 : i32
    return %c0_i32, %c0_i32_0 : i32, i32
  }
  func.func @transform_2(%arg0: i32) -> (i32, i32) {
    %c0_i32 = arith.constant 0 : i32
    %c0_i32_0 = arith.constant 0 : i32
    %c0_i32_1 = arith.constant 0 : i32
    return %c0_i32, %c0_i32_0 : i32, i32
  }
  func.func @transform_3(%arg0: i32) -> (i32, i32) {
    %c0_i32 = arith.constant 0 : i32
    %c0_i32_0 = arith.constant 0 : i32
    %c0_i32_1 = arith.constant 0 : i32
    return %c0_i32, %c0_i32_0 : i32, i32
  }
  func.func @transform_4(%arg0: i32) -> (i32, i32) {
    %c0_i32 = arith.constant 0 : i32
    %c0_i32_0 = arith.constant 0 : i32
    %c0_i32_1 = arith.constant 0 : i32
    return %c0_i32, %c0_i32_0 : i32, i32
  }
  func.func @transform_5(%arg0: i32) -> (i32, i32) {
    %c0_i32 = arith.constant 0 : i32
    %c0_i32_0 = arith.constant 0 : i32
    %c0_i32_1 = arith.constant 0 : i32
    return %c0_i32, %c0_i32_0 : i32, i32
  }
  func.func @transform_6(%arg0: i32) -> (i32, i32) {
    %c0_i32 = arith.constant 0 : i32
    %c0_i32_0 = arith.constant 0 : i32
    %c0_i32_1 = arith.constant 0 : i32
    return %c0_i32, %c0_i32_0 : i32, i32
  }
  func.func @transform_7(%arg0: i32) -> (i32, i32) {
    %c0_i32 = arith.constant 0 : i32
    %c0_i32_0 = arith.constant 0 : i32
    %c0_i32_1 = arith.constant 0 : i32
    return %c0_i32, %c0_i32_0 : i32, i32
  }
  func.func @transform_8(%arg0: i32) -> (i32, i32) {
    %c0_i32 = arith.constant 0 : i32
    %c0_i32_0 = arith.constant 0 : i32
    return %arg0, %c0_i32 : i32, i32
  }
}

</mosaic_0001>

<llo_original>
// kernel: tpu_custom_call.1
$region0: #{tpu_custom_call.1}
  #allocation0 [shape = 'u32[]', space=smem, size = 0x4, offset = 0x4, fixed_abs, tag = 'smem constant byte address 0x4 - core index']
  #allocation1 [shape = 'u32[144,128]{1,0:T(1,128)}', space=vmem, size = 0x12000, scoped, tag = 'internal scratch']
  %s0 = inlined_call_operand.vmem [shape: f32[1024,16], index: 0, kind: input, shape index: {}]
  %s1 = inlined_call_operand.vmem [shape: f32[16,64], index: 1, kind: input, shape index: {}]
  %s2 = inlined_call_operand.vmem [shape: f32[1,64], index: 2, kind: input, shape index: {}]
  %s3 = inlined_call_operand.vmem [shape: bf16[64,64], index: 3, kind: input, shape index: {}]
  %s4 = inlined_call_operand.vmem [shape: f32[1,64], index: 4, kind: input, shape index: {}]
  %s5 = inlined_call_operand.vmem [shape: bf16[64,128], index: 5, kind: input, shape index: {}]
  %s6 = inlined_call_operand.vmem [shape: f32[1,128], index: 6, kind: input, shape index: {}]
  %s7 = inlined_call_operand.vmem [shape: f32[1,128], index: 7, kind: input, shape index: {}]
  %s8 = inlined_call_operand.hbm [shape: bf16[1024,128], index: 8, kind: output, shape index: {}]
  %s9 = sld [smem:[#allocation0]]
  $region65: #{tpu_custom_call.1} parent=0
    _
  %s11 = ssub.s32 1, %s9
  %s12 = scalar_select 0, %s11, %s9
  $region1: #{tpu_custom_call.1} parent=0
    #allocation2 [shape = 'u8[262144]{0}', space=vmem, size = 0x40000, scoped, tag = 'output window, operand 0']
    #allocation3 [shape = 's32[2]{0}', space=sflag, size = 0x8, scoped, tag = 'scoped memory for tpu_custom_call.1']
    %13 = vsyncpa [#allocation3], 0
    %s14 = scalar_lea.sflag [#allocation3], 1
    %15 = vsyncpa %s14, 0
    loop: start=0, step=1, limit=4
    $region2: #{tpu_custom_call.1} parent=1 // loop_pre_header
      _
    $region3: #{tpu_custom_call.1} parent=1 // loop_header
      %s17 = sphi 0, %s21
      %p18 = scmp.ge.s32.totalorder %s17, 4
      %s27 = sphi 0, %s29
      %s30 = sphi 0, %s27
      %s31 = sphi 0, %s30
      %s47 = sphi 0, %s31
      %s51 = sphi 0, %s51
      %s53 = sphi 0, %s51
      %s54 = sphi 0, %s53
      %s68 = sphi 0, %s54
      %s72 = sphi 0, %s72
      %s74 = sphi 0, %s72
      %s75 = sphi 0, %s74
      %s89 = sphi 0, %s75
      %s93 = sphi 0, %s93
      %s95 = sphi 0, %s93
      %s96 = sphi 0, %s95
      %s110 = sphi 0, %s96
      %s114 = sphi 0, %s114
      %s116 = sphi 0, %s114
      %s117 = sphi 0, %s116
      %s131 = sphi 0, %s117
      %s135 = sphi 0, %s135
      %s137 = sphi 0, %s135
      %s138 = sphi 0, %s137
      %s152 = sphi 0, %s138
      %s156 = sphi 0, %s156
      %s158 = sphi 0, %s156
      %s159 = sphi 0, %s158
      %s173 = sphi 0, %s159
      %s177 = sphi 0, %s177
      %s179 = sphi 0, %s177
      %s180 = sphi 0, %s179
      %s194 = sphi 0, %s180
      %s200 = sphi 0, %s202
      %s203 = sphi 0, %s200
      %s204 = sphi 0, %s203
      %s220 = sphi 0, %s204
    $region4: #{tpu_custom_call.1} parent=1 // loop_header_branch
      %20 = sbr.rel (%p18) target = $region8
    $region5: #{tpu_custom_call.1} parent=1 // loop_body
      %s22 = ssub.s32 %s17, 1
      %s23 = ssub.s32 %s17, 2
      %s24 = sadd.s32 %s17, 1
      %s25 = ssub.s32 %s17, %s24
      %p26 = scmp.eq.s32.totalorder %s25, 0
      %s28 = sadd.s32 %s27, 1
      %s29 = scalar_select %p26, %s27, %s28
      %p32 = pneg %p26
      %p33 = scmp.eq.s32.totalorder %s17, 1
      %p34 = por %p32, %p33
      %p35 = scmp.ne.s32.totalorder %s27, %s30
      %p36 = scmp.eq.s32.totalorder %s17, 0
      %p37 = por %p35, %p36
      %p38 = scmp.ne.s32.totalorder %s27, %s30
      %p39 = scmp.eq.s32.totalorder %s22, 1
      %p40 = por %p38, %p39
      %p41 = scmp.ne.s32.totalorder %s30, %s31
      %p42 = scmp.eq.s32.totalorder %s22, 0
      %p43 = por %p41, %p42
      %p44 = scmp.ne.s32.totalorder %s30, %s31
      %p45 = scmp.eq.s32.totalorder %s23, 1
      %p46 = por %p44, %p45
      %p48 = scmp.ne.s32.totalorder %s31, %s47
      %p49 = scmp.eq.s32.totalorder %s23, 0
      %p50 = por %p48, %p49
      %s52 = sadd.s32 %s51, 1
      %p55 = scmp.eq.s32.totalorder %s17, 1
      %p56 = scmp.ne.s32.totalorder %s51, %s53
      %p57 = scmp.eq.s32.totalorder %s17, 0
      %p58 = por %p56, %p57
      %p59 = scmp.ne.s32.totalorder %s51, %s53
      %p60 = scmp.eq.s32.totalorder %s22, 1
      %p61 = por %p59, %p60
      %p62 = scmp.ne.s32.totalorder %s53, %s54
      %p63 = scmp.eq.s32.totalorder %s22, 0
      %p64 = por %p62, %p63
      %p65 = scmp.ne.s32.totalorder %s53, %s54
      %p66 = scmp.eq.s32.totalorder %s23, 1
      %p67 = por %p65, %p66
      %p69 = scmp.ne.s32.totalorder %s54, %s68
      %p70 = scmp.eq.s32.totalorder %s23, 0
      %p71 = por %p69, %p70
      %s73 = sadd.s32 %s72, 1
      %p76 = scmp.eq.s32.totalorder %s17, 1
      %p77 = scmp.ne.s32.totalorder %s72, %s74
      %p78 = scmp.eq.s32.totalorder %s17, 0
      %p79 = por %p77, %p78
      %p80 = scmp.ne.s32.totalorder %s72, %s74
      %p81 = scmp.eq.s32.totalorder %s22, 1
      %p82 = por %p80, %p81
      %p83 = scmp.ne.s32.totalorder %s74, %s75
      %p84 = scmp.eq.s32.totalorder %s22, 0
      %p85 = por %p83, %p84
      %p86 = scmp.ne.s32.totalorder %s74, %s75
      %p87 = scmp.eq.s32.totalorder %s23, 1
      %p88 = por %p86, %p87
      %p90 = scmp.ne.s32.totalorder %s75, %s89
      %p91 = scmp.eq.s32.totalorder %s23, 0
      %p92 = por %p90, %p91
      %s94 = sadd.s32 %s93, 1
      %p97 = scmp.eq.s32.totalorder %s17, 1
      %p98 = scmp.ne.s32.totalorder %s93, %s95
      %p99 = scmp.eq.s32.totalorder %s17, 0
      %p100 = por %p98, %p99
      %p101 = scmp.ne.s32.totalorder %s93, %s95
      %p102 = scmp.eq.s32.totalorder %s22, 1
      %p103 = por %p101, %p102
      %p104 = scmp.ne.s32.totalorder %s95, %s96
      %p105 = scmp.eq.s32.totalorder %s22, 0
      %p106 = por %p104, %p105
      %p107 = scmp.ne.s32.totalorder %s95, %s96
      %p108 = scmp.eq.s32.totalorder %s23, 1
      %p109 = por %p107, %p108
      %p111 = scmp.ne.s32.totalorder %s96, %s110
      %p112 = scmp.eq.s32.totalorder %s23, 0
      %p113 = por %p111, %p112
      %s115 = sadd.s32 %s114, 1
      %p118 = scmp.eq.s32.totalorder %s17, 1
      %p119 = scmp.ne.s32.totalorder %s114, %s116
      %p120 = scmp.eq.s32.totalorder %s17, 0
      %p121 = por %p119, %p120
      %p122 = scmp.ne.s32.totalorder %s114, %s116
      %p123 = scmp.eq.s32.totalorder %s22, 1
      %p124 = por %p122, %p123
      %p125 = scmp.ne.s32.totalorder %s116, %s117
      %p126 = scmp.eq.s32.totalorder %s22, 0
      %p127 = por %p125, %p126
      %p128 = scmp.ne.s32.totalorder %s116, %s117
      %p129 = scmp.eq.s32.totalorder %s23, 1
      %p130 = por %p128, %p129
      %p132 = scmp.ne.s32.totalorder %s117, %s131
      %p133 = scmp.eq.s32.totalorder %s23, 0
      %p134 = por %p132, %p133
      %s136 = sadd.s32 %s135, 1
      %p139 = scmp.eq.s32.totalorder %s17, 1
      %p140 = scmp.ne.s32.totalorder %s135, %s137
      %p141 = scmp.eq.s32.totalorder %s17, 0
      %p142 = por %p140, %p141
      %p143 = scmp.ne.s32.totalorder %s135, %s137
      %p144 = scmp.eq.s32.totalorder %s22, 1
      %p145 = por %p143, %p144
      %p146 = scmp.ne.s32.totalorder %s137, %s138
      %p147 = scmp.eq.s32.totalorder %s22, 0
      %p148 = por %p146, %p147
      %p149 = scmp.ne.s32.totalorder %s137, %s138
      %p150 = scmp.eq.s32.totalorder %s23, 1
      %p151 = por %p149, %p150
      %p153 = scmp.ne.s32.totalorder %s138, %s152
      %p154 = scmp.eq.s32.totalorder %s23, 0
      %p155 = por %p153, %p154
      %s157 = sadd.s32 %s156, 1
      %p160 = scmp.eq.s32.totalorder %s17, 1
      %p161 = scmp.ne.s32.totalorder %s156, %s158
      %p162 = scmp.eq.s32.totalorder %s17, 0
      %p163 = por %p161, %p162
      %p164 = scmp.ne.s32.totalorder %s156, %s158
      %p165 = scmp.eq.s32.totalorder %s22, 1
      %p166 = por %p164, %p165
      %p167 = scmp.ne.s32.totalorder %s158, %s159
      %p168 = scmp.eq.s32.totalorder %s22, 0
      %p169 = por %p167, %p168
      %p170 = scmp.ne.s32.totalorder %s158, %s159
      %p171 = scmp.eq.s32.totalorder %s23, 1
      %p172 = por %p170, %p171
      %p174 = scmp.ne.s32.totalorder %s159, %s173
      %p175 = scmp.eq.s32.totalorder %s23, 0
      %p176 = por %p174, %p175
      %s178 = sadd.s32 %s177, 1
      %p181 = scmp.eq.s32.totalorder %s17, 1
      %p182 = scmp.ne.s32.totalorder %s177, %s179
      %p183 = scmp.eq.s32.totalorder %s17, 0
      %p184 = por %p182, %p183
      %p185 = scmp.ne.s32.totalorder %s177, %s179
      %p186 = scmp.eq.s32.totalorder %s22, 1
      %p187 = por %p185, %p186
      %p188 = scmp.ne.s32.totalorder %s179, %s180
      %p189 = scmp.eq.s32.totalorder %s22, 0
      %p190 = por %p188, %p189
      %p191 = scmp.ne.s32.totalorder %s179, %s180
      %p192 = scmp.eq.s32.totalorder %s23, 1
      %p193 = por %p191, %p192
      %p195 = scmp.ne.s32.totalorder %s180, %s194
      %p196 = scmp.eq.s32.totalorder %s23, 0
      %p197 = por %p195, %p196
      %s198 = ssub.s32 %s17, %s24
      %p199 = scmp.eq.s32.totalorder %s198, 0
      %s201 = sadd.s32 %s200, 1
      %s202 = scalar_select %p199, %s200, %s201
      %p205 = pneg %p199
      %p206 = scmp.eq.s32.totalorder %s17, 1
      %p207 = por %p205, %p206
      %p208 = scmp.ne.s32.totalorder %s200, %s203
      %p209 = scmp.eq.s32.totalorder %s17, 0
      %p210 = por %p208, %p209
      %p211 = scmp.ne.s32.totalorder %s200, %s203
      %p212 = scmp.eq.s32.totalorder %s22, 1
      %p213 = por %p211, %p212
      %p214 = scmp.ne.s32.totalorder %s203, %s204
      %p215 = scmp.eq.s32.totalorder %s22, 0
      %p216 = por %p214, %p215
      %p217 = scmp.ne.s32.totalorder %s203, %s204
      %p218 = scmp.eq.s32.totalorder %s23, 1
      %p219 = por %p217, %p218
      %p221 = scmp.ne.s32.totalorder %s204, %s220
      %p222 = scmp.eq.s32.totalorder %s23, 0
      %p223 = por %p221, %p222
      %p224 = scmp.le.s32.totalorder 1, %s17
      %p225 = scmp.lt.s32.totalorder %s17, 3
      %p226 = pnand %p224, %p225
      %p227 = pneg %p226
      // Predicated region
      $region9: #{tpu_custom_call.1} parent=5 // pred_check
        _
      $region10: #{tpu_custom_call.1} parent=5 // pred_check_branch
        %229 = sbr.rel (%p226) target = $region12
      $region11: #{tpu_custom_call.1} parent=5 // pred_region
        %s230 = ssub.s32 %s17, 1
        // Predicated region
        $region13: #{tpu_custom_call.1} parent=11 // pred_check
          %p231 = pneg %p64
        $region14: #{tpu_custom_call.1} parent=11 // pred_check_branch
          %233 = sbr.rel (%p231) target = $region16
        $region15: #{tpu_custom_call.1} parent=11 // pred_region
          _
        $region16: #{tpu_custom_call.1} parent=11 // pred_fallthru
          _
        // Predicated region
        $region17: #{tpu_custom_call.1} parent=11 // pred_check
          %p234 = pneg %p85
        $region18: #{tpu_custom_call.1} parent=11 // pred_check_branch
          %236 = sbr.rel (%p234) target = $region20
        $region19: #{tpu_custom_call.1} parent=11 // pred_region
          _
        $region20: #{tpu_custom_call.1} parent=11 // pred_fallthru
          _
        // Predicated region
        $region21: #{tpu_custom_call.1} parent=11 // pred_check
          %p237 = pneg %p106
        $region22: #{tpu_custom_call.1} parent=11 // pred_check_branch
          %239 = sbr.rel (%p237) target = $region24
        $region23: #{tpu_custom_call.1} parent=11 // pred_region
          _
        $region24: #{tpu_custom_call.1} parent=11 // pred_fallthru
          _
        // Predicated region
        $region25: #{tpu_custom_call.1} parent=11 // pred_check
          %p240 = pneg %p127
        $region26: #{tpu_custom_call.1} parent=11 // pred_check_branch
          %242 = sbr.rel (%p240) target = $region28
        $region27: #{tpu_custom_call.1} parent=11 // pred_region
          _
        $region28: #{tpu_custom_call.1} parent=11 // pred_fallthru
          _
        // Predicated region
        $region29: #{tpu_custom_call.1} parent=11 // pred_check
          %p243 = pneg %p148
        $region30: #{tpu_custom_call.1} parent=11 // pred_check_branch
          %245 = sbr.rel (%p243) target = $region32
        $region31: #{tpu_custom_call.1} parent=11 // pred_region
          _
        $region32: #{tpu_custom_call.1} parent=11 // pred_fallthru
          _
        // Predicated region
        $region33: #{tpu_custom_call.1} parent=11 // pred_check
          %p246 = pneg %p169
        $region34: #{tpu_custom_call.1} parent=11 // pred_check_branch
          %248 = sbr.rel (%p246) target = $region36
        $region35: #{tpu_custom_call.1} parent=11 // pred_region
          _
        $region36: #{tpu_custom_call.1} parent=11 // pred_fallthru
          _
        // Predicated region
        $region37: #{tpu_custom_call.1} parent=11 // pred_check
          %p249 = pneg %p190
        $region38: #{tpu_custom_call.1} parent=11 // pred_check_branch
          %251 = sbr.rel (%p249) target = $region40
        $region39: #{tpu_custom_call.1} parent=11 // pred_region
          _
        $region40: #{tpu_custom_call.1} parent=11 // pred_fallthru
          _
      $region12: #{tpu_custom_call.1} parent=5 // pred_fallthru
        _
      %p252 = scmp.lt.s32.totalorder %s17, 2
      // Predicated region
      $region41: #{tpu_custom_call.1} parent=5 // pred_check
        %p253 = pneg %p252
      $region42: #{tpu_custom_call.1} parent=5 // pred_check_branch
        %255 = sbr.rel (%p253) target = $region44
      $region43: #{tpu_custom_call.1} parent=5 // pred_region
        // Predicated region
        $region45: #{tpu_custom_call.1} parent=43 // pred_check
          %p256 = pneg %p37
        $region46: #{tpu_custom_call.1} parent=43 // pred_check_branch
          %258 = sbr.rel (%p256) target = $region48
        $region47: #{tpu_custom_call.1} parent=43 // pred_region
          %s259 = smul.u32 64, %s17
          %p260 = scmp.lt.s32.totalorder %s259, 127
          %s261 = scalar_select %p260, %s259, 127
          %s262 = smul.addr %s261, 8
          %s263 = scalar_lea.vmem %s0, %s262
          %s264 = smul.u32 64, %s17
        $region48: #{tpu_custom_call.1} parent=43 // pred_fallthru
          _
      $region44: #{tpu_custom_call.1} parent=5 // pred_fallthru
        _
      %p265 = scmp.le.s32.totalorder 1, %s17
      %p266 = scmp.lt.s32.totalorder %s17, 3
      %p267 = pnand %p265, %p266
      %p268 = pneg %p267
      // Predicated region
      $region49: #{tpu_custom_call.1} parent=5 // pred_check
        _
      $region50: #{tpu_custom_call.1} parent=5 // pred_check_branch
        %270 = sbr.rel (%p267) target = $region52
      $region51: #{tpu_custom_call.1} parent=5 // pred_region
        %s271 = ssub.s32 %s17, 1
        %s272 = smul.u32 64, %s22
        %p273 = scmp.lt.s32.totalorder %s272, 127
        %s274 = scalar_select %p273, %s272, 127
        %s275 = smul.addr %s274, 8
        %s276 = scalar_lea.vmem %s0, %s275
        %p277 = pneg %p43
        %p278 = pneg %p40
        %p279 = pneg %p64
        %p280 = pneg %p61
        %p281 = pneg %p85
        %p282 = pneg %p82
        %p283 = pneg %p106
        %p284 = pneg %p103
        %p285 = pneg %p127
        %p286 = pneg %p124
        %p287 = pneg %p148
        %p288 = pneg %p145
        %p289 = pneg %p169
        %p290 = pneg %p166
        %p291 = pneg %p190
        %p292 = pneg %p187
        %p293 = pneg %p216
        %p294 = pneg %p213
        %s295 = sand.u32 %s203, 1
        %s296 = scalar_lea.sflag [#allocation3], %s295
        %s297 = sand.u32 %s203, 1
        %s298 = smul.addr %s297, 256
        %s299 = scalar_lea.vmem [#allocation2], %s298
        %s300 = smul.u32 64, %s22
        %p301 = scmp.lt.s32.totalorder %s300, 127
        %s302 = scalar_select %p301, %s300, 127
        %s303 = smul.addr %s302, 8
        %s304 = scalar_lea.vmem %s0, %s303
        %s305 = smul.u32 64, %s22
        %s306 = smul.u32 64, %s22
        %v308 = vld [vmem:[%s304] sm:$0xff]
        %v309 = vld [vmem:[%s304 + $0x8] sm:$0xff]
        %v310 = vld [vmem:[%s304 + $0x10] sm:$0xff]
        %v311 = vld [vmem:[%s304 + $0x18] sm:$0xff]
        %v312 = vld [vmem:[%s304 + $0x20] sm:$0xff]
        %v313 = vld [vmem:[%s304 + $0x28] sm:$0xff]
        %v314 = vld [vmem:[%s304 + $0x30] sm:$0xff]
        %v315 = vld [vmem:[%s304 + $0x38] sm:$0xff]
        %v316 = vld [vmem:[%s304 + $0x40] sm:$0xff]
        %v317 = vld [vmem:[%s304 + $0x48] sm:$0xff]
        %v318 = vld [vmem:[%s304 + $0x50] sm:$0xff]
        %v319 = vld [vmem:[%s304 + $0x58] sm:$0xff]
        %v320 = vld [vmem:[%s304 + $0x60] sm:$0xff]
        %v321 = vld [vmem:[%s304 + $0x68] sm:$0xff]
        %v322 = vld [vmem:[%s304 + $0x70] sm:$0xff]
        %v323 = vld [vmem:[%s304 + $0x78] sm:$0xff]
        %v324 = vld [vmem:[%s304 + $0x80] sm:$0xff]
        %v325 = vld [vmem:[%s304 + $0x88] sm:$0xff]
        %v326 = vld [vmem:[%s304 + $0x90] sm:$0xff]
        %v327 = vld [vmem:[%s304 + $0x98] sm:$0xff]
        %v328 = vld [vmem:[%s304 + $0xa0] sm:$0xff]
        %v329 = vld [vmem:[%s304 + $0xa8] sm:$0xff]
        %v330 = vld [vmem:[%s304 + $0xb0] sm:$0xff]
        %v331 = vld [vmem:[%s304 + $0xb8] sm:$0xff]
        %v332 = vld [vmem:[%s304 + $0xc0] sm:$0xff]
        %v333 = vld [vmem:[%s304 + $0xc8] sm:$0xff]
        %v334 = vld [vmem:[%s304 + $0xd0] sm:$0xff]
        %v335 = vld [vmem:[%s304 + $0xd8] sm:$0xff]
        %v336 = vld [vmem:[%s304 + $0xe0] sm:$0xff]
        %v337 = vld [vmem:[%s304 + $0xe8] sm:$0xff]
        %v338 = vld [vmem:[%s304 + $0xf0] sm:$0xff]
        %v339 = vld [vmem:[%s304 + $0xf8] sm:$0xff]
        %v340 = vld [vmem:[%s304 + $0x100] sm:$0xff]
        %v341 = vld [vmem:[%s304 + $0x108] sm:$0xff]
        %v342 = vld [vmem:[%s304 + $0x110] sm:$0xff]
        %v343 = vld [vmem:[%s304 + $0x118] sm:$0xff]
        %v344 = vld [vmem:[%s304 + $0x120] sm:$0xff]
        %v345 = vld [vmem:[%s304 + $0x128] sm:$0xff]
        %v346 = vld [vmem:[%s304 + $0x130] sm:$0xff]
        %v347 = vld [vmem:[%s304 + $0x138] sm:$0xff]
        %v348 = vld [vmem:[%s304 + $0x140] sm:$0xff]
        %v349 = vld [vmem:[%s304 + $0x148] sm:$0xff]
        %v350 = vld [vmem:[%s304 + $0x150] sm:$0xff]
        %v351 = vld [vmem:[%s304 + $0x158] sm:$0xff]
        %v352 = vld [vmem:[%s304 + $0x160] sm:$0xff]
        %v353 = vld [vmem:[%s304 + $0x168] sm:$0xff]
        %v354 = vld [vmem:[%s304 + $0x170] sm:$0xff]
        %v355 = vld [vmem:[%s304 + $0x178] sm:$0xff]
        %v356 = vld [vmem:[%s304 + $0x180] sm:$0xff]
        %v357 = vld [vmem:[%s304 + $0x188] sm:$0xff]
        %v358 = vld [vmem:[%s304 + $0x190] sm:$0xff]
        %v359 = vld [vmem:[%s304 + $0x198] sm:$0xff]
        %v360 = vld [vmem:[%s304 + $0x1a0] sm:$0xff]
        %v361 = vld [vmem:[%s304 + $0x1a8] sm:$0xff]
        %v362 = vld [vmem:[%s304 + $0x1b0] sm:$0xff]
        %v363 = vld [vmem:[%s304 + $0x1b8] sm:$0xff]
        %v364 = vld [vmem:[%s304 + $0x1c0] sm:$0xff]
        %v365 = vld [vmem:[%s304 + $0x1c8] sm:$0xff]
        %v366 = vld [vmem:[%s304 + $0x1d0] sm:$0xff]
        %v367 = vld [vmem:[%s304 + $0x1d8] sm:$0xff]
        %v368 = vld [vmem:[%s304 + $0x1e0] sm:$0xff]
        %v369 = vld [vmem:[%s304 + $0x1e8] sm:$0xff]
        %v370 = vld [vmem:[%s304 + $0x1f0] sm:$0xff]
        %v371 = vld [vmem:[%s304 + $0x1f8] sm:$0xff]
        %v372 = vld [vmem:[%s1] sm:$0xff]
        %v373 = vld [vmem:[%s1 + $0x8] sm:$0xff]
        %v374 = vld [vmem:[%s2] sm:$0x1]
        %v376 = vlaneseq
        %v377 = vshrl.u32 %v376, 7
        %v378 = vsub.s32 0, %v377
        %v379 = vrot.slane %v374, %v378
        %vm381 = vcmask 130048
        %v383 = vsel %vm381, %v308, 0
        %v386 = vsel %vm381, %v309, 0
        %v389 = vsel %vm381, %v310, 0
        %v392 = vsel %vm381, %v311, 0
        %v395 = vsel %vm381, %v312, 0
        %v398 = vsel %vm381, %v313, 0
        %v401 = vsel %vm381, %v314, 0
        %v404 = vsel %vm381, %v315, 0
        %v407 = vsel %vm381, %v316, 0
        %v410 = vsel %vm381, %v317, 0
        %v413 = vsel %vm381, %v318, 0
        %v416 = vsel %vm381, %v319, 0
        %v419 = vsel %vm381, %v320, 0
        %v422 = vsel %vm381, %v321, 0
        %v425 = vsel %vm381, %v322, 0
        %v428 = vsel %vm381, %v323, 0
        %v431 = vsel %vm381, %v324, 0
        %v434 = vsel %vm381, %v325, 0
        %v437 = vsel %vm381, %v326, 0
        %v440 = vsel %vm381, %v327, 0
        %v443 = vsel %vm381, %v328, 0
        %v446 = vsel %vm381, %v329, 0
        %v449 = vsel %vm381, %v330, 0
        %v452 = vsel %vm381, %v331, 0
        %v455 = vsel %vm381, %v332, 0
        %v458 = vsel %vm381, %v333, 0
        %v461 = vsel %vm381, %v334, 0
        %v464 = vsel %vm381, %v335, 0
        %v467 = vsel %vm381, %v336, 0
        %v470 = vsel %vm381, %v337, 0
        %v473 = vsel %vm381, %v338, 0
        %v476 = vsel %vm381, %v339, 0
        %v479 = vsel %vm381, %v340, 0
        %v482 = vsel %vm381, %v341, 0
        %v485 = vsel %vm381, %v342, 0
        %v488 = vsel %vm381, %v343, 0
        %v491 = vsel %vm381, %v344, 0
        %v494 = vsel %vm381, %v345, 0
        %v497 = vsel %vm381, %v346, 0
        %v500 = vsel %vm381, %v347, 0
        %v503 = vsel %vm381, %v348, 0
        %v506 = vsel %vm381, %v349, 0
        %v509 = vsel %vm381, %v350, 0
        %v512 = vsel %vm381, %v351, 0
        %v515 = vsel %vm381, %v352, 0
        %v518 = vsel %vm381, %v353, 0
        %v521 = vsel %vm381, %v354, 0
        %v524 = vsel %vm381, %v355, 0
        %v527 = vsel %vm381, %v356, 0
        %v530 = vsel %vm381, %v357, 0
        %v533 = vsel %vm381, %v358, 0
        %v536 = vsel %vm381, %v359, 0
        %v539 = vsel %vm381, %v360, 0
        %v542 = vsel %vm381, %v361, 0
        %v545 = vsel %vm381, %v362, 0
        %v548 = vsel %vm381, %v363, 0
        %v551 = vsel %vm381, %v364, 0
        %v554 = vsel %vm381, %v365, 0
        %v557 = vsel %vm381, %v366, 0
        %v560 = vsel %vm381, %v367, 0
        %v563 = vsel %vm381, %v368, 0
        %v566 = vsel %vm381, %v369, 0
        %v569 = vsel %vm381, %v370, 0
        %v572 = vsel %vm381, %v371, 0
        %574 = vmatprep.subr.mxu0 0.0
        %575 = vmatpush1.msra.mxu0 %v372
        %576 = vmatprep.subr.mxu0 0.0
        %577 = vmatpush1.msra.mxu0 %v373
        %578 = vmatprep.subr.mxu0 0.0
        %579 = vmatpush1.msra.mxu0 0.0
        %580 = vmatprep.subr.mxu0 0.0
        %581 = vmatpush1.msra.mxu0 0.0
        %582 = vmatprep.subr.mxu0 0.0
        %583 = vmatpush1.msra.mxu0 0.0
        %584 = vmatprep.subr.mxu0 0.0
        %585 = vmatpush1.msra.mxu0 0.0
        %586 = vmatprep.subr.mxu0 0.0
        %587 = vmatpush1.msra.mxu0 0.0
        %588 = vmatprep.subr.mxu0 0.0
        %589 = vmatpush1.msra.mxu0 0.0
        %590 = vmatprep.subr.mxu0 0.0
        %591 = vmatpush1.msra.mxu0 0.0
        %592 = vmatprep.subr.mxu0 0.0
        %593 = vmatpush1.msra.mxu0 0.0
        %594 = vmatprep.subr.mxu0 0.0
        %595 = vmatpush1.msra.mxu0 0.0
        %596 = vmatprep.subr.mxu0 0.0
        %597 = vmatpush1.msra.mxu0 0.0
        %598 = vmatprep.subr.mxu0 0.0
        %599 = vmatpush1.msra.mxu0 0.0
        %600 = vmatprep.subr.mxu0 0.0
        %601 = vmatpush1.msra.mxu0 0.0
        %602 = vmatprep.subr.mxu0 0.0
        %603 = vmatpush1.msra.mxu0 0.0
        %604 = vmatprep.subr.mxu0 0.0
        %605 = vmatpush1.msra.mxu0 0.0
        %606 = vmatprep.subr.mxu0 0.0
        %607 = vmatpush1.msra.mxu0 0.0
        %608 = vmatprep.subr.mxu0 0.0
        %609 = vmatpush1.msra.mxu0 0.0
        %610 = vmatprep.subr.mxu0 0.0
        %611 = vmatpush1.msra.mxu0 0.0
        %612 = vmatprep.subr.mxu0 0.0
        %613 = vmatpush1.msra.mxu0 0.0
        %614 = vmatprep.subr.mxu0 0.0
        %615 = vmatpush1.msra.mxu0 0.0
        %616 = vmatprep.subr.mxu0 0.0
        %617 = vmatpush1.msra.mxu0 0.0
        %618 = vmatprep.subr.mxu0 0.0
        %619 = vmatpush1.msra.mxu0 0.0
        %620 = vmatprep.subr.mxu0 0.0
        %621 = vmatpush1.msra.mxu0 0.0
        %622 = vmatprep.subr.mxu0 0.0
        %623 = vmatpush1.msra.mxu0 0.0
        %624 = vmatprep.subr.mxu0 0.0
        %625 = vmatpush1.msra.mxu0 0.0
        %626 = vmatprep.subr.mxu0 0.0
        %627 = vmatpush1.msra.mxu0 0.0
        %628 = vmatprep.subr.mxu0 0.0
        %629 = vmatpush1.msra.mxu0 0.0
        %630 = vmatprep.subr.mxu0 0.0
        %631 = vmatpush1.msra.mxu0 0.0
        %632 = vmatprep.subr.mxu0 0.0
        %633 = vmatpush1.msra.mxu0 0.0
        %634 = vmatprep.subr.mxu0 0.0
        %635 = vmatpush1.msra.mxu0 0.0
        %636 = vmatprep.subr.mxu0 0.0
        %637 = vmatpush1.msra.mxu0 0.0
        %638 = vmatprep.mubr.f32.mxu0 0.0
        %639 = vmatmul.mubr.f32.gmra.mrb[0].mxu0 %v383
        %v640 = vpop.f32.mrb[0].mxu0
        %v641 = vadd.f32 %v379, %v640
        %v642 = vpop.f32.mrb[0].mxu0
        %643 = vmatprep.mubr.f32.mxu0 0.0
        %644 = vmatmul.mubr.f32.gmra.mrb[0].mxu0 %v386
        %v645 = vpop.f32.mrb[0].mxu0
        %v646 = vadd.f32 %v379, %v645
        %v647 = vpop.f32.mrb[0].mxu0
        %648 = vmatprep.mubr.f32.mxu0 0.0
        %649 = vmatmul.mubr.f32.gmra.mrb[0].mxu0 %v389
        %v650 = vpop.f32.mrb[0].mxu0
        %v651 = vadd.f32 %v379, %v650
        %v652 = vpop.f32.mrb[0].mxu0
        %653 = vmatprep.mubr.f32.mxu0 0.0
        %654 = vmatmul.mubr.f32.gmra.mrb[0].mxu0 %v392
        %v655 = vpop.f32.mrb[0].mxu0
        %v656 = vadd.f32 %v379, %v655
        %v657 = vpop.f32.mrb[0].mxu0
        %658 = vmatprep.mubr.f32.mxu0 0.0
        %659 = vmatmul.mubr.f32.gmra.mrb[0].mxu0 %v395
        %v660 = vpop.f32.mrb[0].mxu0
        %v661 = vadd.f32 %v379, %v660
        %v662 = vpop.f32.mrb[0].mxu0
        %663 = vmatprep.mubr.f32.mxu0 0.0
        %664 = vmatmul.mubr.f32.gmra.mrb[0].mxu0 %v398
        %v665 = vpop.f32.mrb[0].mxu0
        %v666 = vadd.f32 %v379, %v665
        %v667 = vpop.f32.mrb[0].mxu0
        %668 = vmatprep.mubr.f32.mxu0 0.0
        %669 = vmatmul.mubr.f32.gmra.mrb[0].mxu0 %v401
        %v670 = vpop.f32.mrb[0].mxu0
        %v671 = vadd.f32 %v379, %v670
        %v672 = vpop.f32.mrb[0].mxu0
        %673 = vmatprep.mubr.f32.mxu0 0.0
        %674 = vmatmul.mubr.f32.gmra.mrb[0].mxu0 %v404
        %v675 = vpop.f32.mrb[0].mxu0
        %v676 = vadd.f32 %v379, %v675
        %v677 = vpop.f32.mrb[0].mxu0
        %678 = vmatprep.mubr.f32.mxu0 0.0
        %679 = vmatmul.mubr.f32.gmra.mrb[0].mxu0 %v407
        %v680 = vpop.f32.mrb[0].mxu0
        %v681 = vadd.f32 %v379, %v680
        %v682 = vpop.f32.mrb[0].mxu0
        %683 = vmatprep.mubr.f32.mxu0 0.0
        %684 = vmatmul.mubr.f32.gmra.mrb[0].mxu0 %v410
        %v685 = vpop.f32.mrb[0].mxu0
        %v686 = vadd.f32 %v379, %v685
        %v687 = vpop.f32.mrb[0].mxu0
        %688 = vmatprep.mubr.f32.mxu0 0.0
        %689 = vmatmul.mubr.f32.gmra.mrb[0].mxu0 %v413
        %v690 = vpop.f32.mrb[0].mxu0
        %v691 = vadd.f32 %v379, %v690
        %v692 = vpop.f32.mrb[0].mxu0
        %693 = vmatprep.mubr.f32.mxu0 0.0
        %694 = vmatmul.mubr.f32.gmra.mrb[0].mxu0 %v416
        %v695 = vpop.f32.mrb[0].mxu0
        %v696 = vadd.f32 %v379, %v695
        %v697 = vpop.f32.mrb[0].mxu0
        %698 = vmatprep.mubr.f32.mxu0 0.0
        %699 = vmatmul.mubr.f32.gmra.mrb[0].mxu0 %v419
        %v700 = vpop.f32.mrb[0].mxu0
        %v701 = vadd.f32 %v379, %v700
        %v702 = vpop.f32.mrb[0].mxu0
        %703 = vmatprep.mubr.f32.mxu0 0.0
        %704 = vmatmul.mubr.f32.gmra.mrb[0].mxu0 %v422
        %v705 = vpop.f32.mrb[0].mxu0
        %v706 = vadd.f32 %v379, %v705
        %v707 = vpop.f32.mrb[0].mxu0
        %708 = vmatprep.mubr.f32.mxu0 0.0
        %709 = vmatmul.mubr.f32.gmra.mrb[0].mxu0 %v425
        %v710 = vpop.f32.mrb[0].mxu0
        %v711 = vadd.f32 %v379, %v710
        %v712 = vpop.f32.mrb[0].mxu0
        %713 = vmatprep.mubr.f32.mxu0 0.0
        %714 = vmatmul.mubr.f32.gmra.mrb[0].mxu0 %v428
        %v715 = vpop.f32.mrb[0].mxu0
        %v716 = vadd.f32 %v379, %v715
        %v717 = vpop.f32.mrb[0].mxu0
        %718 = vmatprep.mubr.f32.mxu0 0.0
        %719 = vmatmul.mubr.f32.gmra.mrb[0].mxu0 %v431
        %v720 = vpop.f32.mrb[0].mxu0
        %v721 = vadd.f32 %v379, %v720
        %v722 = vpop.f32.mrb[0].mxu0
        %723 = vmatprep.mubr.f32.mxu0 0.0
        %724 = vmatmul.mubr.f32.gmra.mrb[0].mxu0 %v434
        %v725 = vpop.f32.mrb[0].mxu0
        %v726 = vadd.f32 %v379, %v725
        %v727 = vpop.f32.mrb[0].mxu0
        %728 = vmatprep.mubr.f32.mxu0 0.0
        %729 = vmatmul.mubr.f32.gmra.mrb[0].mxu0 %v437
        %v730 = vpop.f32.mrb[0].mxu0
        %v731 = vadd.f32 %v379, %v730
        %v732 = vpop.f32.mrb[0].mxu0
        %733 = vmatprep.mubr.f32.mxu0 0.0
        %734 = vmatmul.mubr.f32.gmra.mrb[0].mxu0 %v440
        %v735 = vpop.f32.mrb[0].mxu0
        %v736 = vadd.f32 %v379, %v735
        %v737 = vpop.f32.mrb[0].mxu0
        %738 = vmatprep.mubr.f32.mxu0 0.0
        %739 = vmatmul.mubr.f32.gmra.mrb[0].mxu0 %v443
        %v740 = vpop.f32.mrb[0].mxu0
        %v741 = vadd.f32 %v379, %v740
        %v742 = vpop.f32.mrb[0].mxu0
        %743 = vmatprep.mubr.f32.mxu0 0.0
        %744 = vmatmul.mubr.f32.gmra.mrb[0].mxu0 %v446
        %v745 = vpop.f32.mrb[0].mxu0
        %v746 = vadd.f32 %v379, %v745
        %v747 = vpop.f32.mrb[0].mxu0
        %748 = vmatprep.mubr.f32.mxu0 0.0
        %749 = vmatmul.mubr.f32.gmra.mrb[0].mxu0 %v449
        %v750 = vpop.f32.mrb[0].mxu0
        %v751 = vadd.f32 %v379, %v750
        %v752 = vpop.f32.mrb[0].mxu0
        %753 = vmatprep.mubr.f32.mxu0 0.0
        %754 = vmatmul.mubr.f32.gmra.mrb[0].mxu0 %v452
        %v755 = vpop.f32.mrb[0].mxu0
        %v756 = vadd.f32 %v379, %v755
        %v757 = vpop.f32.mrb[0].mxu0
        %758 = vmatprep.mubr.f32.mxu0 0.0
        %759 = vmatmul.mubr.f32.gmra.mrb[0].mxu0 %v455
        %v760 = vpop.f32.mrb[0].mxu0
        %v761 = vadd.f32 %v379, %v760
        %v762 = vpop.f32.mrb[0].mxu0
        %763 = vmatprep.mubr.f32.mxu0 0.0
        %764 = vmatmul.mubr.f32.gmra.mrb[0].mxu0 %v458
        %v765 = vpop.f32.mrb[0].mxu0
        %v766 = vadd.f32 %v379, %v765
        %v767 = vpop.f32.mrb[0].mxu0
        %768 = vmatprep.mubr.f32.mxu0 0.0
        %769 = vmatmul.mubr.f32.gmra.mrb[0].mxu0 %v461
        %v770 = vpop.f32.mrb[0].mxu0
        %v771 = vadd.f32 %v379, %v770
        %v772 = vpop.f32.mrb[0].mxu0
        %773 = vmatprep.mubr.f32.mxu0 0.0
        %774 = vmatmul.mubr.f32.gmra.mrb[0].mxu0 %v464
        %v775 = vpop.f32.mrb[0].mxu0
        %v776 = vadd.f32 %v379, %v775
        %v777 = vpop.f32.mrb[0].mxu0
        %778 = vmatprep.mubr.f32.mxu0 0.0
        %779 = vmatmul.mubr.f32.gmra.mrb[0].mxu0 %v467
        %v780 = vpop.f32.mrb[0].mxu0
        %v781 = vadd.f32 %v379, %v780
        %v782 = vpop.f32.mrb[0].mxu0
        %783 = vmatprep.mubr.f32.mxu0 0.0
        %784 = vmatmul.mubr.f32.gmra.mrb[0].mxu0 %v470
        %v785 = vpop.f32.mrb[0].mxu0
        %v786 = vadd.f32 %v379, %v785
        %v787 = vpop.f32.mrb[0].mxu0
        %788 = vmatprep.mubr.f32.mxu0 0.0
        %789 = vmatmul.mubr.f32.gmra.mrb[0].mxu0 %v473
        %v790 = vpop.f32.mrb[0].mxu0
        %v791 = vadd.f32 %v379, %v790
        %v792 = vpop.f32.mrb[0].mxu0
        %793 = vmatprep.mubr.f32.mxu0 0.0
        %794 = vmatmul.mubr.f32.gmra.mrb[0].mxu0 %v476
        %v795 = vpop.f32.mrb[0].mxu0
        %v796 = vadd.f32 %v379, %v795
        %v797 = vpop.f32.mrb[0].mxu0
        %798 = vmatprep.mubr.f32.mxu0 0.0
        %799 = vmatmul.mubr.f32.gmra.mrb[0].mxu0 %v479
        %v800 = vpop.f32.mrb[0].mxu0
        %v801 = vadd.f32 %v379, %v800
        %v802 = vpop.f32.mrb[0].mxu0
        %803 = vmatprep.mubr.f32.mxu0 0.0
        %804 = vmatmul.mubr.f32.gmra.mrb[0].mxu0 %v482
        %v805 = vpop.f32.mrb[0].mxu0
        %v806 = vadd.f32 %v379, %v805
        %v807 = vpop.f32.mrb[0].mxu0
        %808 = vmatprep.mubr.f32.mxu0 0.0
        %809 = vmatmul.mubr.f32.gmra.mrb[0].mxu0 %v485
        %v810 = vpop.f32.mrb[0].mxu0
        %v811 = vadd.f32 %v379, %v810
        %v812 = vpop.f32.mrb[0].mxu0
        %813 = vmatprep.mubr.f32.mxu0 0.0
        %814 = vmatmul.mubr.f32.gmra.mrb[0].mxu0 %v488
        %v815 = vpop.f32.mrb[0].mxu0
        %v816 = vadd.f32 %v379, %v815
        %v817 = vpop.f32.mrb[0].mxu0
        %818 = vmatprep.mubr.f32.mxu0 0.0
        %819 = vmatmul.mubr.f32.gmra.mrb[0].mxu0 %v491
        %v820 = vpop.f32.mrb[0].mxu0
        %v821 = vadd.f32 %v379, %v820
        %v822 = vpop.f32.mrb[0].mxu0
        %823 = vmatprep.mubr.f32.mxu0 0.0
        %824 = vmatmul.mubr.f32.gmra.mrb[0].mxu0 %v494
        %v825 = vpop.f32.mrb[0].mxu0
        %v826 = vadd.f32 %v379, %v825
        %v827 = vpop.f32.mrb[0].mxu0
        %828 = vmatprep.mubr.f32.mxu0 0.0
        %829 = vmatmul.mubr.f32.gmra.mrb[0].mxu0 %v497
        %v830 = vpop.f32.mrb[0].mxu0
        %v831 = vadd.f32 %v379, %v830
        %v832 = vpop.f32.mrb[0].mxu0
        %833 = vmatprep.mubr.f32.mxu0 0.0
        %834 = vmatmul.mubr.f32.gmra.mrb[0].mxu0 %v500
        %v835 = vpop.f32.mrb[0].mxu0
        %v836 = vadd.f32 %v379, %v835
        %v837 = vpop.f32.mrb[0].mxu0
        %838 = vmatprep.mubr.f32.mxu0 0.0
        %839 = vmatmul.mubr.f32.gmra.mrb[0].mxu0 %v503
        %v840 = vpop.f32.mrb[0].mxu0
        %v841 = vadd.f32 %v379, %v840
        %v842 = vpop.f32.mrb[0].mxu0
        %843 = vmatprep.mubr.f32.mxu0 0.0
        %844 = vmatmul.mubr.f32.gmra.mrb[0].mxu0 %v506
        %v845 = vpop.f32.mrb[0].mxu0
        %v846 = vadd.f32 %v379, %v845
        %v847 = vpop.f32.mrb[0].mxu0
        %848 = vmatprep.mubr.f32.mxu0 0.0
        %849 = vmatmul.mubr.f32.gmra.mrb[0].mxu0 %v509
        %v850 = vpop.f32.mrb[0].mxu0
        %v851 = vadd.f32 %v379, %v850
        %v852 = vpop.f32.mrb[0].mxu0
        %853 = vmatprep.mubr.f32.mxu0 0.0
        %854 = vmatmul.mubr.f32.gmra.mrb[0].mxu0 %v512
        %v855 = vpop.f32.mrb[0].mxu0
        %v856 = vadd.f32 %v379, %v855
        %v857 = vpop.f32.mrb[0].mxu0
        %858 = vmatprep.mubr.f32.mxu0 0.0
        %859 = vmatmul.mubr.f32.gmra.mrb[0].mxu0 %v515
        %v860 = vpop.f32.mrb[0].mxu0
        %v861 = vadd.f32 %v379, %v860
        %v862 = vpop.f32.mrb[0].mxu0
        %863 = vmatprep.mubr.f32.mxu0 0.0
        %864 = vmatmul.mubr.f32.gmra.mrb[0].mxu0 %v518
        %v865 = vpop.f32.mrb[0].mxu0
        %v866 = vadd.f32 %v379, %v865
        %v867 = vpop.f32.mrb[0].mxu0
        %868 = vmatprep.mubr.f32.mxu0 0.0
        %869 = vmatmul.mubr.f32.gmra.mrb[0].mxu0 %v521
        %v870 = vpop.f32.mrb[0].mxu0
        %v871 = vadd.f32 %v379, %v870
        %v872 = vpop.f32.mrb[0].mxu0
        %873 = vmatprep.mubr.f32.mxu0 0.0
        %874 = vmatmul.mubr.f32.gmra.mrb[0].mxu0 %v524
        %v875 = vpop.f32.mrb[0].mxu0
        %v876 = vadd.f32 %v379, %v875
        %v877 = vpop.f32.mrb[0].mxu0
        %878 = vmatprep.mubr.f32.mxu0 0.0
        %879 = vmatmul.mubr.f32.gmra.mrb[0].mxu0 %v527
        %v880 = vpop.f32.mrb[0].mxu0
        %v881 = vadd.f32 %v379, %v880
        %v882 = vpop.f32.mrb[0].mxu0
        %883 = vmatprep.mubr.f32.mxu0 0.0
        %884 = vmatmul.mubr.f32.gmra.mrb[0].mxu0 %v530
        %v885 = vpop.f32.mrb[0].mxu0
        %v886 = vadd.f32 %v379, %v885
        %v887 = vpop.f32.mrb[0].mxu0
        %888 = vmatprep.mubr.f32.mxu0 0.0
        %889 = vmatmul.mubr.f32.gmra.mrb[0].mxu0 %v533
        %v890 = vpop.f32.mrb[0].mxu0
        %v891 = vadd.f32 %v379, %v890
        %v892 = vpop.f32.mrb[0].mxu0
        %893 = vmatprep.mubr.f32.mxu0 0.0
        %894 = vmatmul.mubr.f32.gmra.mrb[0].mxu0 %v536
        %v895 = vpop.f32.mrb[0].mxu0
        %v896 = vadd.f32 %v379, %v895
        %v897 = vpop.f32.mrb[0].mxu0
        %898 = vmatprep.mubr.f32.mxu0 0.0
        %899 = vmatmul.mubr.f32.gmra.mrb[0].mxu0 %v539
        %v900 = vpop.f32.mrb[0].mxu0
        %v901 = vadd.f32 %v379, %v900
        %v902 = vpop.f32.mrb[0].mxu0
        %903 = vmatprep.mubr.f32.mxu0 0.0
        %904 = vmatmul.mubr.f32.gmra.mrb[0].mxu0 %v542
        %v905 = vpop.f32.mrb[0].mxu0
        %v906 = vadd.f32 %v379, %v905
        %v907 = vpop.f32.mrb[0].mxu0
        %908 = vmatprep.mubr.f32.mxu0 0.0
        %909 = vmatmul.mubr.f32.gmra.mrb[0].mxu0 %v545
        %v910 = vpop.f32.mrb[0].mxu0
        %v911 = vadd.f32 %v379, %v910
        %v912 = vpop.f32.mrb[0].mxu0
        %913 = vmatprep.mubr.f32.mxu0 0.0
        %914 = vmatmul.mubr.f32.gmra.mrb[0].mxu0 %v548
        %v915 = vpop.f32.mrb[0].mxu0
        %v916 = vadd.f32 %v379, %v915
        %v917 = vpop.f32.mrb[0].mxu0
        %918 = vmatprep.mubr.f32.mxu0 0.0
        %919 = vmatmul.mubr.f32.gmra.mrb[0].mxu0 %v551
        %v920 = vpop.f32.mrb[0].mxu0
        %v921 = vadd.f32 %v379, %v920
        %v922 = vpop.f32.mrb[0].mxu0
        %923 = vmatprep.mubr.f32.mxu0 0.0
        %924 = vmatmul.mubr.f32.gmra.mrb[0].mxu0 %v554
        %v925 = vpop.f32.mrb[0].mxu0
        %v926 = vadd.f32 %v379, %v925
        %v927 = vpop.f32.mrb[0].mxu0
        %928 = vmatprep.mubr.f32.mxu0 0.0
        %929 = vmatmul.mubr.f32.gmra.mrb[0].mxu0 %v557
        %v930 = vpop.f32.mrb[0].mxu0
        %v931 = vadd.f32 %v379, %v930
        %v932 = vpop.f32.mrb[0].mxu0
        %933 = vmatprep.mubr.f32.mxu0 0.0
        %934 = vmatmul.mubr.f32.gmra.mrb[0].mxu0 %v560
        %v935 = vpop.f32.mrb[0].mxu0
        %v936 = vadd.f32 %v379, %v935
        %v937 = vpop.f32.mrb[0].mxu0
        %938 = vmatprep.mubr.f32.mxu0 0.0
        %939 = vmatmul.mubr.f32.gmra.mrb[0].mxu0 %v563
        %v940 = vpop.f32.mrb[0].mxu0
        %v941 = vadd.f32 %v379, %v940
        %v942 = vpop.f32.mrb[0].mxu0
        %943 = vmatprep.mubr.f32.mxu0 0.0
        %944 = vmatmul.mubr.f32.gmra.mrb[0].mxu0 %v566
        %v945 = vpop.f32.mrb[0].mxu0
        %v946 = vadd.f32 %v379, %v945
        %v947 = vpop.f32.mrb[0].mxu0
        %948 = vmatprep.mubr.f32.mxu0 0.0
        %949 = vmatmul.mubr.f32.gmra.mrb[0].mxu0 %v569
        %v950 = vpop.f32.mrb[0].mxu0
        %v951 = vadd.f32 %v379, %v950
        %v952 = vpop.f32.mrb[0].mxu0
        %953 = vmatprep.mubr.f32.mxu0 0.0
        %954 = vmatmul.mubr.f32.gmra.mrb[0].mxu0 %v572
        %v955 = vpop.f32.mrb[0].mxu0
        %v956 = vadd.f32 %v379, %v955
        %v957 = vpop.f32.mrb[0].mxu0
        %958 = vdwg.mxu0
        %v959 = vtanh.pop %v641
        %v960 = vtanh.pop %v646
        %v961 = vtanh.pop %v651
        %v962 = vtanh.pop %v656
        %v963 = vtanh.pop %v661
        %v964 = vtanh.pop %v666
        %v965 = vtanh.pop %v671
        %v966 = vtanh.pop %v676
        %v967 = vtanh.pop %v681
        %v968 = vtanh.pop %v686
        %v969 = vtanh.pop %v691
        %v970 = vtanh.pop %v696
        %v971 = vtanh.pop %v701
        %v972 = vtanh.pop %v706
        %v973 = vtanh.pop %v711
        %v974 = vtanh.pop %v716
        %v975 = vtanh.pop %v721
        %v976 = vtanh.pop %v726
        %v977 = vtanh.pop %v731
        %v978 = vtanh.pop %v736
        %v979 = vtanh.pop %v741
        %v980 = vtanh.pop %v746
        %v981 = vtanh.pop %v751
        %v982 = vtanh.pop %v756
        %v983 = vtanh.pop %v761
        %v984 = vtanh.pop %v766
        %v985 = vtanh.pop %v771
        %v986 = vtanh.pop %v776
        %v987 = vtanh.pop %v781
        %v988 = vtanh.pop %v786
        %v989 = vtanh.pop %v791
        %v990 = vtanh.pop %v796
        %v991 = vtanh.pop %v801
        %v992 = vtanh.pop %v806
        %v993 = vtanh.pop %v811
        %v994 = vtanh.pop %v816
        %v995 = vtanh.pop %v821
        %v996 = vtanh.pop %v826
        %v997 = vtanh.pop %v831
        %v998 = vtanh.pop %v836
        %v999 = vtanh.pop %v841
        %v1000 = vtanh.pop %v846
        %v1001 = vtanh.pop %v851
        %v1002 = vtanh.pop %v856
        %v1003 = vtanh.pop %v861
        %v1004 = vtanh.pop %v866
        %v1005 = vtanh.pop %v871
        %v1006 = vtanh.pop %v876
        %v1007 = vtanh.pop %v881
        %v1008 = vtanh.pop %v886
        %v1009 = vtanh.pop %v891
        %v1010 = vtanh.pop %v896
        %v1011 = vtanh.pop %v901
        %v1012 = vtanh.pop %v906
        %v1013 = vtanh.pop %v911
        %v1014 = vtanh.pop %v916
        %v1015 = vtanh.pop %v921
        %v1016 = vtanh.pop %v926
        %v1017 = vtanh.pop %v931
        %v1018 = vtanh.pop %v936
        %v1019 = vtanh.pop %v941
        %v1020 = vtanh.pop %v946
        %v1021 = vtanh.pop %v951
        %v1022 = vtanh.pop %v956
        %v1023 = vpack.c.bf16 %v960, %v959
        %v1024 = vpack.c.bf16 %v962, %v961
        %v1025 = vpack.c.bf16 %v964, %v963
        %v1026 = vpack.c.bf16 %v966, %v965
        %v1027 = vpack.c.bf16 %v968, %v967
        %v1028 = vpack.c.bf16 %v970, %v969
        %v1029 = vpack.c.bf16 %v972, %v971
        %v1030 = vpack.c.bf16 %v974, %v973
        %v1031 = vpack.c.bf16 %v976, %v975
        %v1032 = vpack.c.bf16 %v978, %v977
        %v1033 = vpack.c.bf16 %v980, %v979
        %v1034 = vpack.c.bf16 %v982, %v981
        %v1035 = vpack.c.bf16 %v984, %v983
        %v1036 = vpack.c.bf16 %v986, %v985
        %v1037 = vpack.c.bf16 %v988, %v987
        %v1038 = vpack.c.bf16 %v990, %v989
        %v1039 = vpack.c.bf16 %v992, %v991
        %v1040 = vpack.c.bf16 %v994, %v993
        %v1041 = vpack.c.bf16 %v996, %v995
        %v1042 = vpack.c.bf16 %v998, %v997
        %v1043 = vpack.c.bf16 %v1000, %v999
        %v1044 = vpack.c.bf16 %v1002, %v1001
        %v1045 = vpack.c.bf16 %v1004, %v1003
        %v1046 = vpack.c.bf16 %v1006, %v1005
        %v1047 = vpack.c.bf16 %v1008, %v1007
        %v1048 = vpack.c.bf16 %v1010, %v1009
        %v1049 = vpack.c.bf16 %v1012, %v1011
        %v1050 = vpack.c.bf16 %v1014, %v1013
        %v1051 = vpack.c.bf16 %v1016, %v1015
        %v1052 = vpack.c.bf16 %v1018, %v1017
        %v1053 = vpack.c.bf16 %v1020, %v1019
        %v1054 = vpack.c.bf16 %v1022, %v1021
        %v1055 = vld [vmem:[%s3] sm:$0xf]
        %v1056 = vld [vmem:[%s3 + $0x4] sm:$0xf]
        %v1057 = vld [vmem:[%s3 + $0x8] sm:$0xf]
        %v1058 = vld [vmem:[%s3 + $0xc] sm:$0xf]
        %v1059 = vld [vmem:[%s3 + $0x10] sm:$0xf]
        %v1060 = vld [vmem:[%s3 + $0x14] sm:$0xf]
        %v1061 = vld [vmem:[%s3 + $0x18] sm:$0xf]
        %v1062 = vld [vmem:[%s3 + $0x1c] sm:$0xf]
        %v1063 = vld [vmem:[%s4] sm:$0x1]
        %v1065 = vlaneseq
        %v1066 = vshrl.u32 %v1065, 7
        %v1067 = vsub.s32 0, %v1066
        %v1068 = vrot.slane %v1063, %v1067
        %v1078 = vunpack.c.l.b16 %v1055
        %v1079 = vunpack.c.l.b16 %v1056
        %v1080 = vunpack.c.l.b16 %v1057
        %v1081 = vunpack.c.l.b16 %v1058
        %v1082 = vunpack.c.l.b16 %v1059
        %v1083 = vunpack.c.l.b16 %v1060
        %v1084 = vunpack.c.l.b16 %v1061
        %v1085 = vunpack.c.l.b16 %v1062
        %v1086 = vpack.c.b16 %v1079, %v1078
        %v1087 = vpack.c.b16 %v1081, %v1080
        %v1088 = vpack.c.b16 %v1083, %v1082
        %v1089 = vpack.c.b16 %v1085, %v1084
        %vm1094 = vcmask 523264
        %v1096 = vsel %vm1094, %v1023, 0
        %v1099 = vsel %vm1094, %v1024, 0
        %v1102 = vsel %vm1094, %v1025, 0
        %v1105 = vsel %vm1094, %v1026, 0
        %v1108 = vsel %vm1094, %v1027, 0
        %v1111 = vsel %vm1094, %v1028, 0
        %v1114 = vsel %vm1094, %v1029, 0
        %v1117 = vsel %vm1094, %v1030, 0
        %v1120 = vsel %vm1094, %v1031, 0
        %v1123 = vsel %vm1094, %v1032, 0
        %v1126 = vsel %vm1094, %v1033, 0
        %v1129 = vsel %vm1094, %v1034, 0
        %v1132 = vsel %vm1094, %v1035, 0
        %v1135 = vsel %vm1094, %v1036, 0
        %v1138 = vsel %vm1094, %v1037, 0
        %v1141 = vsel %vm1094, %v1038, 0
        %v1144 = vsel %vm1094, %v1039, 0
        %v1147 = vsel %vm1094, %v1040, 0
        %v1150 = vsel %vm1094, %v1041, 0
        %v1153 = vsel %vm1094, %v1042, 0
        %v1156 = vsel %vm1094, %v1043, 0
        %v1159 = vsel %vm1094, %v1044, 0
        %v1162 = vsel %vm1094, %v1045, 0
        %v1165 = vsel %vm1094, %v1046, 0
        %v1168 = vsel %vm1094, %v1047, 0
        %v1171 = vsel %vm1094, %v1048, 0
        %v1174 = vsel %vm1094, %v1049, 0
        %v1177 = vsel %vm1094, %v1050, 0
        %v1180 = vsel %vm1094, %v1051, 0
        %v1183 = vsel %vm1094, %v1052, 0
        %v1186 = vsel %vm1094, %v1053, 0
        %v1189 = vsel %vm1094, %v1054, 0
        %1191 = vmatprep.subr.bf16.mxu0 0
        %1192 = vmatpush1.bf16.msra.mxu0 %v1086
        %1193 = vmatprep.subr.bf16.mxu0 0
        %1194 = vmatpush1.bf16.msra.mxu0 %v1087
        %1195 = vmatprep.subr.bf16.mxu0 0
        %1196 = vmatpush1.bf16.msra.mxu0 %v1088
        %1197 = vmatprep.subr.bf16.mxu0 0
        %1198 = vmatpush1.bf16.msra.mxu0 %v1089
        %1199 = vmatprep.subr.bf16.mxu0 0
        %1200 = vmatpush1.bf16.msra.mxu0 0
        %1201 = vmatprep.subr.bf16.mxu0 0
        %1202 = vmatpush1.bf16.msra.mxu0 0
        %1203 = vmatprep.subr.bf16.mxu0 0
        %1204 = vmatpush1.bf16.msra.mxu0 0
        %1205 = vmatprep.subr.bf16.mxu0 0
        %1206 = vmatpush1.bf16.msra.mxu0 0
        %1207 = vmatprep.subr.bf16.mxu0 0
        %1208 = vmatpush1.bf16.msra.mxu0 0
        %1209 = vmatprep.subr.bf16.mxu0 0
        %1210 = vmatpush1.bf16.msra.mxu0 0
        %1211 = vmatprep.subr.bf16.mxu0 0
        %1212 = vmatpush1.bf16.msra.mxu0 0
        %1213 = vmatprep.subr.bf16.mxu0 0
        %1214 = vmatpush1.bf16.msra.mxu0 0
        %1215 = vmatprep.subr.bf16.mxu0 0
        %1216 = vmatpush1.bf16.msra.mxu0 0
        %1217 = vmatprep.subr.bf16.mxu0 0
        %1218 = vmatpush1.bf16.msra.mxu0 0
        %1219 = vmatprep.subr.bf16.mxu0 0
        %1220 = vmatpush1.bf16.msra.mxu0 0
        %1221 = vmatprep.subr.bf16.mxu0 0
        %1222 = vmatpush1.bf16.msra.mxu0 0
        %1223 = vmatprep.mubr.bf16.mxu0 0
        %1224 = vmatmul.mubr.bf16.gmra.mrb[0].mxu0 %v1096
        %v1225 = vpop.f32.mrb[0].mxu0
        %v1226 = vadd.f32 %v1068, %v1225
        %v1227 = vpop.f32.mrb[0].mxu0
        %v1228 = vpop.f32.mrb[0].mxu0
        %v1229 = vadd.f32 %v1068, %v1228
        %v1230 = vpop.f32.mrb[0].mxu0
        %1231 = vmatprep.mubr.bf16.mxu0 0
        %1232 = vmatmul.mubr.bf16.gmra.mrb[0].mxu0 %v1099
        %v1233 = vpop.f32.mrb[0].mxu0
        %v1234 = vadd.f32 %v1068, %v1233
        %v1235 = vpop.f32.mrb[0].mxu0
        %v1236 = vpop.f32.mrb[0].mxu0
        %v1237 = vadd.f32 %v1068, %v1236
        %v1238 = vpop.f32.mrb[0].mxu0
        %1239 = vmatprep.mubr.bf16.mxu0 0
        %1240 = vmatmul.mubr.bf16.gmra.mrb[0].mxu0 %v1102
        %v1241 = vpop.f32.mrb[0].mxu0
        %v1242 = vadd.f32 %v1068, %v1241
        %v1243 = vpop.f32.mrb[0].mxu0
        %v1244 = vpop.f32.mrb[0].mxu0
        %v1245 = vadd.f32 %v1068, %v1244
        %v1246 = vpop.f32.mrb[0].mxu0
        %1247 = vmatprep.mubr.bf16.mxu0 0
        %1248 = vmatmul.mubr.bf16.gmra.mrb[0].mxu0 %v1105
        %v1249 = vpop.f32.mrb[0].mxu0
        %v1250 = vadd.f32 %v1068, %v1249
        %v1251 = vpop.f32.mrb[0].mxu0
        %v1252 = vpop.f32.mrb[0].mxu0
        %v1253 = vadd.f32 %v1068, %v1252
        %v1254 = vpop.f32.mrb[0].mxu0
        %1255 = vmatprep.mubr.bf16.mxu0 0
        %1256 = vmatmul.mubr.bf16.gmra.mrb[0].mxu0 %v1108
        %v1257 = vpop.f32.mrb[0].mxu0
        %v1258 = vadd.f32 %v1068, %v1257
        %v1259 = vpop.f32.mrb[0].mxu0
        %v1260 = vpop.f32.mrb[0].mxu0
        %v1261 = vadd.f32 %v1068, %v1260
        %v1262 = vpop.f32.mrb[0].mxu0
        %1263 = vmatprep.mubr.bf16.mxu0 0
        %1264 = vmatmul.mubr.bf16.gmra.mrb[0].mxu0 %v1111
        %v1265 = vpop.f32.mrb[0].mxu0
        %v1266 = vadd.f32 %v1068, %v1265
        %v1267 = vpop.f32.mrb[0].mxu0
        %v1268 = vpop.f32.mrb[0].mxu0
        %v1269 = vadd.f32 %v1068, %v1268
        %v1270 = vpop.f32.mrb[0].mxu0
        %1271 = vmatprep.mubr.bf16.mxu0 0
        %1272 = vmatmul.mubr.bf16.gmra.mrb[0].mxu0 %v1114
        %v1273 = vpop.f32.mrb[0].mxu0
        %v1274 = vadd.f32 %v1068, %v1273
        %v1275 = vpop.f32.mrb[0].mxu0
        %v1276 = vpop.f32.mrb[0].mxu0
        %v1277 = vadd.f32 %v1068, %v1276
        %v1278 = vpop.f32.mrb[0].mxu0
        %1279 = vmatprep.mubr.bf16.mxu0 0
        %1280 = vmatmul.mubr.bf16.gmra.mrb[0].mxu0 %v1117
        %v1281 = vpop.f32.mrb[0].mxu0
        %v1282 = vadd.f32 %v1068, %v1281
        %v1283 = vpop.f32.mrb[0].mxu0
        %v1284 = vpop.f32.mrb[0].mxu0
        %v1285 = vadd.f32 %v1068, %v1284
        %v1286 = vpop.f32.mrb[0].mxu0
        %1287 = vmatprep.mubr.bf16.mxu0 0
        %1288 = vmatmul.mubr.bf16.gmra.mrb[0].mxu0 %v1120
        %v1289 = vpop.f32.mrb[0].mxu0
        %v1290 = vadd.f32 %v1068, %v1289
        %v1291 = vpop.f32.mrb[0].mxu0
        %v1292 = vpop.f32.mrb[0].mxu0
        %v1293 = vadd.f32 %v1068, %v1292
        %v1294 = vpop.f32.mrb[0].mxu0
        %1295 = vmatprep.mubr.bf16.mxu0 0
        %1296 = vmatmul.mubr.bf16.gmra.mrb[0].mxu0 %v1123
        %v1297 = vpop.f32.mrb[0].mxu0
        %v1298 = vadd.f32 %v1068, %v1297
        %v1299 = vpop.f32.mrb[0].mxu0
        %v1300 = vpop.f32.mrb[0].mxu0
        %v1301 = vadd.f32 %v1068, %v1300
        %v1302 = vpop.f32.mrb[0].mxu0
        %1303 = vmatprep.mubr.bf16.mxu0 0
        %1304 = vmatmul.mubr.bf16.gmra.mrb[0].mxu0 %v1126
        %v1305 = vpop.f32.mrb[0].mxu0
        %v1306 = vadd.f32 %v1068, %v1305
        %v1307 = vpop.f32.mrb[0].mxu0
        %v1308 = vpop.f32.mrb[0].mxu0
        %v1309 = vadd.f32 %v1068, %v1308
        %v1310 = vpop.f32.mrb[0].mxu0
        %1311 = vmatprep.mubr.bf16.mxu0 0
        %1312 = vmatmul.mubr.bf16.gmra.mrb[0].mxu0 %v1129
        %v1313 = vpop.f32.mrb[0].mxu0
        %v1314 = vadd.f32 %v1068, %v1313
        %v1315 = vpop.f32.mrb[0].mxu0
        %v1316 = vpop.f32.mrb[0].mxu0
        %v1317 = vadd.f32 %v1068, %v1316
        %v1318 = vpop.f32.mrb[0].mxu0
        %1319 = vmatprep.mubr.bf16.mxu0 0
        %1320 = vmatmul.mubr.bf16.gmra.mrb[0].mxu0 %v1132
        %v1321 = vpop.f32.mrb[0].mxu0
        %v1322 = vadd.f32 %v1068, %v1321
        %v1323 = vpop.f32.mrb[0].mxu0
        %v1324 = vpop.f32.mrb[0].mxu0
        %v1325 = vadd.f32 %v1068, %v1324
        %v1326 = vpop.f32.mrb[0].mxu0
        %1327 = vmatprep.mubr.bf16.mxu0 0
        %1328 = vmatmul.mubr.bf16.gmra.mrb[0].mxu0 %v1135
        %v1329 = vpop.f32.mrb[0].mxu0
        %v1330 = vadd.f32 %v1068, %v1329
        %v1331 = vpop.f32.mrb[0].mxu0
        %v1332 = vpop.f32.mrb[0].mxu0
        %v1333 = vadd.f32 %v1068, %v1332
        %v1334 = vpop.f32.mrb[0].mxu0
        %1335 = vmatprep.mubr.bf16.mxu0 0
        %1336 = vmatmul.mubr.bf16.gmra.mrb[0].mxu0 %v1138
        %v1337 = vpop.f32.mrb[0].mxu0
        %v1338 = vadd.f32 %v1068, %v1337
        %v1339 = vpop.f32.mrb[0].mxu0
        %v1340 = vpop.f32.mrb[0].mxu0
        %v1341 = vadd.f32 %v1068, %v1340
        %v1342 = vpop.f32.mrb[0].mxu0
        %1343 = vmatprep.mubr.bf16.mxu0 0
        %1344 = vmatmul.mubr.bf16.gmra.mrb[0].mxu0 %v1141
        %v1345 = vpop.f32.mrb[0].mxu0
        %v1346 = vadd.f32 %v1068, %v1345
        %v1347 = vpop.f32.mrb[0].mxu0
        %v1348 = vpop.f32.mrb[0].mxu0
        %v1349 = vadd.f32 %v1068, %v1348
        %v1350 = vpop.f32.mrb[0].mxu0
        %1351 = vmatprep.mubr.bf16.mxu0 0
        %1352 = vmatmul.mubr.bf16.gmra.mrb[0].mxu0 %v1144
        %v1353 = vpop.f32.mrb[0].mxu0
        %v1354 = vadd.f32 %v1068, %v1353
        %v1355 = vpop.f32.mrb[0].mxu0
        %v1356 = vpop.f32.mrb[0].mxu0
        %v1357 = vadd.f32 %v1068, %v1356
        %v1358 = vpop.f32.mrb[0].mxu0
        %1359 = vmatprep.mubr.bf16.mxu0 0
        %1360 = vmatmul.mubr.bf16.gmra.mrb[0].mxu0 %v1147
        %v1361 = vpop.f32.mrb[0].mxu0
        %v1362 = vadd.f32 %v1068, %v1361
        %v1363 = vpop.f32.mrb[0].mxu0
        %v1364 = vpop.f32.mrb[0].mxu0
        %v1365 = vadd.f32 %v1068, %v1364
        %v1366 = vpop.f32.mrb[0].mxu0
        %1367 = vmatprep.mubr.bf16.mxu0 0
        %1368 = vmatmul.mubr.bf16.gmra.mrb[0].mxu0 %v1150
        %v1369 = vpop.f32.mrb[0].mxu0
        %v1370 = vadd.f32 %v1068, %v1369
        %v1371 = vpop.f32.mrb[0].mxu0
        %v1372 = vpop.f32.mrb[0].mxu0
        %v1373 = vadd.f32 %v1068, %v1372
        %v1374 = vpop.f32.mrb[0].mxu0
        %1375 = vmatprep.mubr.bf16.mxu0 0
        %1376 = vmatmul.mubr.bf16.gmra.mrb[0].mxu0 %v1153
        %v1377 = vpop.f32.mrb[0].mxu0
        %v1378 = vadd.f32 %v1068, %v1377
        %v1379 = vpop.f32.mrb[0].mxu0
        %v1380 = vpop.f32.mrb[0].mxu0
        %v1381 = vadd.f32 %v1068, %v1380
        %v1382 = vpop.f32.mrb[0].mxu0
        %1383 = vmatprep.mubr.bf16.mxu0 0
        %1384 = vmatmul.mubr.bf16.gmra.mrb[0].mxu0 %v1156
        %v1385 = vpop.f32.mrb[0].mxu0
        %v1386 = vadd.f32 %v1068, %v1385
        %v1387 = vpop.f32.mrb[0].mxu0
        %v1388 = vpop.f32.mrb[0].mxu0
        %v1389 = vadd.f32 %v1068, %v1388
        %v1390 = vpop.f32.mrb[0].mxu0
        %1391 = vmatprep.mubr.bf16.mxu0 0
        %1392 = vmatmul.mubr.bf16.gmra.mrb[0].mxu0 %v1159
        %v1393 = vpop.f32.mrb[0].mxu0
        %v1394 = vadd.f32 %v1068, %v1393
        %v1395 = vpop.f32.mrb[0].mxu0
        %v1396 = vpop.f32.mrb[0].mxu0
        %v1397 = vadd.f32 %v1068, %v1396
        %v1398 = vpop.f32.mrb[0].mxu0
        %1399 = vmatprep.mubr.bf16.mxu0 0
        %1400 = vmatmul.mubr.bf16.gmra.mrb[0].mxu0 %v1162
        %v1401 = vpop.f32.mrb[0].mxu0
        %v1402 = vadd.f32 %v1068, %v1401
        %v1403 = vpop.f32.mrb[0].mxu0
        %v1404 = vpop.f32.mrb[0].mxu0
        %v1405 = vadd.f32 %v1068, %v1404
        %v1406 = vpop.f32.mrb[0].mxu0
        %1407 = vmatprep.mubr.bf16.mxu0 0
        %1408 = vmatmul.mubr.bf16.gmra.mrb[0].mxu0 %v1165
        %v1409 = vpop.f32.mrb[0].mxu0
        %v1410 = vadd.f32 %v1068, %v1409
        %v1411 = vpop.f32.mrb[0].mxu0
        %v1412 = vpop.f32.mrb[0].mxu0
        %v1413 = vadd.f32 %v1068, %v1412
        %v1414 = vpop.f32.mrb[0].mxu0
        %1415 = vmatprep.mubr.bf16.mxu0 0
        %1416 = vmatmul.mubr.bf16.gmra.mrb[0].mxu0 %v1168
        %v1417 = vpop.f32.mrb[0].mxu0
        %v1418 = vadd.f32 %v1068, %v1417
        %v1419 = vpop.f32.mrb[0].mxu0
        %v1420 = vpop.f32.mrb[0].mxu0
        %v1421 = vadd.f32 %v1068, %v1420
        %v1422 = vpop.f32.mrb[0].mxu0
        %1423 = vmatprep.mubr.bf16.mxu0 0
        %1424 = vmatmul.mubr.bf16.gmra.mrb[0].mxu0 %v1171
        %v1425 = vpop.f32.mrb[0].mxu0
        %v1426 = vadd.f32 %v1068, %v1425
        %v1427 = vpop.f32.mrb[0].mxu0
        %v1428 = vpop.f32.mrb[0].mxu0
        %v1429 = vadd.f32 %v1068, %v1428
        %v1430 = vpop.f32.mrb[0].mxu0
        %1431 = vmatprep.mubr.bf16.mxu0 0
        %1432 = vmatmul.mubr.bf16.gmra.mrb[0].mxu0 %v1174
        %v1433 = vpop.f32.mrb[0].mxu0
        %v1434 = vadd.f32 %v1068, %v1433
        %v1435 = vpop.f32.mrb[0].mxu0
        %v1436 = vpop.f32.mrb[0].mxu0
        %v1437 = vadd.f32 %v1068, %v1436
        %v1438 = vpop.f32.mrb[0].mxu0
        %1439 = vmatprep.mubr.bf16.mxu0 0
        %1440 = vmatmul.mubr.bf16.gmra.mrb[0].mxu0 %v1177
        %v1441 = vpop.f32.mrb[0].mxu0
        %v1442 = vadd.f32 %v1068, %v1441
        %v1443 = vpop.f32.mrb[0].mxu0
        %v1444 = vpop.f32.mrb[0].mxu0
        %v1445 = vadd.f32 %v1068, %v1444
        %v1446 = vpop.f32.mrb[0].mxu0
        %1447 = vmatprep.mubr.bf16.mxu0 0
        %1448 = vmatmul.mubr.bf16.gmra.mrb[0].mxu0 %v1180
        %v1449 = vpop.f32.mrb[0].mxu0
        %v1450 = vadd.f32 %v1068, %v1449
        %v1451 = vpop.f32.mrb[0].mxu0
        %v1452 = vpop.f32.mrb[0].mxu0
        %v1453 = vadd.f32 %v1068, %v1452
        %v1454 = vpop.f32.mrb[0].mxu0
        %1455 = vmatprep.mubr.bf16.mxu0 0
        %1456 = vmatmul.mubr.bf16.gmra.mrb[0].mxu0 %v1183
        %v1457 = vpop.f32.mrb[0].mxu0
        %v1458 = vadd.f32 %v1068, %v1457
        %v1459 = vpop.f32.mrb[0].mxu0
        %v1460 = vpop.f32.mrb[0].mxu0
        %v1461 = vadd.f32 %v1068, %v1460
        %v1462 = vpop.f32.mrb[0].mxu0
        %1463 = vmatprep.mubr.bf16.mxu0 0
        %1464 = vmatmul.mubr.bf16.gmra.mrb[0].mxu0 %v1186
        %v1465 = vpop.f32.mrb[0].mxu0
        %v1466 = vadd.f32 %v1068, %v1465
        %v1467 = vpop.f32.mrb[0].mxu0
        %v1468 = vpop.f32.mrb[0].mxu0
        %v1469 = vadd.f32 %v1068, %v1468
        %v1470 = vpop.f32.mrb[0].mxu0
        %1471 = vmatprep.mubr.bf16.mxu0 0
        %1472 = vmatmul.mubr.bf16.gmra.mrb[0].mxu0 %v1189
        %v1473 = vpop.f32.mrb[0].mxu0
        %v1474 = vadd.f32 %v1068, %v1473
        %v1475 = vpop.f32.mrb[0].mxu0
        %v1476 = vpop.f32.mrb[0].mxu0
        %v1477 = vadd.f32 %v1068, %v1476
        %v1478 = vpop.f32.mrb[0].mxu0
        %1479 = vdwg.mxu0
        %v1480 = vtanh.pop %v1226
        %v1481 = vtanh.pop %v1229
        %v1482 = vtanh.pop %v1234
        %v1483 = vtanh.pop %v1237
        %v1484 = vtanh.pop %v1242
        %v1485 = vtanh.pop %v1245
        %v1486 = vtanh.pop %v1250
        %v1487 = vtanh.pop %v1253
        %v1488 = vtanh.pop %v1258
        %v1489 = vtanh.pop %v1261
        %v1490 = vtanh.pop %v1266
        %v1491 = vtanh.pop %v1269
        %v1492 = vtanh.pop %v1274
        %v1493 = vtanh.pop %v1277
        %v1494 = vtanh.pop %v1282
        %v1495 = vtanh.pop %v1285
        %v1496 = vtanh.pop %v1290
        %v1497 = vtanh.pop %v1293
        %v1498 = vtanh.pop %v1298
        %v1499 = vtanh.pop %v1301
        %v1500 = vtanh.pop %v1306
        %v1501 = vtanh.pop %v1309
        %v1502 = vtanh.pop %v1314
        %v1503 = vtanh.pop %v1317
        %v1504 = vtanh.pop %v1322
        %v1505 = vtanh.pop %v1325
        %v1506 = vtanh.pop %v1330
        %v1507 = vtanh.pop %v1333
        %v1508 = vtanh.pop %v1338
        %v1509 = vtanh.pop %v1341
        %v1510 = vtanh.pop %v1346
        %v1511 = vtanh.pop %v1349
        %v1512 = vtanh.pop %v1354
        %v1513 = vtanh.pop %v1357
        %v1514 = vtanh.pop %v1362
        %v1515 = vtanh.pop %v1365
        %v1516 = vtanh.pop %v1370
        %v1517 = vtanh.pop %v1373
        %v1518 = vtanh.pop %v1378
        %v1519 = vtanh.pop %v1381
        %v1520 = vtanh.pop %v1386
        %v1521 = vtanh.pop %v1389
        %v1522 = vtanh.pop %v1394
        %v1523 = vtanh.pop %v1397
        %v1524 = vtanh.pop %v1402
        %v1525 = vtanh.pop %v1405
        %v1526 = vtanh.pop %v1410
        %v1527 = vtanh.pop %v1413
        %v1528 = vtanh.pop %v1418
        %v1529 = vtanh.pop %v1421
        %v1530 = vtanh.pop %v1426
        %v1531 = vtanh.pop %v1429
        %v1532 = vtanh.pop %v1434
        %v1533 = vtanh.pop %v1437
        %v1534 = vtanh.pop %v1442
        %v1535 = vtanh.pop %v1445
        %v1536 = vtanh.pop %v1450
        %v1537 = vtanh.pop %v1453
        %v1538 = vtanh.pop %v1458
        %v1539 = vtanh.pop %v1461
        %v1540 = vtanh.pop %v1466
        %v1541 = vtanh.pop %v1469
        %v1542 = vtanh.pop %v1474
        %v1543 = vtanh.pop %v1477
        %v1544 = vpack.c.bf16 %v1481, %v1480
        %v1545 = vpack.c.bf16 %v1483, %v1482
        %v1546 = vpack.c.bf16 %v1485, %v1484
        %v1547 = vpack.c.bf16 %v1487, %v1486
        %v1548 = vpack.c.bf16 %v1489, %v1488
        %v1549 = vpack.c.bf16 %v1491, %v1490
        %v1550 = vpack.c.bf16 %v1493, %v1492
        %v1551 = vpack.c.bf16 %v1495, %v1494
        %v1552 = vpack.c.bf16 %v1497, %v1496
        %v1553 = vpack.c.bf16 %v1499, %v1498
        %v1554 = vpack.c.bf16 %v1501, %v1500
        %v1555 = vpack.c.bf16 %v1503, %v1502
        %v1556 = vpack.c.bf16 %v1505, %v1504
        %v1557 = vpack.c.bf16 %v1507, %v1506
        %v1558 = vpack.c.bf16 %v1509, %v1508
        %v1559 = vpack.c.bf16 %v1511, %v1510
        %v1560 = vpack.c.bf16 %v1513, %v1512
        %v1561 = vpack.c.bf16 %v1515, %v1514
        %v1562 = vpack.c.bf16 %v1517, %v1516
        %v1563 = vpack.c.bf16 %v1519, %v1518
        %v1564 = vpack.c.bf16 %v1521, %v1520
        %v1565 = vpack.c.bf16 %v1523, %v1522
        %v1566 = vpack.c.bf16 %v1525, %v1524
        %v1567 = vpack.c.bf16 %v1527, %v1526
        %v1568 = vpack.c.bf16 %v1529, %v1528
        %v1569 = vpack.c.bf16 %v1531, %v1530
        %v1570 = vpack.c.bf16 %v1533, %v1532
        %v1571 = vpack.c.bf16 %v1535, %v1534
        %v1572 = vpack.c.bf16 %v1537, %v1536
        %v1573 = vpack.c.bf16 %v1539, %v1538
        %v1574 = vpack.c.bf16 %v1541, %v1540
        %v1575 = vpack.c.bf16 %v1543, %v1542
        %v1576 = vld [vmem:[%s5] sm:$0xf]
        %v1577 = vld [vmem:[%s5 + $0x4] sm:$0xf]
        %v1578 = vld [vmem:[%s5 + $0x8] sm:$0xf]
        %v1579 = vld [vmem:[%s5 + $0xc] sm:$0xf]
        %v1580 = vld [vmem:[%s5 + $0x10] sm:$0xf]
        %v1581 = vld [vmem:[%s5 + $0x14] sm:$0xf]
        %v1582 = vld [vmem:[%s5 + $0x18] sm:$0xf]
        %v1583 = vld [vmem:[%s5 + $0x1c] sm:$0xf]
        %v1584 = vld [vmem:[%s6] sm:$0x1]
        %v1586 = vlaneseq
        %v1587 = vshrl.u32 %v1586, 7
        %v1588 = vsub.s32 0, %v1587
        %v1589 = vrot.slane %v1584, %v1588
        %v1599 = vunpack.c.l.b16 %v1576
        %v1600 = vunpack.c.l.b16 %v1577
        %v1601 = vunpack.c.l.b16 %v1578
        %v1602 = vunpack.c.l.b16 %v1579
        %v1603 = vunpack.c.l.b16 %v1580
        %v1604 = vunpack.c.l.b16 %v1581
        %v1605 = vunpack.c.l.b16 %v1582
        %v1606 = vunpack.c.l.b16 %v1583
        %v1607 = vpack.c.b16 %v1600, %v1599
        %v1608 = vpack.c.b16 %v1602, %v1601
        %v1609 = vpack.c.b16 %v1604, %v1603
        %v1610 = vpack.c.b16 %v1606, %v1605
        %v1616 = vsel %vm1094, %v1544, 0
        %v1619 = vsel %vm1094, %v1545, 0
        %v1622 = vsel %vm1094, %v1546, 0
        %v1625 = vsel %vm1094, %v1547, 0
        %v1628 = vsel %vm1094, %v1548, 0
        %v1631 = vsel %vm1094, %v1549, 0
        %v1634 = vsel %vm1094, %v1550, 0
        %v1637 = vsel %vm1094, %v1551, 0
        %v1640 = vsel %vm1094, %v1552, 0
        %v1643 = vsel %vm1094, %v1553, 0
        %v1646 = vsel %vm1094, %v1554, 0
        %v1649 = vsel %vm1094, %v1555, 0
        %v1652 = vsel %vm1094, %v1556, 0
        %v1655 = vsel %vm1094, %v1557, 0
        %v1658 = vsel %vm1094, %v1558, 0
        %v1661 = vsel %vm1094, %v1559, 0
        %v1664 = vsel %vm1094, %v1560, 0
        %v1667 = vsel %vm1094, %v1561, 0
        %v1670 = vsel %vm1094, %v1562, 0
        %v1673 = vsel %vm1094, %v1563, 0
        %v1676 = vsel %vm1094, %v1564, 0
        %v1679 = vsel %vm1094, %v1565, 0
        %v1682 = vsel %vm1094, %v1566, 0
        %v1685 = vsel %vm1094, %v1567, 0
        %v1688 = vsel %vm1094, %v1568, 0
        %v1691 = vsel %vm1094, %v1569, 0
        %v1694 = vsel %vm1094, %v1570, 0
        %v1697 = vsel %vm1094, %v1571, 0
        %v1700 = vsel %vm1094, %v1572, 0
        %v1703 = vsel %vm1094, %v1573, 0
        %v1706 = vsel %vm1094, %v1574, 0
        %v1709 = vsel %vm1094, %v1575, 0
        %1711 = vmatprep.subr.bf16.mxu0 0
        %1712 = vmatpush1.bf16.msra.mxu0 %v1607
        %1713 = vmatprep.subr.bf16.mxu0 0
        %1714 = vmatpush1.bf16.msra.mxu0 %v1608
        %1715 = vmatprep.subr.bf16.mxu0 0
        %1716 = vmatpush1.bf16.msra.mxu0 %v1609
        %1717 = vmatprep.subr.bf16.mxu0 0
        %1718 = vmatpush1.bf16.msra.mxu0 %v1610
        %1719 = vmatprep.subr.bf16.mxu0 0
        %1720 = vmatpush1.bf16.msra.mxu0 0
        %1721 = vmatprep.subr.bf16.mxu0 0
        %1722 = vmatpush1.bf16.msra.mxu0 0
        %1723 = vmatprep.subr.bf16.mxu0 0
        %1724 = vmatpush1.bf16.msra.mxu0 0
        %1725 = vmatprep.subr.bf16.mxu0 0
        %1726 = vmatpush1.bf16.msra.mxu0 0
        %1727 = vmatprep.subr.bf16.mxu0 0
        %1728 = vmatpush1.bf16.msra.mxu0 0
        %1729 = vmatprep.subr.bf16.mxu0 0
        %1730 = vmatpush1.bf16.msra.mxu0 0
        %1731 = vmatprep.subr.bf16.mxu0 0
        %1732 = vmatpush1.bf16.msra.mxu0 0
        %1733 = vmatprep.subr.bf16.mxu0 0
        %1734 = vmatpush1.bf16.msra.mxu0 0
        %1735 = vmatprep.subr.bf16.mxu0 0
        %1736 = vmatpush1.bf16.msra.mxu0 0
        %1737 = vmatprep.subr.bf16.mxu0 0
        %1738 = vmatpush1.bf16.msra.mxu0 0
        %1739 = vmatprep.subr.bf16.mxu0 0
        %1740 = vmatpush1.bf16.msra.mxu0 0
        %1741 = vmatprep.subr.bf16.mxu0 0
        %1742 = vmatpush1.bf16.msra.mxu0 0
        %1743 = vmatprep.mubr.bf16.mxu0 0
        %1744 = vmatmul.mubr.bf16.gmra.mrb[0].mxu0 %v1616
        %v1745 = vpop.f32.mrb[0].mxu0
        %v1746 = vadd.f32 %v1589, %v1745
        %v1747 = vpop.f32.mrb[0].mxu0
        %v1748 = vpop.f32.mrb[0].mxu0
        %v1749 = vadd.f32 %v1589, %v1748
        %v1750 = vpop.f32.mrb[0].mxu0
        %1751 = vmatprep.mubr.bf16.mxu0 0
        %1752 = vmatmul.mubr.bf16.gmra.mrb[0].mxu0 %v1619
        %v1753 = vpop.f32.mrb[0].mxu0
        %v1754 = vadd.f32 %v1589, %v1753
        %v1755 = vpop.f32.mrb[0].mxu0
        %v1756 = vpop.f32.mrb[0].mxu0
        %v1757 = vadd.f32 %v1589, %v1756
        %v1758 = vpop.f32.mrb[0].mxu0
        %1759 = vmatprep.mubr.bf16.mxu0 0
        %1760 = vmatmul.mubr.bf16.gmra.mrb[0].mxu0 %v1622
        %v1761 = vpop.f32.mrb[0].mxu0
        %v1762 = vadd.f32 %v1589, %v1761
        %v1763 = vpop.f32.mrb[0].mxu0
        %v1764 = vpop.f32.mrb[0].mxu0
        %v1765 = vadd.f32 %v1589, %v1764
        %v1766 = vpop.f32.mrb[0].mxu0
        %1767 = vmatprep.mubr.bf16.mxu0 0
        %1768 = vmatmul.mubr.bf16.gmra.mrb[0].mxu0 %v1625
        %v1769 = vpop.f32.mrb[0].mxu0
        %v1770 = vadd.f32 %v1589, %v1769
        %v1771 = vpop.f32.mrb[0].mxu0
        %v1772 = vpop.f32.mrb[0].mxu0
        %v1773 = vadd.f32 %v1589, %v1772
        %v1774 = vpop.f32.mrb[0].mxu0
        %1775 = vmatprep.mubr.bf16.mxu0 0
        %1776 = vmatmul.mubr.bf16.gmra.mrb[0].mxu0 %v1628
        %v1777 = vpop.f32.mrb[0].mxu0
        %v1778 = vadd.f32 %v1589, %v1777
        %v1779 = vpop.f32.mrb[0].mxu0
        %v1780 = vpop.f32.mrb[0].mxu0
        %v1781 = vadd.f32 %v1589, %v1780
        %v1782 = vpop.f32.mrb[0].mxu0
        %1783 = vmatprep.mubr.bf16.mxu0 0
        %1784 = vmatmul.mubr.bf16.gmra.mrb[0].mxu0 %v1631
        %v1785 = vpop.f32.mrb[0].mxu0
        %v1786 = vadd.f32 %v1589, %v1785
        %v1787 = vpop.f32.mrb[0].mxu0
        %v1788 = vpop.f32.mrb[0].mxu0
        %v1789 = vadd.f32 %v1589, %v1788
        %v1790 = vpop.f32.mrb[0].mxu0
        %1791 = vmatprep.mubr.bf16.mxu0 0
        %1792 = vmatmul.mubr.bf16.gmra.mrb[0].mxu0 %v1634
        %v1793 = vpop.f32.mrb[0].mxu0
        %v1794 = vadd.f32 %v1589, %v1793
        %v1795 = vpop.f32.mrb[0].mxu0
        %v1796 = vpop.f32.mrb[0].mxu0
        %v1797 = vadd.f32 %v1589, %v1796
        %v1798 = vpop.f32.mrb[0].mxu0
        %1799 = vmatprep.mubr.bf16.mxu0 0
        %1800 = vmatmul.mubr.bf16.gmra.mrb[0].mxu0 %v1637
        %v1801 = vpop.f32.mrb[0].mxu0
        %v1802 = vadd.f32 %v1589, %v1801
        %v1803 = vpop.f32.mrb[0].mxu0
        %v1804 = vpop.f32.mrb[0].mxu0
        %v1805 = vadd.f32 %v1589, %v1804
        %v1806 = vpop.f32.mrb[0].mxu0
        %1807 = vmatprep.mubr.bf16.mxu0 0
        %1808 = vmatmul.mubr.bf16.gmra.mrb[0].mxu0 %v1640
        %v1809 = vpop.f32.mrb[0].mxu0
        %v1810 = vadd.f32 %v1589, %v1809
        %v1811 = vpop.f32.mrb[0].mxu0
        %v1812 = vpop.f32.mrb[0].mxu0
        %v1813 = vadd.f32 %v1589, %v1812
        %v1814 = vpop.f32.mrb[0].mxu0
        %1815 = vmatprep.mubr.bf16.mxu0 0
        %1816 = vmatmul.mubr.bf16.gmra.mrb[0].mxu0 %v1643
        %v1817 = vpop.f32.mrb[0].mxu0
        %v1818 = vadd.f32 %v1589, %v1817
        %v1819 = vpop.f32.mrb[0].mxu0
        %v1820 = vpop.f32.mrb[0].mxu0
        %v1821 = vadd.f32 %v1589, %v1820
        %v1822 = vpop.f32.mrb[0].mxu0
        %1823 = vmatprep.mubr.bf16.mxu0 0
        %1824 = vmatmul.mubr.bf16.gmra.mrb[0].mxu0 %v1646
        %v1825 = vpop.f32.mrb[0].mxu0
        %v1826 = vadd.f32 %v1589, %v1825
        %v1827 = vpop.f32.mrb[0].mxu0
        %v1828 = vpop.f32.mrb[0].mxu0
        %v1829 = vadd.f32 %v1589, %v1828
        %v1830 = vpop.f32.mrb[0].mxu0
        %1831 = vmatprep.mubr.bf16.mxu0 0
        %1832 = vmatmul.mubr.bf16.gmra.mrb[0].mxu0 %v1649
        %v1833 = vpop.f32.mrb[0].mxu0
        %v1834 = vadd.f32 %v1589, %v1833
        %v1835 = vpop.f32.mrb[0].mxu0
        %v1836 = vpop.f32.mrb[0].mxu0
        %v1837 = vadd.f32 %v1589, %v1836
        %v1838 = vpop.f32.mrb[0].mxu0
        %1839 = vmatprep.mubr.bf16.mxu0 0
        %1840 = vmatmul.mubr.bf16.gmra.mrb[0].mxu0 %v1652
        %v1841 = vpop.f32.mrb[0].mxu0
        %v1842 = vadd.f32 %v1589, %v1841
        %v1843 = vpop.f32.mrb[0].mxu0
        %v1844 = vpop.f32.mrb[0].mxu0
        %v1845 = vadd.f32 %v1589, %v1844
        %v1846 = vpop.f32.mrb[0].mxu0
        %1847 = vmatprep.mubr.bf16.mxu0 0
        %1848 = vmatmul.mubr.bf16.gmra.mrb[0].mxu0 %v1655
        %v1849 = vpop.f32.mrb[0].mxu0
        %v1850 = vadd.f32 %v1589, %v1849
        %v1851 = vpop.f32.mrb[0].mxu0
        %v1852 = vpop.f32.mrb[0].mxu0
        %v1853 = vadd.f32 %v1589, %v1852
        %v1854 = vpop.f32.mrb[0].mxu0
        %1855 = vmatprep.mubr.bf16.mxu0 0
        %1856 = vmatmul.mubr.bf16.gmra.mrb[0].mxu0 %v1658
        %v1857 = vpop.f32.mrb[0].mxu0
        %v1858 = vadd.f32 %v1589, %v1857
        %v1859 = vpop.f32.mrb[0].mxu0
        %v1860 = vpop.f32.mrb[0].mxu0
        %v1861 = vadd.f32 %v1589, %v1860
        %v1862 = vpop.f32.mrb[0].mxu0
        %1863 = vmatprep.mubr.bf16.mxu0 0
        %1864 = vmatmul.mubr.bf16.gmra.mrb[0].mxu0 %v1661
        %v1865 = vpop.f32.mrb[0].mxu0
        %v1866 = vadd.f32 %v1589, %v1865
        %v1867 = vpop.f32.mrb[0].mxu0
        %v1868 = vpop.f32.mrb[0].mxu0
        %v1869 = vadd.f32 %v1589, %v1868
        %v1870 = vpop.f32.mrb[0].mxu0
        %1871 = vmatprep.mubr.bf16.mxu0 0
        %1872 = vmatmul.mubr.bf16.gmra.mrb[0].mxu0 %v1664
        %v1873 = vpop.f32.mrb[0].mxu0
        %v1874 = vadd.f32 %v1589, %v1873
        %v1875 = vpop.f32.mrb[0].mxu0
        %v1876 = vpop.f32.mrb[0].mxu0
        %v1877 = vadd.f32 %v1589, %v1876
        %v1878 = vpop.f32.mrb[0].mxu0
        %1879 = vmatprep.mubr.bf16.mxu0 0
        %1880 = vmatmul.mubr.bf16.gmra.mrb[0].mxu0 %v1667
        %v1881 = vpop.f32.mrb[0].mxu0
        %v1882 = vadd.f32 %v1589, %v1881
        %v1883 = vpop.f32.mrb[0].mxu0
        %v1884 = vpop.f32.mrb[0].mxu0
        %v1885 = vadd.f32 %v1589, %v1884
        %v1886 = vpop.f32.mrb[0].mxu0
        %1887 = vmatprep.mubr.bf16.mxu0 0
        %1888 = vmatmul.mubr.bf16.gmra.mrb[0].mxu0 %v1670
        %v1889 = vpop.f32.mrb[0].mxu0
        %v1890 = vadd.f32 %v1589, %v1889
        %v1891 = vpop.f32.mrb[0].mxu0
        %v1892 = vpop.f32.mrb[0].mxu0
        %v1893 = vadd.f32 %v1589, %v1892
        %v1894 = vpop.f32.mrb[0].mxu0
        %1895 = vmatprep.mubr.bf16.mxu0 0
        %1896 = vmatmul.mubr.bf16.gmra.mrb[0].mxu0 %v1673
        %v1897 = vpop.f32.mrb[0].mxu0
        %v1898 = vadd.f32 %v1589, %v1897
        %v1899 = vpop.f32.mrb[0].mxu0
        %v1900 = vpop.f32.mrb[0].mxu0
        %v1901 = vadd.f32 %v1589, %v1900
        %v1902 = vpop.f32.mrb[0].mxu0
        %1903 = vmatprep.mubr.bf16.mxu0 0
        %1904 = vmatmul.mubr.bf16.gmra.mrb[0].mxu0 %v1676
        %v1905 = vpop.f32.mrb[0].mxu0
        %v1906 = vadd.f32 %v1589, %v1905
        %v1907 = vpop.f32.mrb[0].mxu0
        %v1908 = vpop.f32.mrb[0].mxu0
        %v1909 = vadd.f32 %v1589, %v1908
        %v1910 = vpop.f32.mrb[0].mxu0
        %1911 = vmatprep.mubr.bf16.mxu0 0
        %1912 = vmatmul.mubr.bf16.gmra.mrb[0].mxu0 %v1679
        %v1913 = vpop.f32.mrb[0].mxu0
        %v1914 = vadd.f32 %v1589, %v1913
        %v1915 = vpop.f32.mrb[0].mxu0
        %v1916 = vpop.f32.mrb[0].mxu0
        %v1917 = vadd.f32 %v1589, %v1916
        %v1918 = vpop.f32.mrb[0].mxu0
        %1919 = vmatprep.mubr.bf16.mxu0 0
        %1920 = vmatmul.mubr.bf16.gmra.mrb[0].mxu0 %v1682
        %v1921 = vpop.f32.mrb[0].mxu0
        %v1922 = vadd.f32 %v1589, %v1921
        %v1923 = vpop.f32.mrb[0].mxu0
        %v1924 = vpop.f32.mrb[0].mxu0
        %v1925 = vadd.f32 %v1589, %v1924
        %v1926 = vpop.f32.mrb[0].mxu0
        %1927 = vmatprep.mubr.bf16.mxu0 0
        %1928 = vmatmul.mubr.bf16.gmra.mrb[0].mxu0 %v1685
        %v1929 = vpop.f32.mrb[0].mxu0
        %v1930 = vadd.f32 %v1589, %v1929
        %v1931 = vpop.f32.mrb[0].mxu0
        %v1932 = vpop.f32.mrb[0].mxu0
        %v1933 = vadd.f32 %v1589, %v1932
        %v1934 = vpop.f32.mrb[0].mxu0
        %1935 = vmatprep.mubr.bf16.mxu0 0
        %1936 = vmatmul.mubr.bf16.gmra.mrb[0].mxu0 %v1688
        %v1937 = vpop.f32.mrb[0].mxu0
        %v1938 = vadd.f32 %v1589, %v1937
        %v1939 = vpop.f32.mrb[0].mxu0
        %v1940 = vpop.f32.mrb[0].mxu0
        %v1941 = vadd.f32 %v1589, %v1940
        %v1942 = vpop.f32.mrb[0].mxu0
        %1943 = vmatprep.mubr.bf16.mxu0 0
        %1944 = vmatmul.mubr.bf16.gmra.mrb[0].mxu0 %v1691
        %v1945 = vpop.f32.mrb[0].mxu0
        %v1946 = vadd.f32 %v1589, %v1945
        %v1947 = vpop.f32.mrb[0].mxu0
        %v1948 = vpop.f32.mrb[0].mxu0
        %v1949 = vadd.f32 %v1589, %v1948
        %v1950 = vpop.f32.mrb[0].mxu0
        %1951 = vmatprep.mubr.bf16.mxu0 0
        %1952 = vmatmul.mubr.bf16.gmra.mrb[0].mxu0 %v1694
        %v1953 = vpop.f32.mrb[0].mxu0
        %v1954 = vadd.f32 %v1589, %v1953
        %v1955 = vpop.f32.mrb[0].mxu0
        %v1956 = vpop.f32.mrb[0].mxu0
        %v1957 = vadd.f32 %v1589, %v1956
        %v1958 = vpop.f32.mrb[0].mxu0
        %1959 = vmatprep.mubr.bf16.mxu0 0
        %1960 = vmatmul.mubr.bf16.gmra.mrb[0].mxu0 %v1697
        %v1961 = vpop.f32.mrb[0].mxu0
        %v1962 = vadd.f32 %v1589, %v1961
        %v1963 = vpop.f32.mrb[0].mxu0
        %v1964 = vpop.f32.mrb[0].mxu0
        %v1965 = vadd.f32 %v1589, %v1964
        %v1966 = vpop.f32.mrb[0].mxu0
        %1967 = vmatprep.mubr.bf16.mxu0 0
        %1968 = vmatmul.mubr.bf16.gmra.mrb[0].mxu0 %v1700
        %v1969 = vpop.f32.mrb[0].mxu0
        %v1970 = vadd.f32 %v1589, %v1969
        %v1971 = vpop.f32.mrb[0].mxu0
        %v1972 = vpop.f32.mrb[0].mxu0
        %v1973 = vadd.f32 %v1589, %v1972
        %v1974 = vpop.f32.mrb[0].mxu0
        %1975 = vmatprep.mubr.bf16.mxu0 0
        %1976 = vmatmul.mubr.bf16.gmra.mrb[0].mxu0 %v1703
        %v1977 = vpop.f32.mrb[0].mxu0
        %v1978 = vadd.f32 %v1589, %v1977
        %v1979 = vpop.f32.mrb[0].mxu0
        %v1980 = vpop.f32.mrb[0].mxu0
        %v1981 = vadd.f32 %v1589, %v1980
        %v1982 = vpop.f32.mrb[0].mxu0
        %1983 = vmatprep.mubr.bf16.mxu0 0
        %1984 = vmatmul.mubr.bf16.gmra.mrb[0].mxu0 %v1706
        %v1985 = vpop.f32.mrb[0].mxu0
        %v1986 = vadd.f32 %v1589, %v1985
        %v1987 = vpop.f32.mrb[0].mxu0
        %v1988 = vpop.f32.mrb[0].mxu0
        %v1989 = vadd.f32 %v1589, %v1988
        %v1990 = vpop.f32.mrb[0].mxu0
        %1991 = vmatprep.mubr.bf16.mxu0 0
        %1992 = vmatmul.mubr.bf16.gmra.mrb[0].mxu0 %v1709
        %v1993 = vpop.f32.mrb[0].mxu0
        %v1994 = vadd.f32 %v1589, %v1993
        %v1995 = vpop.f32.mrb[0].mxu0
        %v1996 = vpop.f32.mrb[0].mxu0
        %v1997 = vadd.f32 %v1589, %v1996
        %v1998 = vpop.f32.mrb[0].mxu0
        %1999 = vdwg.mxu0
        %vm2000 = vcmp.gt.f32.partialorder %v1746, 20.0
        %vm2001 = vcmp.gt.f32.partialorder %v1749, 20.0
        %vm2002 = vcmp.gt.f32.partialorder %v1754, 20.0
        %vm2003 = vcmp.gt.f32.partialorder %v1757, 20.0
        %vm2004 = vcmp.gt.f32.partialorder %v1762, 20.0
        %vm2005 = vcmp.gt.f32.partialorder %v1765, 20.0
        %vm2006 = vcmp.gt.f32.partialorder %v1770, 20.0
        %vm2007 = vcmp.gt.f32.partialorder %v1773, 20.0
        %vm2008 = vcmp.gt.f32.partialorder %v1778, 20.0
        %vm2009 = vcmp.gt.f32.partialorder %v1781, 20.0
        %vm2010 = vcmp.gt.f32.partialorder %v1786, 20.0
        %vm2011 = vcmp.gt.f32.partialorder %v1789, 20.0
        %vm2012 = vcmp.gt.f32.partialorder %v1794, 20.0
        %vm2013 = vcmp.gt.f32.partialorder %v1797, 20.0
        %vm2014 = vcmp.gt.f32.partialorder %v1802, 20.0
        %vm2015 = vcmp.gt.f32.partialorder %v1805, 20.0
        %vm2016 = vcmp.gt.f32.partialorder %v1810, 20.0
        %vm2017 = vcmp.gt.f32.partialorder %v1813, 20.0
        %vm2018 = vcmp.gt.f32.partialorder %v1818, 20.0
        %vm2019 = vcmp.gt.f32.partialorder %v1821, 20.0
        %vm2020 = vcmp.gt.f32.partialorder %v1826, 20.0
        %vm2021 = vcmp.gt.f32.partialorder %v1829, 20.0
        %vm2022 = vcmp.gt.f32.partialorder %v1834, 20.0
        %vm2023 = vcmp.gt.f32.partialorder %v1837, 20.0
        %vm2024 = vcmp.gt.f32.partialorder %v1842, 20.0
        %vm2025 = vcmp.gt.f32.partialorder %v1845, 20.0
        %vm2026 = vcmp.gt.f32.partialorder %v1850, 20.0
        %vm2027 = vcmp.gt.f32.partialorder %v1853, 20.0
        %vm2028 = vcmp.gt.f32.partialorder %v1858, 20.0
        %vm2029 = vcmp.gt.f32.partialorder %v1861, 20.0
        %vm2030 = vcmp.gt.f32.partialorder %v1866, 20.0
        %vm2031 = vcmp.gt.f32.partialorder %v1869, 20.0
        %vm2032 = vcmp.gt.f32.partialorder %v1874, 20.0
        %vm2033 = vcmp.gt.f32.partialorder %v1877, 20.0
        %vm2034 = vcmp.gt.f32.partialorder %v1882, 20.0
        %vm2035 = vcmp.gt.f32.partialorder %v1885, 20.0
        %vm2036 = vcmp.gt.f32.partialorder %v1890, 20.0
        %vm2037 = vcmp.gt.f32.partialorder %v1893, 20.0
        %vm2038 = vcmp.gt.f32.partialorder %v1898, 20.0
        %vm2039 = vcmp.gt.f32.partialorder %v1901, 20.0
        %vm2040 = vcmp.gt.f32.partialorder %v1906, 20.0
        %vm2041 = vcmp.gt.f32.partialorder %v1909, 20.0
        %vm2042 = vcmp.gt.f32.partialorder %v1914, 20.0
        %vm2043 = vcmp.gt.f32.partialorder %v1917, 20.0
        %vm2044 = vcmp.gt.f32.partialorder %v1922, 20.0
        %vm2045 = vcmp.gt.f32.partialorder %v1925, 20.0
        %vm2046 = vcmp.gt.f32.partialorder %v1930, 20.0
        %vm2047 = vcmp.gt.f32.partialorder %v1933, 20.0
        %vm2048 = vcmp.gt.f32.partialorder %v1938, 20.0
        %vm2049 = vcmp.gt.f32.partialorder %v1941, 20.0
        %vm2050 = vcmp.gt.f32.partialorder %v1946, 20.0
        %vm2051 = vcmp.gt.f32.partialorder %v1949, 20.0
        %vm2052 = vcmp.gt.f32.partialorder %v1954, 20.0
        %vm2053 = vcmp.gt.f32.partialorder %v1957, 20.0
        %vm2054 = vcmp.gt.f32.partialorder %v1962, 20.0
        %vm2055 = vcmp.gt.f32.partialorder %v1965, 20.0
        %vm2056 = vcmp.gt.f32.partialorder %v1970, 20.0
        %vm2057 = vcmp.gt.f32.partialorder %v1973, 20.0
        %vm2058 = vcmp.gt.f32.partialorder %v1978, 20.0
        %vm2059 = vcmp.gt.f32.partialorder %v1981, 20.0
        %vm2060 = vcmp.gt.f32.partialorder %v1986, 20.0
        %vm2061 = vcmp.gt.f32.partialorder %v1989, 20.0
        %vm2062 = vcmp.gt.f32.partialorder %v1994, 20.0
        %vm2063 = vcmp.gt.f32.partialorder %v1997, 20.0
        %v2064 = vmin.f32 %v1746, 20.0
        %v2065 = vmin.f32 %v1749, 20.0
        %v2066 = vmin.f32 %v1754, 20.0
        %v2067 = vmin.f32 %v1757, 20.0
        %v2068 = vmin.f32 %v1762, 20.0
        %v2069 = vmin.f32 %v1765, 20.0
        %v2070 = vmin.f32 %v1770, 20.0
        %v2071 = vmin.f32 %v1773, 20.0
        %v2072 = vmin.f32 %v1778, 20.0
        %v2073 = vmin.f32 %v1781, 20.0
        %v2074 = vmin.f32 %v1786, 20.0
        %v2075 = vmin.f32 %v1789, 20.0
        %v2076 = vmin.f32 %v1794, 20.0
        %v2077 = vmin.f32 %v1797, 20.0
        %v2078 = vmin.f32 %v1802, 20.0
        %v2079 = vmin.f32 %v1805, 20.0
        %v2080 = vmin.f32 %v1810, 20.0
        %v2081 = vmin.f32 %v1813, 20.0
        %v2082 = vmin.f32 %v1818, 20.0
        %v2083 = vmin.f32 %v1821, 20.0
        %v2084 = vmin.f32 %v1826, 20.0
        %v2085 = vmin.f32 %v1829, 20.0
        %v2086 = vmin.f32 %v1834, 20.0
        %v2087 = vmin.f32 %v1837, 20.0
        %v2088 = vmin.f32 %v1842, 20.0
        %v2089 = vmin.f32 %v1845, 20.0
        %v2090 = vmin.f32 %v1850, 20.0
        %v2091 = vmin.f32 %v1853, 20.0
        %v2092 = vmin.f32 %v1858, 20.0
        %v2093 = vmin.f32 %v1861, 20.0
        %v2094 = vmin.f32 %v1866, 20.0
        %v2095 = vmin.f32 %v1869, 20.0
        %v2096 = vmin.f32 %v1874, 20.0
        %v2097 = vmin.f32 %v1877, 20.0
        %v2098 = vmin.f32 %v1882, 20.0
        %v2099 = vmin.f32 %v1885, 20.0
        %v2100 = vmin.f32 %v1890, 20.0
        %v2101 = vmin.f32 %v1893, 20.0
        %v2102 = vmin.f32 %v1898, 20.0
        %v2103 = vmin.f32 %v1901, 20.0
        %v2104 = vmin.f32 %v1906, 20.0
        %v2105 = vmin.f32 %v1909, 20.0
        %v2106 = vmin.f32 %v1914, 20.0
        %v2107 = vmin.f32 %v1917, 20.0
        %v2108 = vmin.f32 %v1922, 20.0
        %v2109 = vmin.f32 %v1925, 20.0
        %v2110 = vmin.f32 %v1930, 20.0
        %v2111 = vmin.f32 %v1933, 20.0
        %v2112 = vmin.f32 %v1938, 20.0
        %v2113 = vmin.f32 %v1941, 20.0
        %v2114 = vmin.f32 %v1946, 20.0
        %v2115 = vmin.f32 %v1949, 20.0
        %v2116 = vmin.f32 %v1954, 20.0
        %v2117 = vmin.f32 %v1957, 20.0
        %v2118 = vmin.f32 %v1962, 20.0
        %v2119 = vmin.f32 %v1965, 20.0
        %v2120 = vmin.f32 %v1970, 20.0
        %v2121 = vmin.f32 %v1973, 20.0
        %v2122 = vmin.f32 %v1978, 20.0
        %v2123 = vmin.f32 %v1981, 20.0
        %v2124 = vmin.f32 %v1986, 20.0
        %v2125 = vmin.f32 %v1989, 20.0
        %v2126 = vmin.f32 %v1994, 20.0
        %v2127 = vmin.f32 %v1997, 20.0
        %v2128 = vmul.f32 %v2064, 1.442695
        %v2129 = vpow.pop %v2128
        %v2130 = vmul.f32 %v2065, 1.442695
        %v2131 = vpow.pop %v2130
        %v2132 = vmul.f32 %v2066, 1.442695
        %v2133 = vpow.pop %v2132
        %v2134 = vmul.f32 %v2067, 1.442695
        %v2135 = vpow.pop %v2134
        %v2136 = vmul.f32 %v2068, 1.442695
        %v2137 = vpow.pop %v2136
        %v2138 = vmul.f32 %v2069, 1.442695
        %v2139 = vpow.pop %v2138
        %v2140 = vmul.f32 %v2070, 1.442695
        %v2141 = vpow.pop %v2140
        %v2142 = vmul.f32 %v2071, 1.442695
        %v2143 = vpow.pop %v2142
        %v2144 = vmul.f32 %v2072, 1.442695
        %v2145 = vpow.pop %v2144
        %v2146 = vmul.f32 %v2073, 1.442695
        %v2147 = vpow.pop %v2146
        %v2148 = vmul.f32 %v2074, 1.442695
        %v2149 = vpow.pop %v2148
        %v2150 = vmul.f32 %v2075, 1.442695
        %v2151 = vpow.pop %v2150
        %v2152 = vmul.f32 %v2076, 1.442695
        %v2153 = vpow.pop %v2152
        %v2154 = vmul.f32 %v2077, 1.442695
        %v2155 = vpow.pop %v2154
        %v2156 = vmul.f32 %v2078, 1.442695
        %v2157 = vpow.pop %v2156
        %v2158 = vmul.f32 %v2079, 1.442695
        %v2159 = vpow.pop %v2158
        %v2160 = vmul.f32 %v2080, 1.442695
        %v2161 = vpow.pop %v2160
        %v2162 = vmul.f32 %v2081, 1.442695
        %v2163 = vpow.pop %v2162
        %v2164 = vmul.f32 %v2082, 1.442695
        %v2165 = vpow.pop %v2164
        %v2166 = vmul.f32 %v2083, 1.442695
        %v2167 = vpow.pop %v2166
        %v2168 = vmul.f32 %v2084, 1.442695
        %v2169 = vpow.pop %v2168
        %v2170 = vmul.f32 %v2085, 1.442695
        %v2171 = vpow.pop %v2170
        %v2172 = vmul.f32 %v2086, 1.442695
        %v2173 = vpow.pop %v2172
        %v2174 = vmul.f32 %v2087, 1.442695
        %v2175 = vpow.pop %v2174
        %v2176 = vmul.f32 %v2088, 1.442695
        %v2177 = vpow.pop %v2176
        %v2178 = vmul.f32 %v2089, 1.442695
        %v2179 = vpow.pop %v2178
        %v2180 = vmul.f32 %v2090, 1.442695
        %v2181 = vpow.pop %v2180
        %v2182 = vmul.f32 %v2091, 1.442695
        %v2183 = vpow.pop %v2182
        %v2184 = vmul.f32 %v2092, 1.442695
        %v2185 = vpow.pop %v2184
        %v2186 = vmul.f32 %v2093, 1.442695
        %v2187 = vpow.pop %v2186
        %v2188 = vmul.f32 %v2094, 1.442695
        %v2189 = vpow.pop %v2188
        %v2190 = vmul.f32 %v2095, 1.442695
        %v2191 = vpow.pop %v2190
        %v2192 = vmul.f32 %v2096, 1.442695
        %v2193 = vpow.pop %v2192
        %v2194 = vmul.f32 %v2097, 1.442695
        %v2195 = vpow.pop %v2194
        %v2196 = vmul.f32 %v2098, 1.442695
        %v2197 = vpow.pop %v2196
        %v2198 = vmul.f32 %v2099, 1.442695
        %v2199 = vpow.pop %v2198
        %v2200 = vmul.f32 %v2100, 1.442695
        %v2201 = vpow.pop %v2200
        %v2202 = vmul.f32 %v2101, 1.442695
        %v2203 = vpow.pop %v2202
        %v2204 = vmul.f32 %v2102, 1.442695
        %v2205 = vpow.pop %v2204
        %v2206 = vmul.f32 %v2103, 1.442695
        %v2207 = vpow.pop %v2206
        %v2208 = vmul.f32 %v2104, 1.442695
        %v2209 = vpow.pop %v2208
        %v2210 = vmul.f32 %v2105, 1.442695
        %v2211 = vpow.pop %v2210
        %v2212 = vmul.f32 %v2106, 1.442695
        %v2213 = vpow.pop %v2212
        %v2214 = vmul.f32 %v2107, 1.442695
        %v2215 = vpow.pop %v2214
        %v2216 = vmul.f32 %v2108, 1.442695
        %v2217 = vpow.pop %v2216
        %v2218 = vmul.f32 %v2109, 1.442695
        %v2219 = vpow.pop %v2218
        %v2220 = vmul.f32 %v2110, 1.442695
        %v2221 = vpow.pop %v2220
        %v2222 = vmul.f32 %v2111, 1.442695
        %v2223 = vpow.pop %v2222
        %v2224 = vmul.f32 %v2112, 1.442695
        %v2225 = vpow.pop %v2224
        %v2226 = vmul.f32 %v2113, 1.442695
        %v2227 = vpow.pop %v2226
        %v2228 = vmul.f32 %v2114, 1.442695
        %v2229 = vpow.pop %v2228
        %v2230 = vmul.f32 %v2115, 1.442695
        %v2231 = vpow.pop %v2230
        %v2232 = vmul.f32 %v2116, 1.442695
        %v2233 = vpow.pop %v2232
        %v2234 = vmul.f32 %v2117, 1.442695
        %v2235 = vpow.pop %v2234
        %v2236 = vmul.f32 %v2118, 1.442695
        %v2237 = vpow.pop %v2236
        %v2238 = vmul.f32 %v2119, 1.442695
        %v2239 = vpow.pop %v2238
        %v2240 = vmul.f32 %v2120, 1.442695
        %v2241 = vpow.pop %v2240
        %v2242 = vmul.f32 %v2121, 1.442695
        %v2243 = vpow.pop %v2242
        %v2244 = vmul.f32 %v2122, 1.442695
        %v2245 = vpow.pop %v2244
        %v2246 = vmul.f32 %v2123, 1.442695
        %v2247 = vpow.pop %v2246
        %v2248 = vmul.f32 %v2124, 1.442695
        %v2249 = vpow.pop %v2248
        %v2250 = vmul.f32 %v2125, 1.442695
        %v2251 = vpow.pop %v2250
        %v2252 = vmul.f32 %v2126, 1.442695
        %v2253 = vpow.pop %v2252
        %v2254 = vmul.f32 %v2127, 1.442695
        %v2255 = vpow.pop %v2254
        %v2256 = vadd.f32 %v2129, 1.0
        %v2257 = vlog2.pop %v2256
        %v2258 = vmul.f32 %v2257, 0.6931472
        %v2259 = vmul.f32 -0.5, %v2129
        %v2260 = vadd.f32 %v2259, 1.0
        %v2261 = vmul.f32 %v2260, %v2129
        %v2262 = vand.u32 2147483647, %v2129
        %vm2263 = vcmp.lt.f32.partialorder %v2262, 0.0004427343
        %v2264 = vsel %vm2263, %v2261, %v2258
        %v2265 = vadd.f32 %v2131, 1.0
        %v2266 = vlog2.pop %v2265
        %v2267 = vmul.f32 %v2266, 0.6931472
        %v2268 = vmul.f32 -0.5, %v2131
        %v2269 = vadd.f32 %v2268, 1.0
        %v2270 = vmul.f32 %v2269, %v2131
        %v2271 = vand.u32 2147483647, %v2131
        %vm2272 = vcmp.lt.f32.partialorder %v2271, 0.0004427343
        %v2273 = vsel %vm2272, %v2270, %v2267
        %v2274 = vadd.f32 %v2133, 1.0
        %v2275 = vlog2.pop %v2274
        %v2276 = vmul.f32 %v2275, 0.6931472
        %v2277 = vmul.f32 -0.5, %v2133
        %v2278 = vadd.f32 %v2277, 1.0
        %v2279 = vmul.f32 %v2278, %v2133
        %v2280 = vand.u32 2147483647, %v2133
        %vm2281 = vcmp.lt.f32.partialorder %v2280, 0.0004427343
        %v2282 = vsel %vm2281, %v2279, %v2276
        %v2283 = vadd.f32 %v2135, 1.0
        %v2284 = vlog2.pop %v2283
        %v2285 = vmul.f32 %v2284, 0.6931472
        %v2286 = vmul.f32 -0.5, %v2135
        %v2287 = vadd.f32 %v2286, 1.0
        %v2288 = vmul.f32 %v2287, %v2135
        %v2289 = vand.u32 2147483647, %v2135
        %vm2290 = vcmp.lt.f32.partialorder %v2289, 0.0004427343
        %v2291 = vsel %vm2290, %v2288, %v2285
        %v2292 = vadd.f32 %v2137, 1.0
        %v2293 = vlog2.pop %v2292
        %v2294 = vmul.f32 %v2293, 0.6931472
        %v2295 = vmul.f32 -0.5, %v2137
        %v2296 = vadd.f32 %v2295, 1.0
        %v2297 = vmul.f32 %v2296, %v2137
        %v2298 = vand.u32 2147483647, %v2137
        %vm2299 = vcmp.lt.f32.partialorder %v2298, 0.0004427343
        %v2300 = vsel %vm2299, %v2297, %v2294
        %v2301 = vadd.f32 %v2139, 1.0
        %v2302 = vlog2.pop %v2301
        %v2303 = vmul.f32 %v2302, 0.6931472
        %v2304 = vmul.f32 -0.5, %v2139
        %v2305 = vadd.f32 %v2304, 1.0
        %v2306 = vmul.f32 %v2305, %v2139
        %v2307 = vand.u32 2147483647, %v2139
        %vm2308 = vcmp.lt.f32.partialorder %v2307, 0.0004427343
        %v2309 = vsel %vm2308, %v2306, %v2303
        %v2310 = vadd.f32 %v2141, 1.0
        %v2311 = vlog2.pop %v2310
        %v2312 = vmul.f32 %v2311, 0.6931472
        %v2313 = vmul.f32 -0.5, %v2141
        %v2314 = vadd.f32 %v2313, 1.0
        %v2315 = vmul.f32 %v2314, %v2141
        %v2316 = vand.u32 2147483647, %v2141
        %vm2317 = vcmp.lt.f32.partialorder %v2316, 0.0004427343
        %v2318 = vsel %vm2317, %v2315, %v2312
        %v2319 = vadd.f32 %v2143, 1.0
        %v2320 = vlog2.pop %v2319
        %v2321 = vmul.f32 %v2320, 0.6931472
        %v2322 = vmul.f32 -0.5, %v2143
        %v2323 = vadd.f32 %v2322, 1.0
        %v2324 = vmul.f32 %v2323, %v2143
        %v2325 = vand.u32 2147483647, %v2143
        %vm2326 = vcmp.lt.f32.partialorder %v2325, 0.0004427343
        %v2327 = vsel %vm2326, %v2324, %v2321
        %v2328 = vadd.f32 %v2145, 1.0
        %v2329 = vlog2.pop %v2328
        %v2330 = vmul.f32 %v2329, 0.6931472
        %v2331 = vmul.f32 -0.5, %v2145
        %v2332 = vadd.f32 %v2331, 1.0
        %v2333 = vmul.f32 %v2332, %v2145
        %v2334 = vand.u32 2147483647, %v2145
        %vm2335 = vcmp.lt.f32.partialorder %v2334, 0.0004427343
        %v2336 = vsel %vm2335, %v2333, %v2330
        %v2337 = vadd.f32 %v2147, 1.0
        %v2338 = vlog2.pop %v2337
        %v2339 = vmul.f32 %v2338, 0.6931472
        %v2340 = vmul.f32 -0.5, %v2147
        %v2341 = vadd.f32 %v2340, 1.0
        %v2342 = vmul.f32 %v2341, %v2147
        %v2343 = vand.u32 2147483647, %v2147
        %vm2344 = vcmp.lt.f32.partialorder %v2343, 0.0004427343
        %v2345 = vsel %vm2344, %v2342, %v2339
        %v2346 = vadd.f32 %v2149, 1.0
        %v2347 = vlog2.pop %v2346
        %v2348 = vmul.f32 %v2347, 0.6931472
        %v2349 = vmul.f32 -0.5, %v2149
        %v2350 = vadd.f32 %v2349, 1.0
        %v2351 = vmul.f32 %v2350, %v2149
        %v2352 = vand.u32 2147483647, %v2149
        %vm2353 = vcmp.lt.f32.partialorder %v2352, 0.0004427343
        %v2354 = vsel %vm2353, %v2351, %v2348
        %v2355 = vadd.f32 %v2151, 1.0
        %v2356 = vlog2.pop %v2355
        %v2357 = vmul.f32 %v2356, 0.6931472
        %v2358 = vmul.f32 -0.5, %v2151
        %v2359 = vadd.f32 %v2358, 1.0
        %v2360 = vmul.f32 %v2359, %v2151
        %v2361 = vand.u32 2147483647, %v2151
        %vm2362 = vcmp.lt.f32.partialorder %v2361, 0.0004427343
        %v2363 = vsel %vm2362, %v2360, %v2357
        %v2364 = vadd.f32 %v2153, 1.0
        %v2365 = vlog2.pop %v2364
        %v2366 = vmul.f32 %v2365, 0.6931472
        %v2367 = vmul.f32 -0.5, %v2153
        %v2368 = vadd.f32 %v2367, 1.0
        %v2369 = vmul.f32 %v2368, %v2153
        %v2370 = vand.u32 2147483647, %v2153
        %vm2371 = vcmp.lt.f32.partialorder %v2370, 0.0004427343
        %v2372 = vsel %vm2371, %v2369, %v2366
        %v2373 = vadd.f32 %v2155, 1.0
        %v2374 = vlog2.pop %v2373
        %v2375 = vmul.f32 %v2374, 0.6931472
        %v2376 = vmul.f32 -0.5, %v2155
        %v2377 = vadd.f32 %v2376, 1.0
        %v2378 = vmul.f32 %v2377, %v2155
        %v2379 = vand.u32 2147483647, %v2155
        %vm2380 = vcmp.lt.f32.partialorder %v2379, 0.0004427343
        %v2381 = vsel %vm2380, %v2378, %v2375
        %v2382 = vadd.f32 %v2157, 1.0
        %v2383 = vlog2.pop %v2382
        %v2384 = vmul.f32 %v2383, 0.6931472
        %v2385 = vmul.f32 -0.5, %v2157
        %v2386 = vadd.f32 %v2385, 1.0
        %v2387 = vmul.f32 %v2386, %v2157
        %v2388 = vand.u32 2147483647, %v2157
        %vm2389 = vcmp.lt.f32.partialorder %v2388, 0.0004427343
        %v2390 = vsel %vm2389, %v2387, %v2384
        %v2391 = vadd.f32 %v2159, 1.0
        %v2392 = vlog2.pop %v2391
        %v2393 = vmul.f32 %v2392, 0.6931472
        %v2394 = vmul.f32 -0.5, %v2159
        %v2395 = vadd.f32 %v2394, 1.0
        %v2396 = vmul.f32 %v2395, %v2159
        %v2397 = vand.u32 2147483647, %v2159
        %vm2398 = vcmp.lt.f32.partialorder %v2397, 0.0004427343
        %v2399 = vsel %vm2398, %v2396, %v2393
        %v2400 = vadd.f32 %v2161, 1.0
        %v2401 = vlog2.pop %v2400
        %v2402 = vmul.f32 %v2401, 0.6931472
        %v2403 = vmul.f32 -0.5, %v2161
        %v2404 = vadd.f32 %v2403, 1.0
        %v2405 = vmul.f32 %v2404, %v2161
        %v2406 = vand.u32 2147483647, %v2161
        %vm2407 = vcmp.lt.f32.partialorder %v2406, 0.0004427343
        %v2408 = vsel %vm2407, %v2405, %v2402
        %v2409 = vadd.f32 %v2163, 1.0
        %v2410 = vlog2.pop %v2409
        %v2411 = vmul.f32 %v2410, 0.6931472
        %v2412 = vmul.f32 -0.5, %v2163
        %v2413 = vadd.f32 %v2412, 1.0
        %v2414 = vmul.f32 %v2413, %v2163
        %v2415 = vand.u32 2147483647, %v2163
        %vm2416 = vcmp.lt.f32.partialorder %v2415, 0.0004427343
        %v2417 = vsel %vm2416, %v2414, %v2411
        %v2418 = vadd.f32 %v2165, 1.0
        %v2419 = vlog2.pop %v2418
        %v2420 = vmul.f32 %v2419, 0.6931472
        %v2421 = vmul.f32 -0.5, %v2165
        %v2422 = vadd.f32 %v2421, 1.0
        %v2423 = vmul.f32 %v2422, %v2165
        %v2424 = vand.u32 2147483647, %v2165
        %vm2425 = vcmp.lt.f32.partialorder %v2424, 0.0004427343
        %v2426 = vsel %vm2425, %v2423, %v2420
        %v2427 = vadd.f32 %v2167, 1.0
        %v2428 = vlog2.pop %v2427
        %v2429 = vmul.f32 %v2428, 0.6931472
        %v2430 = vmul.f32 -0.5, %v2167
        %v2431 = vadd.f32 %v2430, 1.0
        %v2432 = vmul.f32 %v2431, %v2167
        %v2433 = vand.u32 2147483647, %v2167
        %vm2434 = vcmp.lt.f32.partialorder %v2433, 0.0004427343
        %v2435 = vsel %vm2434, %v2432, %v2429
        %v2436 = vadd.f32 %v2169, 1.0
        %v2437 = vlog2.pop %v2436
        %v2438 = vmul.f32 %v2437, 0.6931472
        %v2439 = vmul.f32 -0.5, %v2169
        %v2440 = vadd.f32 %v2439, 1.0
        %v2441 = vmul.f32 %v2440, %v2169
        %v2442 = vand.u32 2147483647, %v2169
        %vm2443 = vcmp.lt.f32.partialorder %v2442, 0.0004427343
        %v2444 = vsel %vm2443, %v2441, %v2438
        %v2445 = vadd.f32 %v2171, 1.0
        %v2446 = vlog2.pop %v2445
        %v2447 = vmul.f32 %v2446, 0.6931472
        %v2448 = vmul.f32 -0.5, %v2171
        %v2449 = vadd.f32 %v2448, 1.0
        %v2450 = vmul.f32 %v2449, %v2171
        %v2451 = vand.u32 2147483647, %v2171
        %vm2452 = vcmp.lt.f32.partialorder %v2451, 0.0004427343
        %v2453 = vsel %vm2452, %v2450, %v2447
        %v2454 = vadd.f32 %v2173, 1.0
        %v2455 = vlog2.pop %v2454
        %v2456 = vmul.f32 %v2455, 0.6931472
        %v2457 = vmul.f32 -0.5, %v2173
        %v2458 = vadd.f32 %v2457, 1.0
        %v2459 = vmul.f32 %v2458, %v2173
        %v2460 = vand.u32 2147483647, %v2173
        %vm2461 = vcmp.lt.f32.partialorder %v2460, 0.0004427343
        %v2462 = vsel %vm2461, %v2459, %v2456
        %v2463 = vadd.f32 %v2175, 1.0
        %v2464 = vlog2.pop %v2463
        %v2465 = vmul.f32 %v2464, 0.6931472
        %v2466 = vmul.f32 -0.5, %v2175
        %v2467 = vadd.f32 %v2466, 1.0
        %v2468 = vmul.f32 %v2467, %v2175
        %v2469 = vand.u32 2147483647, %v2175
        %vm2470 = vcmp.lt.f32.partialorder %v2469, 0.0004427343
        %v2471 = vsel %vm2470, %v2468, %v2465
        %v2472 = vadd.f32 %v2177, 1.0
        %v2473 = vlog2.pop %v2472
        %v2474 = vmul.f32 %v2473, 0.6931472
        %v2475 = vmul.f32 -0.5, %v2177
        %v2476 = vadd.f32 %v2475, 1.0
        %v2477 = vmul.f32 %v2476, %v2177
        %v2478 = vand.u32 2147483647, %v2177
        %vm2479 = vcmp.lt.f32.partialorder %v2478, 0.0004427343
        %v2480 = vsel %vm2479, %v2477, %v2474
        %v2481 = vadd.f32 %v2179, 1.0
        %v2482 = vlog2.pop %v2481
        %v2483 = vmul.f32 %v2482, 0.6931472
        %v2484 = vmul.f32 -0.5, %v2179
        %v2485 = vadd.f32 %v2484, 1.0
        %v2486 = vmul.f32 %v2485, %v2179
        %v2487 = vand.u32 2147483647, %v2179
        %vm2488 = vcmp.lt.f32.partialorder %v2487, 0.0004427343
        %v2489 = vsel %vm2488, %v2486, %v2483
        %v2490 = vadd.f32 %v2181, 1.0
        %v2491 = vlog2.pop %v2490
        %v2492 = vmul.f32 %v2491, 0.6931472
        %v2493 = vmul.f32 -0.5, %v2181
        %v2494 = vadd.f32 %v2493, 1.0
        %v2495 = vmul.f32 %v2494, %v2181
        %v2496 = vand.u32 2147483647, %v2181
        %vm2497 = vcmp.lt.f32.partialorder %v2496, 0.0004427343
        %v2498 = vsel %vm2497, %v2495, %v2492
        %v2499 = vadd.f32 %v2183, 1.0
        %v2500 = vlog2.pop %v2499
        %v2501 = vmul.f32 %v2500, 0.6931472
        %v2502 = vmul.f32 -0.5, %v2183
        %v2503 = vadd.f32 %v2502, 1.0
        %v2504 = vmul.f32 %v2503, %v2183
        %v2505 = vand.u32 2147483647, %v2183
        %vm2506 = vcmp.lt.f32.partialorder %v2505, 0.0004427343
        %v2507 = vsel %vm2506, %v2504, %v2501
        %v2508 = vadd.f32 %v2185, 1.0
        %v2509 = vlog2.pop %v2508
        %v2510 = vmul.f32 %v2509, 0.6931472
        %v2511 = vmul.f32 -0.5, %v2185
        %v2512 = vadd.f32 %v2511, 1.0
        %v2513 = vmul.f32 %v2512, %v2185
        %v2514 = vand.u32 2147483647, %v2185
        %vm2515 = vcmp.lt.f32.partialorder %v2514, 0.0004427343
        %v2516 = vsel %vm2515, %v2513, %v2510
        %v2517 = vadd.f32 %v2187, 1.0
        %v2518 = vlog2.pop %v2517
        %v2519 = vmul.f32 %v2518, 0.6931472
        %v2520 = vmul.f32 -0.5, %v2187
        %v2521 = vadd.f32 %v2520, 1.0
        %v2522 = vmul.f32 %v2521, %v2187
        %v2523 = vand.u32 2147483647, %v2187
        %vm2524 = vcmp.lt.f32.partialorder %v2523, 0.0004427343
        %v2525 = vsel %vm2524, %v2522, %v2519
        %v2526 = vadd.f32 %v2189, 1.0
        %v2527 = vlog2.pop %v2526
        %v2528 = vmul.f32 %v2527, 0.6931472
        %v2529 = vmul.f32 -0.5, %v2189
        %v2530 = vadd.f32 %v2529, 1.0
        %v2531 = vmul.f32 %v2530, %v2189
        %v2532 = vand.u32 2147483647, %v2189
        %vm2533 = vcmp.lt.f32.partialorder %v2532, 0.0004427343
        %v2534 = vsel %vm2533, %v2531, %v2528
        %v2535 = vadd.f32 %v2191, 1.0
        %v2536 = vlog2.pop %v2535
        %v2537 = vmul.f32 %v2536, 0.6931472
        %v2538 = vmul.f32 -0.5, %v2191
        %v2539 = vadd.f32 %v2538, 1.0
        %v2540 = vmul.f32 %v2539, %v2191
        %v2541 = vand.u32 2147483647, %v2191
        %vm2542 = vcmp.lt.f32.partialorder %v2541, 0.0004427343
        %v2543 = vsel %vm2542, %v2540, %v2537
        %v2544 = vadd.f32 %v2193, 1.0
        %v2545 = vlog2.pop %v2544
        %v2546 = vmul.f32 %v2545, 0.6931472
        %v2547 = vmul.f32 -0.5, %v2193
        %v2548 = vadd.f32 %v2547, 1.0
        %v2549 = vmul.f32 %v2548, %v2193
        %v2550 = vand.u32 2147483647, %v2193
        %vm2551 = vcmp.lt.f32.partialorder %v2550, 0.0004427343
        %v2552 = vsel %vm2551, %v2549, %v2546
        %v2553 = vadd.f32 %v2195, 1.0
        %v2554 = vlog2.pop %v2553
        %v2555 = vmul.f32 %v2554, 0.6931472
        %v2556 = vmul.f32 -0.5, %v2195
        %v2557 = vadd.f32 %v2556, 1.0
        %v2558 = vmul.f32 %v2557, %v2195
        %v2559 = vand.u32 2147483647, %v2195
        %vm2560 = vcmp.lt.f32.partialorder %v2559, 0.0004427343
        %v2561 = vsel %vm2560, %v2558, %v2555
        %v2562 = vadd.f32 %v2197, 1.0
        %v2563 = vlog2.pop %v2562
        %v2564 = vmul.f32 %v2563, 0.6931472
        %v2565 = vmul.f32 -0.5, %v2197
        %v2566 = vadd.f32 %v2565, 1.0
        %v2567 = vmul.f32 %v2566, %v2197
        %v2568 = vand.u32 2147483647, %v2197
        %vm2569 = vcmp.lt.f32.partialorder %v2568, 0.0004427343
        %v2570 = vsel %vm2569, %v2567, %v2564
        %v2571 = vadd.f32 %v2199, 1.0
        %v2572 = vlog2.pop %v2571
        %v2573 = vmul.f32 %v2572, 0.6931472
        %v2574 = vmul.f32 -0.5, %v2199
        %v2575 = vadd.f32 %v2574, 1.0
        %v2576 = vmul.f32 %v2575, %v2199
        %v2577 = vand.u32 2147483647, %v2199
        %vm2578 = vcmp.lt.f32.partialorder %v2577, 0.0004427343
        %v2579 = vsel %vm2578, %v2576, %v2573
        %v2580 = vadd.f32 %v2201, 1.0
        %v2581 = vlog2.pop %v2580
        %v2582 = vmul.f32 %v2581, 0.6931472
        %v2583 = vmul.f32 -0.5, %v2201
        %v2584 = vadd.f32 %v2583, 1.0
        %v2585 = vmul.f32 %v2584, %v2201
        %v2586 = vand.u32 2147483647, %v2201
        %vm2587 = vcmp.lt.f32.partialorder %v2586, 0.0004427343
        %v2588 = vsel %vm2587, %v2585, %v2582
        %v2589 = vadd.f32 %v2203, 1.0
        %v2590 = vlog2.pop %v2589
        %v2591 = vmul.f32 %v2590, 0.6931472
        %v2592 = vmul.f32 -0.5, %v2203
        %v2593 = vadd.f32 %v2592, 1.0
        %v2594 = vmul.f32 %v2593, %v2203
        %v2595 = vand.u32 2147483647, %v2203
        %vm2596 = vcmp.lt.f32.partialorder %v2595, 0.0004427343
        %v2597 = vsel %vm2596, %v2594, %v2591
        %v2598 = vadd.f32 %v2205, 1.0
        %v2599 = vlog2.pop %v2598
        %v2600 = vmul.f32 %v2599, 0.6931472
        %v2601 = vmul.f32 -0.5, %v2205
        %v2602 = vadd.f32 %v2601, 1.0
        %v2603 = vmul.f32 %v2602, %v2205
        %v2604 = vand.u32 2147483647, %v2205
        %vm2605 = vcmp.lt.f32.partialorder %v2604, 0.0004427343
        %v2606 = vsel %vm2605, %v2603, %v2600
        %v2607 = vadd.f32 %v2207, 1.0
        %v2608 = vlog2.pop %v2607
        %v2609 = vmul.f32 %v2608, 0.6931472
        %v2610 = vmul.f32 -0.5, %v2207
        %v2611 = vadd.f32 %v2610, 1.0
        %v2612 = vmul.f32 %v2611, %v2207
        %v2613 = vand.u32 2147483647, %v2207
        %vm2614 = vcmp.lt.f32.partialorder %v2613, 0.0004427343
        %v2615 = vsel %vm2614, %v2612, %v2609
        %v2616 = vadd.f32 %v2209, 1.0
        %v2617 = vlog2.pop %v2616
        %v2618 = vmul.f32 %v2617, 0.6931472
        %v2619 = vmul.f32 -0.5, %v2209
        %v2620 = vadd.f32 %v2619, 1.0
        %v2621 = vmul.f32 %v2620, %v2209
        %v2622 = vand.u32 2147483647, %v2209
        %vm2623 = vcmp.lt.f32.partialorder %v2622, 0.0004427343
        %v2624 = vsel %vm2623, %v2621, %v2618
        %v2625 = vadd.f32 %v2211, 1.0
        %v2626 = vlog2.pop %v2625
        %v2627 = vmul.f32 %v2626, 0.6931472
        %v2628 = vmul.f32 -0.5, %v2211
        %v2629 = vadd.f32 %v2628, 1.0
        %v2630 = vmul.f32 %v2629, %v2211
        %v2631 = vand.u32 2147483647, %v2211
        %vm2632 = vcmp.lt.f32.partialorder %v2631, 0.0004427343
        %v2633 = vsel %vm2632, %v2630, %v2627
        %v2634 = vadd.f32 %v2213, 1.0
        %v2635 = vlog2.pop %v2634
        %v2636 = vmul.f32 %v2635, 0.6931472
        %v2637 = vmul.f32 -0.5, %v2213
        %v2638 = vadd.f32 %v2637, 1.0
        %v2639 = vmul.f32 %v2638, %v2213
        %v2640 = vand.u32 2147483647, %v2213
        %vm2641 = vcmp.lt.f32.partialorder %v2640, 0.0004427343
        %v2642 = vsel %vm2641, %v2639, %v2636
        %v2643 = vadd.f32 %v2215, 1.0
        %v2644 = vlog2.pop %v2643
        %v2645 = vmul.f32 %v2644, 0.6931472
        %v2646 = vmul.f32 -0.5, %v2215
        %v2647 = vadd.f32 %v2646, 1.0
        %v2648 = vmul.f32 %v2647, %v2215
        %v2649 = vand.u32 2147483647, %v2215
        %vm2650 = vcmp.lt.f32.partialorder %v2649, 0.0004427343
        %v2651 = vsel %vm2650, %v2648, %v2645
        %v2652 = vadd.f32 %v2217, 1.0
        %v2653 = vlog2.pop %v2652
        %v2654 = vmul.f32 %v2653, 0.6931472
        %v2655 = vmul.f32 -0.5, %v2217
        %v2656 = vadd.f32 %v2655, 1.0
        %v2657 = vmul.f32 %v2656, %v2217
        %v2658 = vand.u32 2147483647, %v2217
        %vm2659 = vcmp.lt.f32.partialorder %v2658, 0.0004427343
        %v2660 = vsel %vm2659, %v2657, %v2654
        %v2661 = vadd.f32 %v2219, 1.0
        %v2662 = vlog2.pop %v2661
        %v2663 = vmul.f32 %v2662, 0.6931472
        %v2664 = vmul.f32 -0.5, %v2219
        %v2665 = vadd.f32 %v2664, 1.0
        %v2666 = vmul.f32 %v2665, %v2219
        %v2667 = vand.u32 2147483647, %v2219
        %vm2668 = vcmp.lt.f32.partialorder %v2667, 0.0004427343
        %v2669 = vsel %vm2668, %v2666, %v2663
        %v2670 = vadd.f32 %v2221, 1.0
        %v2671 = vlog2.pop %v2670
        %v2672 = vmul.f32 %v2671, 0.6931472
        %v2673 = vmul.f32 -0.5, %v2221
        %v2674 = vadd.f32 %v2673, 1.0
        %v2675 = vmul.f32 %v2674, %v2221
        %v2676 = vand.u32 2147483647, %v2221
        %vm2677 = vcmp.lt.f32.partialorder %v2676, 0.0004427343
        %v2678 = vsel %vm2677, %v2675, %v2672
        %v2679 = vadd.f32 %v2223, 1.0
        %v2680 = vlog2.pop %v2679
        %v2681 = vmul.f32 %v2680, 0.6931472
        %v2682 = vmul.f32 -0.5, %v2223
        %v2683 = vadd.f32 %v2682, 1.0
        %v2684 = vmul.f32 %v2683, %v2223
        %v2685 = vand.u32 2147483647, %v2223
        %vm2686 = vcmp.lt.f32.partialorder %v2685, 0.0004427343
        %v2687 = vsel %vm2686, %v2684, %v2681
        %v2688 = vadd.f32 %v2225, 1.0
        %v2689 = vlog2.pop %v2688
        %v2690 = vmul.f32 %v2689, 0.6931472
        %v2691 = vmul.f32 -0.5, %v2225
        %v2692 = vadd.f32 %v2691, 1.0
        %v2693 = vmul.f32 %v2692, %v2225
        %v2694 = vand.u32 2147483647, %v2225
        %vm2695 = vcmp.lt.f32.partialorder %v2694, 0.0004427343
        %v2696 = vsel %vm2695, %v2693, %v2690
        %v2697 = vadd.f32 %v2227, 1.0
        %v2698 = vlog2.pop %v2697
        %v2699 = vmul.f32 %v2698, 0.6931472
        %v2700 = vmul.f32 -0.5, %v2227
        %v2701 = vadd.f32 %v2700, 1.0
        %v2702 = vmul.f32 %v2701, %v2227
        %v2703 = vand.u32 2147483647, %v2227
        %vm2704 = vcmp.lt.f32.partialorder %v2703, 0.0004427343
        %v2705 = vsel %vm2704, %v2702, %v2699
        %v2706 = vadd.f32 %v2229, 1.0
        %v2707 = vlog2.pop %v2706
        %v2708 = vmul.f32 %v2707, 0.6931472
        %v2709 = vmul.f32 -0.5, %v2229
        %v2710 = vadd.f32 %v2709, 1.0
        %v2711 = vmul.f32 %v2710, %v2229
        %v2712 = vand.u32 2147483647, %v2229
        %vm2713 = vcmp.lt.f32.partialorder %v2712, 0.0004427343
        %v2714 = vsel %vm2713, %v2711, %v2708
        %v2715 = vadd.f32 %v2231, 1.0
        %v2716 = vlog2.pop %v2715
        %v2717 = vmul.f32 %v2716, 0.6931472
        %v2718 = vmul.f32 -0.5, %v2231
        %v2719 = vadd.f32 %v2718, 1.0
        %v2720 = vmul.f32 %v2719, %v2231
        %v2721 = vand.u32 2147483647, %v2231
        %vm2722 = vcmp.lt.f32.partialorder %v2721, 0.0004427343
        %v2723 = vsel %vm2722, %v2720, %v2717
        %v2724 = vadd.f32 %v2233, 1.0
        %v2725 = vlog2.pop %v2724
        %v2726 = vmul.f32 %v2725, 0.6931472
        %v2727 = vmul.f32 -0.5, %v2233
        %v2728 = vadd.f32 %v2727, 1.0
        %v2729 = vmul.f32 %v2728, %v2233
        %v2730 = vand.u32 2147483647, %v2233
        %vm2731 = vcmp.lt.f32.partialorder %v2730, 0.0004427343
        %v2732 = vsel %vm2731, %v2729, %v2726
        %v2733 = vadd.f32 %v2235, 1.0
        %v2734 = vlog2.pop %v2733
        %v2735 = vmul.f32 %v2734, 0.6931472
        %v2736 = vmul.f32 -0.5, %v2235
        %v2737 = vadd.f32 %v2736, 1.0
        %v2738 = vmul.f32 %v2737, %v2235
        %v2739 = vand.u32 2147483647, %v2235
        %vm2740 = vcmp.lt.f32.partialorder %v2739, 0.0004427343
        %v2741 = vsel %vm2740, %v2738, %v2735
        %v2742 = vadd.f32 %v2237, 1.0
        %v2743 = vlog2.pop %v2742
        %v2744 = vmul.f32 %v2743, 0.6931472
        %v2745 = vmul.f32 -0.5, %v2237
        %v2746 = vadd.f32 %v2745, 1.0
        %v2747 = vmul.f32 %v2746, %v2237
        %v2748 = vand.u32 2147483647, %v2237
        %vm2749 = vcmp.lt.f32.partialorder %v2748, 0.0004427343
        %v2750 = vsel %vm2749, %v2747, %v2744
        %v2751 = vadd.f32 %v2239, 1.0
        %v2752 = vlog2.pop %v2751
        %v2753 = vmul.f32 %v2752, 0.6931472
        %v2754 = vmul.f32 -0.5, %v2239
        %v2755 = vadd.f32 %v2754, 1.0
        %v2756 = vmul.f32 %v2755, %v2239
        %v2757 = vand.u32 2147483647, %v2239
        %vm2758 = vcmp.lt.f32.partialorder %v2757, 0.0004427343
        %v2759 = vsel %vm2758, %v2756, %v2753
        %v2760 = vadd.f32 %v2241, 1.0
        %v2761 = vlog2.pop %v2760
        %v2762 = vmul.f32 %v2761, 0.6931472
        %v2763 = vmul.f32 -0.5, %v2241
        %v2764 = vadd.f32 %v2763, 1.0
        %v2765 = vmul.f32 %v2764, %v2241
        %v2766 = vand.u32 2147483647, %v2241
        %vm2767 = vcmp.lt.f32.partialorder %v2766, 0.0004427343
        %v2768 = vsel %vm2767, %v2765, %v2762
        %v2769 = vadd.f32 %v2243, 1.0
        %v2770 = vlog2.pop %v2769
        %v2771 = vmul.f32 %v2770, 0.6931472
        %v2772 = vmul.f32 -0.5, %v2243
        %v2773 = vadd.f32 %v2772, 1.0
        %v2774 = vmul.f32 %v2773, %v2243
        %v2775 = vand.u32 2147483647, %v2243
        %vm2776 = vcmp.lt.f32.partialorder %v2775, 0.0004427343
        %v2777 = vsel %vm2776, %v2774, %v2771
        %v2778 = vadd.f32 %v2245, 1.0
        %v2779 = vlog2.pop %v2778
        %v2780 = vmul.f32 %v2779, 0.6931472
        %v2781 = vmul.f32 -0.5, %v2245
        %v2782 = vadd.f32 %v2781, 1.0
        %v2783 = vmul.f32 %v2782, %v2245
        %v2784 = vand.u32 2147483647, %v2245
        %vm2785 = vcmp.lt.f32.partialorder %v2784, 0.0004427343
        %v2786 = vsel %vm2785, %v2783, %v2780
        %v2787 = vadd.f32 %v2247, 1.0
        %v2788 = vlog2.pop %v2787
        %v2789 = vmul.f32 %v2788, 0.6931472
        %v2790 = vmul.f32 -0.5, %v2247
        %v2791 = vadd.f32 %v2790, 1.0
        %v2792 = vmul.f32 %v2791, %v2247
        %v2793 = vand.u32 2147483647, %v2247
        %vm2794 = vcmp.lt.f32.partialorder %v2793, 0.0004427343
        %v2795 = vsel %vm2794, %v2792, %v2789
        %v2796 = vadd.f32 %v2249, 1.0
        %v2797 = vlog2.pop %v2796
        %v2798 = vmul.f32 %v2797, 0.6931472
        %v2799 = vmul.f32 -0.5, %v2249
        %v2800 = vadd.f32 %v2799, 1.0
        %v2801 = vmul.f32 %v2800, %v2249
        %v2802 = vand.u32 2147483647, %v2249
        %vm2803 = vcmp.lt.f32.partialorder %v2802, 0.0004427343
        %v2804 = vsel %vm2803, %v2801, %v2798
        %v2805 = vadd.f32 %v2251, 1.0
        %v2806 = vlog2.pop %v2805
        %v2807 = vmul.f32 %v2806, 0.6931472
        %v2808 = vmul.f32 -0.5, %v2251
        %v2809 = vadd.f32 %v2808, 1.0
        %v2810 = vmul.f32 %v2809, %v2251
        %v2811 = vand.u32 2147483647, %v2251
        %vm2812 = vcmp.lt.f32.partialorder %v2811, 0.0004427343
        %v2813 = vsel %vm2812, %v2810, %v2807
        %v2814 = vadd.f32 %v2253, 1.0
        %v2815 = vlog2.pop %v2814
        %v2816 = vmul.f32 %v2815, 0.6931472
        %v2817 = vmul.f32 -0.5, %v2253
        %v2818 = vadd.f32 %v2817, 1.0
        %v2819 = vmul.f32 %v2818, %v2253
        %v2820 = vand.u32 2147483647, %v2253
        %vm2821 = vcmp.lt.f32.partialorder %v2820, 0.0004427343
        %v2822 = vsel %vm2821, %v2819, %v2816
        %v2823 = vadd.f32 %v2255, 1.0
        %v2824 = vlog2.pop %v2823
        %v2825 = vmul.f32 %v2824, 0.6931472
        %v2826 = vmul.f32 -0.5, %v2255
        %v2827 = vadd.f32 %v2826, 1.0
        %v2828 = vmul.f32 %v2827, %v2255
        %v2829 = vand.u32 2147483647, %v2255
        %vm2830 = vcmp.lt.f32.partialorder %v2829, 0.0004427343
        %v2831 = vsel %vm2830, %v2828, %v2825
        %v2832 = vsel %vm2000, %v1746, %v2264
        %v2833 = vsel %vm2001, %v1749, %v2273
        %v2834 = vsel %vm2002, %v1754, %v2282
        %v2835 = vsel %vm2003, %v1757, %v2291
        %v2836 = vsel %vm2004, %v1762, %v2300
        %v2837 = vsel %vm2005, %v1765, %v2309
        %v2838 = vsel %vm2006, %v1770, %v2318
        %v2839 = vsel %vm2007, %v1773, %v2327
        %v2840 = vsel %vm2008, %v1778, %v2336
        %v2841 = vsel %vm2009, %v1781, %v2345
        %v2842 = vsel %vm2010, %v1786, %v2354
        %v2843 = vsel %vm2011, %v1789, %v2363
        %v2844 = vsel %vm2012, %v1794, %v2372
        %v2845 = vsel %vm2013, %v1797, %v2381
        %v2846 = vsel %vm2014, %v1802, %v2390
        %v2847 = vsel %vm2015, %v1805, %v2399
        %v2848 = vsel %vm2016, %v1810, %v2408
        %v2849 = vsel %vm2017, %v1813, %v2417
        %v2850 = vsel %vm2018, %v1818, %v2426
        %v2851 = vsel %vm2019, %v1821, %v2435
        %v2852 = vsel %vm2020, %v1826, %v2444
        %v2853 = vsel %vm2021, %v1829, %v2453
        %v2854 = vsel %vm2022, %v1834, %v2462
        %v2855 = vsel %vm2023, %v1837, %v2471
        %v2856 = vsel %vm2024, %v1842, %v2480
        %v2857 = vsel %vm2025, %v1845, %v2489
        %v2858 = vsel %vm2026, %v1850, %v2498
        %v2859 = vsel %vm2027, %v1853, %v2507
        %v2860 = vsel %vm2028, %v1858, %v2516
        %v2861 = vsel %vm2029, %v1861, %v2525
        %v2862 = vsel %vm2030, %v1866, %v2534
        %v2863 = vsel %vm2031, %v1869, %v2543
        %v2864 = vsel %vm2032, %v1874, %v2552
        %v2865 = vsel %vm2033, %v1877, %v2561
        %v2866 = vsel %vm2034, %v1882, %v2570
        %v2867 = vsel %vm2035, %v1885, %v2579
        %v2868 = vsel %vm2036, %v1890, %v2588
        %v2869 = vsel %vm2037, %v1893, %v2597
        %v2870 = vsel %vm2038, %v1898, %v2606
        %v2871 = vsel %vm2039, %v1901, %v2615
        %v2872 = vsel %vm2040, %v1906, %v2624
        %v2873 = vsel %vm2041, %v1909, %v2633
        %v2874 = vsel %vm2042, %v1914, %v2642
        %v2875 = vsel %vm2043, %v1917, %v2651
        %v2876 = vsel %vm2044, %v1922, %v2660
        %v2877 = vsel %vm2045, %v1925, %v2669
        %v2878 = vsel %vm2046, %v1930, %v2678
        %v2879 = vsel %vm2047, %v1933, %v2687
        %v2880 = vsel %vm2048, %v1938, %v2696
        %v2881 = vsel %vm2049, %v1941, %v2705
        %v2882 = vsel %vm2050, %v1946, %v2714
        %v2883 = vsel %vm2051, %v1949, %v2723
        %v2884 = vsel %vm2052, %v1954, %v2732
        %v2885 = vsel %vm2053, %v1957, %v2741
        %v2886 = vsel %vm2054, %v1962, %v2750
        %v2887 = vsel %vm2055, %v1965, %v2759
        %v2888 = vsel %vm2056, %v1970, %v2768
        %v2889 = vsel %vm2057, %v1973, %v2777
        %v2890 = vsel %vm2058, %v1978, %v2786
        %v2891 = vsel %vm2059, %v1981, %v2795
        %v2892 = vsel %vm2060, %v1986, %v2804
        %v2893 = vsel %vm2061, %v1989, %v2813
        %v2894 = vsel %vm2062, %v1994, %v2822
        %v2895 = vsel %vm2063, %v1997, %v2831
        %v2896 = vadd.f32 %v2832, 1e-05
        %v2897 = vadd.f32 %v2833, 1e-05
        %v2898 = vadd.f32 %v2834, 1e-05
        %v2899 = vadd.f32 %v2835, 1e-05
        %v2900 = vadd.f32 %v2836, 1e-05
        %v2901 = vadd.f32 %v2837, 1e-05
        %v2902 = vadd.f32 %v2838, 1e-05
        %v2903 = vadd.f32 %v2839, 1e-05
        %v2904 = vadd.f32 %v2840, 1e-05
        %v2905 = vadd.f32 %v2841, 1e-05
        %v2906 = vadd.f32 %v2842, 1e-05
        %v2907 = vadd.f32 %v2843, 1e-05
        %v2908 = vadd.f32 %v2844, 1e-05
        %v2909 = vadd.f32 %v2845, 1e-05
        %v2910 = vadd.f32 %v2846, 1e-05
        %v2911 = vadd.f32 %v2847, 1e-05
        %v2912 = vadd.f32 %v2848, 1e-05
        %v2913 = vadd.f32 %v2849, 1e-05
        %v2914 = vadd.f32 %v2850, 1e-05
        %v2915 = vadd.f32 %v2851, 1e-05
        %v2916 = vadd.f32 %v2852, 1e-05
        %v2917 = vadd.f32 %v2853, 1e-05
        %v2918 = vadd.f32 %v2854, 1e-05
        %v2919 = vadd.f32 %v2855, 1e-05
        %v2920 = vadd.f32 %v2856, 1e-05
        %v2921 = vadd.f32 %v2857, 1e-05
        %v2922 = vadd.f32 %v2858, 1e-05
        %v2923 = vadd.f32 %v2859, 1e-05
        %v2924 = vadd.f32 %v2860, 1e-05
        %v2925 = vadd.f32 %v2861, 1e-05
        %v2926 = vadd.f32 %v2862, 1e-05
        %v2927 = vadd.f32 %v2863, 1e-05
        %v2928 = vadd.f32 %v2864, 1e-05
        %v2929 = vadd.f32 %v2865, 1e-05
        %v2930 = vadd.f32 %v2866, 1e-05
        %v2931 = vadd.f32 %v2867, 1e-05
        %v2932 = vadd.f32 %v2868, 1e-05
        %v2933 = vadd.f32 %v2869, 1e-05
        %v2934 = vadd.f32 %v2870, 1e-05
        %v2935 = vadd.f32 %v2871, 1e-05
        %v2936 = vadd.f32 %v2872, 1e-05
        %v2937 = vadd.f32 %v2873, 1e-05
        %v2938 = vadd.f32 %v2874, 1e-05
        %v2939 = vadd.f32 %v2875, 1e-05
        %v2940 = vadd.f32 %v2876, 1e-05
        %v2941 = vadd.f32 %v2877, 1e-05
        %v2942 = vadd.f32 %v2878, 1e-05
        %v2943 = vadd.f32 %v2879, 1e-05
        %v2944 = vadd.f32 %v2880, 1e-05
        %v2945 = vadd.f32 %v2881, 1e-05
        %v2946 = vadd.f32 %v2882, 1e-05
        %v2947 = vadd.f32 %v2883, 1e-05
        %v2948 = vadd.f32 %v2884, 1e-05
        %v2949 = vadd.f32 %v2885, 1e-05
        %v2950 = vadd.f32 %v2886, 1e-05
        %v2951 = vadd.f32 %v2887, 1e-05
        %v2952 = vadd.f32 %v2888, 1e-05
        %v2953 = vadd.f32 %v2889, 1e-05
        %v2954 = vadd.f32 %v2890, 1e-05
        %v2955 = vadd.f32 %v2891, 1e-05
        %v2956 = vadd.f32 %v2892, 1e-05
        %v2957 = vadd.f32 %v2893, 1e-05
        %v2958 = vadd.f32 %v2894, 1e-05
        %v2959 = vadd.f32 %v2895, 1e-05
        %v2960 = vmax.f32 %v2896, 0.001
        %v2961 = vmax.f32 %v2897, 0.001
        %v2962 = vmax.f32 %v2898, 0.001
        %v2963 = vmax.f32 %v2899, 0.001
        %v2964 = vmax.f32 %v2900, 0.001
        %v2965 = vmax.f32 %v2901, 0.001
        %v2966 = vmax.f32 %v2902, 0.001
        %v2967 = vmax.f32 %v2903, 0.001
        %v2968 = vmax.f32 %v2904, 0.001
        %v2969 = vmax.f32 %v2905, 0.001
        %v2970 = vmax.f32 %v2906, 0.001
        %v2971 = vmax.f32 %v2907, 0.001
        %v2972 = vmax.f32 %v2908, 0.001
        %v2973 = vmax.f32 %v2909, 0.001
        %v2974 = vmax.f32 %v2910, 0.001
        %v2975 = vmax.f32 %v2911, 0.001
        %v2976 = vmax.f32 %v2912, 0.001
        %v2977 = vmax.f32 %v2913, 0.001
        %v2978 = vmax.f32 %v2914, 0.001
        %v2979 = vmax.f32 %v2915, 0.001
        %v2980 = vmax.f32 %v2916, 0.001
        %v2981 = vmax.f32 %v2917, 0.001
        %v2982 = vmax.f32 %v2918, 0.001
        %v2983 = vmax.f32 %v2919, 0.001
        %v2984 = vmax.f32 %v2920, 0.001
        %v2985 = vmax.f32 %v2921, 0.001
        %v2986 = vmax.f32 %v2922, 0.001
        %v2987 = vmax.f32 %v2923, 0.001
        %v2988 = vmax.f32 %v2924, 0.001
        %v2989 = vmax.f32 %v2925, 0.001
        %v2990 = vmax.f32 %v2926, 0.001
        %v2991 = vmax.f32 %v2927, 0.001
        %v2992 = vmax.f32 %v2928, 0.001
        %v2993 = vmax.f32 %v2929, 0.001
        %v2994 = vmax.f32 %v2930, 0.001
        %v2995 = vmax.f32 %v2931, 0.001
        %v2996 = vmax.f32 %v2932, 0.001
        %v2997 = vmax.f32 %v2933, 0.001
        %v2998 = vmax.f32 %v2934, 0.001
        %v2999 = vmax.f32 %v2935, 0.001
        %v3000 = vmax.f32 %v2936, 0.001
        %v3001 = vmax.f32 %v2937, 0.001
        %v3002 = vmax.f32 %v2938, 0.001
        %v3003 = vmax.f32 %v2939, 0.001
        %v3004 = vmax.f32 %v2940, 0.001
        %v3005 = vmax.f32 %v2941, 0.001
        %v3006 = vmax.f32 %v2942, 0.001
        %v3007 = vmax.f32 %v2943, 0.001
        %v3008 = vmax.f32 %v2944, 0.001
        %v3009 = vmax.f32 %v2945, 0.001
        %v3010 = vmax.f32 %v2946, 0.001
        %v3011 = vmax.f32 %v2947, 0.001
        %v3012 = vmax.f32 %v2948, 0.001
        %v3013 = vmax.f32 %v2949, 0.001
        %v3014 = vmax.f32 %v2950, 0.001
        %v3015 = vmax.f32 %v2951, 0.001
        %v3016 = vmax.f32 %v2952, 0.001
        %v3017 = vmax.f32 %v2953, 0.001
        %v3018 = vmax.f32 %v2954, 0.001
        %v3019 = vmax.f32 %v2955, 0.001
        %v3020 = vmax.f32 %v2956, 0.001
        %v3021 = vmax.f32 %v2957, 0.001
        %v3022 = vmax.f32 %v2958, 0.001
        %v3023 = vmax.f32 %v2959, 0.001
        %v3024 = vmin.f32 %v2960, 1.0
        %v3025 = vmin.f32 %v2961, 1.0
        %v3026 = vmin.f32 %v2962, 1.0
        %v3027 = vmin.f32 %v2963, 1.0
        %v3028 = vmin.f32 %v2964, 1.0
        %v3029 = vmin.f32 %v2965, 1.0
        %v3030 = vmin.f32 %v2966, 1.0
        %v3031 = vmin.f32 %v2967, 1.0
        %v3032 = vmin.f32 %v2968, 1.0
        %v3033 = vmin.f32 %v2969, 1.0
        %v3034 = vmin.f32 %v2970, 1.0
        %v3035 = vmin.f32 %v2971, 1.0
        %v3036 = vmin.f32 %v2972, 1.0
        %v3037 = vmin.f32 %v2973, 1.0
        %v3038 = vmin.f32 %v2974, 1.0
        %v3039 = vmin.f32 %v2975, 1.0
        %v3040 = vmin.f32 %v2976, 1.0
        %v3041 = vmin.f32 %v2977, 1.0
        %v3042 = vmin.f32 %v2978, 1.0
        %v3043 = vmin.f32 %v2979, 1.0
        %v3044 = vmin.f32 %v2980, 1.0
        %v3045 = vmin.f32 %v2981, 1.0
        %v3046 = vmin.f32 %v2982, 1.0
        %v3047 = vmin.f32 %v2983, 1.0
        %v3048 = vmin.f32 %v2984, 1.0
        %v3049 = vmin.f32 %v2985, 1.0
        %v3050 = vmin.f32 %v2986, 1.0
        %v3051 = vmin.f32 %v2987, 1.0
        %v3052 = vmin.f32 %v2988, 1.0
        %v3053 = vmin.f32 %v2989, 1.0
        %v3054 = vmin.f32 %v2990, 1.0
        %v3055 = vmin.f32 %v2991, 1.0
        %v3056 = vmin.f32 %v2992, 1.0
        %v3057 = vmin.f32 %v2993, 1.0
        %v3058 = vmin.f32 %v2994, 1.0
        %v3059 = vmin.f32 %v2995, 1.0
        %v3060 = vmin.f32 %v2996, 1.0
        %v3061 = vmin.f32 %v2997, 1.0
        %v3062 = vmin.f32 %v2998, 1.0
        %v3063 = vmin.f32 %v2999, 1.0
        %v3064 = vmin.f32 %v3000, 1.0
        %v3065 = vmin.f32 %v3001, 1.0
        %v3066 = vmin.f32 %v3002, 1.0
        %v3067 = vmin.f32 %v3003, 1.0
        %v3068 = vmin.f32 %v3004, 1.0
        %v3069 = vmin.f32 %v3005, 1.0
        %v3070 = vmin.f32 %v3006, 1.0
        %v3071 = vmin.f32 %v3007, 1.0
        %v3072 = vmin.f32 %v3008, 1.0
        %v3073 = vmin.f32 %v3009, 1.0
        %v3074 = vmin.f32 %v3010, 1.0
        %v3075 = vmin.f32 %v3011, 1.0
        %v3076 = vmin.f32 %v3012, 1.0
        %v3077 = vmin.f32 %v3013, 1.0
        %v3078 = vmin.f32 %v3014, 1.0
        %v3079 = vmin.f32 %v3015, 1.0
        %v3080 = vmin.f32 %v3016, 1.0
        %v3081 = vmin.f32 %v3017, 1.0
        %v3082 = vmin.f32 %v3018, 1.0
        %v3083 = vmin.f32 %v3019, 1.0
        %v3084 = vmin.f32 %v3020, 1.0
        %v3085 = vmin.f32 %v3021, 1.0
        %v3086 = vmin.f32 %v3022, 1.0
        %v3087 = vmin.f32 %v3023, 1.0
        %v3088 = vld [vmem:[%s7] sm:$0x1]
        %v3089 = vsub.f32 %v3024, %v1746
        %v3090 = vsub.f32 %v3025, %v1749
        %v3091 = vsub.f32 %v3026, %v1754
        %v3092 = vsub.f32 %v3027, %v1757
        %v3093 = vsub.f32 %v3028, %v1762
        %v3094 = vsub.f32 %v3029, %v1765
        %v3095 = vsub.f32 %v3030, %v1770
        %v3096 = vsub.f32 %v3031, %v1773
        %v3097 = vsub.f32 %v3032, %v1778
        %v3098 = vsub.f32 %v3033, %v1781
        %v3099 = vsub.f32 %v3034, %v1786
        %v3100 = vsub.f32 %v3035, %v1789
        %v3101 = vsub.f32 %v3036, %v1794
        %v3102 = vsub.f32 %v3037, %v1797
        %v3103 = vsub.f32 %v3038, %v1802
        %v3104 = vsub.f32 %v3039, %v1805
        %v3105 = vsub.f32 %v3040, %v1810
        %v3106 = vsub.f32 %v3041, %v1813
        %v3107 = vsub.f32 %v3042, %v1818
        %v3108 = vsub.f32 %v3043, %v1821
        %v3109 = vsub.f32 %v3044, %v1826
        %v3110 = vsub.f32 %v3045, %v1829
        %v3111 = vsub.f32 %v3046, %v1834
        %v3112 = vsub.f32 %v3047, %v1837
        %v3113 = vsub.f32 %v3048, %v1842
        %v3114 = vsub.f32 %v3049, %v1845
        %v3115 = vsub.f32 %v3050, %v1850
        %v3116 = vsub.f32 %v3051, %v1853
        %v3117 = vsub.f32 %v3052, %v1858
        %v3118 = vsub.f32 %v3053, %v1861
        %v3119 = vsub.f32 %v3054, %v1866
        %v3120 = vsub.f32 %v3055, %v1869
        %v3121 = vsub.f32 %v3056, %v1874
        %v3122 = vsub.f32 %v3057, %v1877
        %v3123 = vsub.f32 %v3058, %v1882
        %v3124 = vsub.f32 %v3059, %v1885
        %v3125 = vsub.f32 %v3060, %v1890
        %v3126 = vsub.f32 %v3061, %v1893
        %v3127 = vsub.f32 %v3062, %v1898
        %v3128 = vsub.f32 %v3063, %v1901
        %v3129 = vsub.f32 %v3064, %v1906
        %v3130 = vsub.f32 %v3065, %v1909
        %v3131 = vsub.f32 %v3066, %v1914
        %v3132 = vsub.f32 %v3067, %v1917
        %v3133 = vsub.f32 %v3068, %v1922
        %v3134 = vsub.f32 %v3069, %v1925
        %v3135 = vsub.f32 %v3070, %v1930
        %v3136 = vsub.f32 %v3071, %v1933
        %v3137 = vsub.f32 %v3072, %v1938
        %v3138 = vsub.f32 %v3073, %v1941
        %v3139 = vsub.f32 %v3074, %v1946
        %v3140 = vsub.f32 %v3075, %v1949
        %v3141 = vsub.f32 %v3076, %v1954
        %v3142 = vsub.f32 %v3077, %v1957
        %v3143 = vsub.f32 %v3078, %v1962
        %v3144 = vsub.f32 %v3079, %v1965
        %v3145 = vsub.f32 %v3080, %v1970
        %v3146 = vsub.f32 %v3081, %v1973
        %v3147 = vsub.f32 %v3082, %v1978
        %v3148 = vsub.f32 %v3083, %v1981
        %v3149 = vsub.f32 %v3084, %v1986
        %v3150 = vsub.f32 %v3085, %v1989
        %v3151 = vsub.f32 %v3086, %v1994
        %v3152 = vsub.f32 %v3087, %v1997
        %v3154 = vlaneseq
        %v3155 = vshrl.u32 %v3154, 7
        %v3156 = vsub.s32 0, %v3155
        %v3157 = vrot.slane %v3088, %v3156
        %v3159 = vmul.f32 %v3157, %v3089
        %v3160 = vmul.f32 %v3157, %v3090
        %v3161 = vmul.f32 %v3157, %v3091
        %v3162 = vmul.f32 %v3157, %v3092
        %v3163 = vmul.f32 %v3157, %v3093
        %v3164 = vmul.f32 %v3157, %v3094
        %v3165 = vmul.f32 %v3157, %v3095
        %v3166 = vmul.f32 %v3157, %v3096
        %v3167 = vmul.f32 %v3157, %v3097
        %v3168 = vmul.f32 %v3157, %v3098
        %v3169 = vmul.f32 %v3157, %v3099
        %v3170 = vmul.f32 %v3157, %v3100
        %v3171 = vmul.f32 %v3157, %v3101
        %v3172 = vmul.f32 %v3157, %v3102
        %v3173 = vmul.f32 %v3157, %v3103
        %v3174 = vmul.f32 %v3157, %v3104
        %v3175 = vmul.f32 %v3157, %v3105
        %v3176 = vmul.f32 %v3157, %v3106
        %v3177 = vmul.f32 %v3157, %v3107
        %v3178 = vmul.f32 %v3157, %v3108
        %v3179 = vmul.f32 %v3157, %v3109
        %v3180 = vmul.f32 %v3157, %v3110
        %v3181 = vmul.f32 %v3157, %v3111
        %v3182 = vmul.f32 %v3157, %v3112
        %v3183 = vmul.f32 %v3157, %v3113
        %v3184 = vmul.f32 %v3157, %v3114
        %v3185 = vmul.f32 %v3157, %v3115
        %v3186 = vmul.f32 %v3157, %v3116
        %v3187 = vmul.f32 %v3157, %v3117
        %v3188 = vmul.f32 %v3157, %v3118
        %v3189 = vmul.f32 %v3157, %v3119
        %v3190 = vmul.f32 %v3157, %v3120
        %v3191 = vmul.f32 %v3157, %v3121
        %v3192 = vmul.f32 %v3157, %v3122
        %v3193 = vmul.f32 %v3157, %v3123
        %v3194 = vmul.f32 %v3157, %v3124
        %v3195 = vmul.f32 %v3157, %v3125
        %v3196 = vmul.f32 %v3157, %v3126
        %v3197 = vmul.f32 %v3157, %v3127
        %v3198 = vmul.f32 %v3157, %v3128
        %v3199 = vmul.f32 %v3157, %v3129
        %v3200 = vmul.f32 %v3157, %v3130
        %v3201 = vmul.f32 %v3157, %v3131
        %v3202 = vmul.f32 %v3157, %v3132
        %v3203 = vmul.f32 %v3157, %v3133
        %v3204 = vmul.f32 %v3157, %v3134
        %v3205 = vmul.f32 %v3157, %v3135
        %v3206 = vmul.f32 %v3157, %v3136
        %v3207 = vmul.f32 %v3157, %v3137
        %v3208 = vmul.f32 %v3157, %v3138
        %v3209 = vmul.f32 %v3157, %v3139
        %v3210 = vmul.f32 %v3157, %v3140
        %v3211 = vmul.f32 %v3157, %v3141
        %v3212 = vmul.f32 %v3157, %v3142
        %v3213 = vmul.f32 %v3157, %v3143
        %v3214 = vmul.f32 %v3157, %v3144
        %v3215 = vmul.f32 %v3157, %v3145
        %v3216 = vmul.f32 %v3157, %v3146
        %v3217 = vmul.f32 %v3157, %v3147
        %v3218 = vmul.f32 %v3157, %v3148
        %v3219 = vmul.f32 %v3157, %v3149
        %v3220 = vmul.f32 %v3157, %v3150
        %v3221 = vmul.f32 %v3157, %v3151
        %v3222 = vmul.f32 %v3157, %v3152
        %v3223 = vadd.f32 %v1746, %v3159
        %v3224 = vadd.f32 %v1749, %v3160
        %v3225 = vadd.f32 %v1754, %v3161
        %v3226 = vadd.f32 %v1757, %v3162
        %v3227 = vadd.f32 %v1762, %v3163
        %v3228 = vadd.f32 %v1765, %v3164
        %v3229 = vadd.f32 %v1770, %v3165
        %v3230 = vadd.f32 %v1773, %v3166
        %v3231 = vadd.f32 %v1778, %v3167
        %v3232 = vadd.f32 %v1781, %v3168
        %v3233 = vadd.f32 %v1786, %v3169
        %v3234 = vadd.f32 %v1789, %v3170
        %v3235 = vadd.f32 %v1794, %v3171
        %v3236 = vadd.f32 %v1797, %v3172
        %v3237 = vadd.f32 %v1802, %v3173
        %v3238 = vadd.f32 %v1805, %v3174
        %v3239 = vadd.f32 %v1810, %v3175
        %v3240 = vadd.f32 %v1813, %v3176
        %v3241 = vadd.f32 %v1818, %v3177
        %v3242 = vadd.f32 %v1821, %v3178
        %v3243 = vadd.f32 %v1826, %v3179
        %v3244 = vadd.f32 %v1829, %v3180
        %v3245 = vadd.f32 %v1834, %v3181
        %v3246 = vadd.f32 %v1837, %v3182
        %v3247 = vadd.f32 %v1842, %v3183
        %v3248 = vadd.f32 %v1845, %v3184
        %v3249 = vadd.f32 %v1850, %v3185
        %v3250 = vadd.f32 %v1853, %v3186
        %v3251 = vadd.f32 %v1858, %v3187
        %v3252 = vadd.f32 %v1861, %v3188
        %v3253 = vadd.f32 %v1866, %v3189
        %v3254 = vadd.f32 %v1869, %v3190
        %v3255 = vadd.f32 %v1874, %v3191
        %v3256 = vadd.f32 %v1877, %v3192
        %v3257 = vadd.f32 %v1882, %v3193
        %v3258 = vadd.f32 %v1885, %v3194
        %v3259 = vadd.f32 %v1890, %v3195
        %v3260 = vadd.f32 %v1893, %v3196
        %v3261 = vadd.f32 %v1898, %v3197
        %v3262 = vadd.f32 %v1901, %v3198
        %v3263 = vadd.f32 %v1906, %v3199
        %v3264 = vadd.f32 %v1909, %v3200
        %v3265 = vadd.f32 %v1914, %v3201
        %v3266 = vadd.f32 %v1917, %v3202
        %v3267 = vadd.f32 %v1922, %v3203
        %v3268 = vadd.f32 %v1925, %v3204
        %v3269 = vadd.f32 %v1930, %v3205
        %v3270 = vadd.f32 %v1933, %v3206
        %v3271 = vadd.f32 %v1938, %v3207
        %v3272 = vadd.f32 %v1941, %v3208
        %v3273 = vadd.f32 %v1946, %v3209
        %v3274 = vadd.f32 %v1949, %v3210
        %v3275 = vadd.f32 %v1954, %v3211
        %v3276 = vadd.f32 %v1957, %v3212
        %v3277 = vadd.f32 %v1962, %v3213
        %v3278 = vadd.f32 %v1965, %v3214
        %v3279 = vadd.f32 %v1970, %v3215
        %v3280 = vadd.f32 %v1973, %v3216
        %v3281 = vadd.f32 %v1978, %v3217
        %v3282 = vadd.f32 %v1981, %v3218
        %v3283 = vadd.f32 %v1986, %v3219
        %v3284 = vadd.f32 %v1989, %v3220
        %v3285 = vadd.f32 %v1994, %v3221
        %v3286 = vadd.f32 %v1997, %v3222
        %v3287 = vpack.c.bf16 %v3224, %v3223
        %v3288 = vpack.c.bf16 %v3226, %v3225
        %v3289 = vpack.c.bf16 %v3228, %v3227
        %v3290 = vpack.c.bf16 %v3230, %v3229
        %v3291 = vpack.c.bf16 %v3232, %v3231
        %v3292 = vpack.c.bf16 %v3234, %v3233
        %v3293 = vpack.c.bf16 %v3236, %v3235
        %v3294 = vpack.c.bf16 %v3238, %v3237
        %v3295 = vpack.c.bf16 %v3240, %v3239
        %v3296 = vpack.c.bf16 %v3242, %v3241
        %v3297 = vpack.c.bf16 %v3244, %v3243
        %v3298 = vpack.c.bf16 %v3246, %v3245
        %v3299 = vpack.c.bf16 %v3248, %v3247
        %v3300 = vpack.c.bf16 %v3250, %v3249
        %v3301 = vpack.c.bf16 %v3252, %v3251
        %v3302 = vpack.c.bf16 %v3254, %v3253
        %v3303 = vpack.c.bf16 %v3256, %v3255
        %v3304 = vpack.c.bf16 %v3258, %v3257
        %v3305 = vpack.c.bf16 %v3260, %v3259
        %v3306 = vpack.c.bf16 %v3262, %v3261
        %v3307 = vpack.c.bf16 %v3264, %v3263
        %v3308 = vpack.c.bf16 %v3266, %v3265
        %v3309 = vpack.c.bf16 %v3268, %v3267
        %v3310 = vpack.c.bf16 %v3270, %v3269
        %v3311 = vpack.c.bf16 %v3272, %v3271
        %v3312 = vpack.c.bf16 %v3274, %v3273
        %v3313 = vpack.c.bf16 %v3276, %v3275
        %v3314 = vpack.c.bf16 %v3278, %v3277
        %v3315 = vpack.c.bf16 %v3280, %v3279
        %v3316 = vpack.c.bf16 %v3282, %v3281
        %v3317 = vpack.c.bf16 %v3284, %v3283
        %v3318 = vpack.c.bf16 %v3286, %v3285
        %v3351 = vunpack.c.l.b16 %v3287
        %v3352 = vunpack.c.h.b16 %v3287
        %v3353 = vunpack.c.l.b16 %v3288
        %v3354 = vunpack.c.h.b16 %v3288
        %v3355 = vunpack.c.l.b16 %v3289
        %v3356 = vunpack.c.h.b16 %v3289
        %v3357 = vunpack.c.l.b16 %v3290
        %v3358 = vunpack.c.h.b16 %v3290
        %v3359 = vunpack.c.l.b16 %v3291
        %v3360 = vunpack.c.h.b16 %v3291
        %v3361 = vunpack.c.l.b16 %v3292
        %v3362 = vunpack.c.h.b16 %v3292
        %v3363 = vunpack.c.l.b16 %v3293
        %v3364 = vunpack.c.h.b16 %v3293
        %v3365 = vunpack.c.l.b16 %v3294
        %v3366 = vunpack.c.h.b16 %v3294
        %v3367 = vunpack.c.l.b16 %v3295
        %v3368 = vunpack.c.h.b16 %v3295
        %v3369 = vunpack.c.l.b16 %v3296
        %v3370 = vunpack.c.h.b16 %v3296
        %v3371 = vunpack.c.l.b16 %v3297
        %v3372 = vunpack.c.h.b16 %v3297
        %v3373 = vunpack.c.l.b16 %v3298
        %v3374 = vunpack.c.h.b16 %v3298
        %v3375 = vunpack.c.l.b16 %v3299
        %v3376 = vunpack.c.h.b16 %v3299
        %v3377 = vunpack.c.l.b16 %v3300
        %v3378 = vunpack.c.h.b16 %v3300
        %v3379 = vunpack.c.l.b16 %v3301
        %v3380 = vunpack.c.h.b16 %v3301
        %v3381 = vunpack.c.l.b16 %v3302
        %v3382 = vunpack.c.h.b16 %v3302
        %v3383 = vunpack.c.l.b16 %v3303
        %v3384 = vunpack.c.h.b16 %v3303
        %v3385 = vunpack.c.l.b16 %v3304
        %v3386 = vunpack.c.h.b16 %v3304
        %v3387 = vunpack.c.l.b16 %v3305
        %v3388 = vunpack.c.h.b16 %v3305
        %v3389 = vunpack.c.l.b16 %v3306
        %v3390 = vunpack.c.h.b16 %v3306
        %v3391 = vunpack.c.l.b16 %v3307
        %v3392 = vunpack.c.h.b16 %v3307
        %v3393 = vunpack.c.l.b16 %v3308
        %v3394 = vunpack.c.h.b16 %v3308
        %v3395 = vunpack.c.l.b16 %v3309
        %v3396 = vunpack.c.h.b16 %v3309
        %v3397 = vunpack.c.l.b16 %v3310
        %v3398 = vunpack.c.h.b16 %v3310
        %v3399 = vunpack.c.l.b16 %v3311
        %v3400 = vunpack.c.h.b16 %v3311
        %v3401 = vunpack.c.l.b16 %v3312
        %v3402 = vunpack.c.h.b16 %v3312
        %v3403 = vunpack.c.l.b16 %v3313
        %v3404 = vunpack.c.h.b16 %v3313
        %v3405 = vunpack.c.l.b16 %v3314
        %v3406 = vunpack.c.h.b16 %v3314
        %v3407 = vunpack.c.l.b16 %v3315
        %v3408 = vunpack.c.h.b16 %v3315
        %v3409 = vunpack.c.l.b16 %v3316
        %v3410 = vunpack.c.h.b16 %v3316
        %v3411 = vunpack.c.l.b16 %v3317
        %v3412 = vunpack.c.h.b16 %v3317
        %v3413 = vunpack.c.l.b16 %v3318
        %v3414 = vunpack.c.h.b16 %v3318
        %v3415 = vpack.c.b16 %v3351, %v3351
        %v3416 = vpack.c.b16 %v3352, %v3352
        %v3417 = vpack.c.b16 %v3353, %v3353
        %v3418 = vpack.c.b16 %v3354, %v3354
        %v3419 = vpack.c.b16 %v3355, %v3355
        %v3420 = vpack.c.b16 %v3356, %v3356
        %v3421 = vpack.c.b16 %v3357, %v3357
        %v3422 = vpack.c.b16 %v3358, %v3358
        %v3423 = vpack.c.b16 %v3359, %v3359
        %v3424 = vpack.c.b16 %v3360, %v3360
        %v3425 = vpack.c.b16 %v3361, %v3361
        %v3426 = vpack.c.b16 %v3362, %v3362
        %v3427 = vpack.c.b16 %v3363, %v3363
        %v3428 = vpack.c.b16 %v3364, %v3364
        %v3429 = vpack.c.b16 %v3365, %v3365
        %v3430 = vpack.c.b16 %v3366, %v3366
        %v3431 = vpack.c.b16 %v3367, %v3367
        %v3432 = vpack.c.b16 %v3368, %v3368
        %v3433 = vpack.c.b16 %v3369, %v3369
        %v3434 = vpack.c.b16 %v3370, %v3370
        %v3435 = vpack.c.b16 %v3371, %v3371
        %v3436 = vpack.c.b16 %v3372, %v3372
        %v3437 = vpack.c.b16 %v3373, %v3373
        %v3438 = vpack.c.b16 %v3374, %v3374
        %v3439 = vpack.c.b16 %v3375, %v3375
        %v3440 = vpack.c.b16 %v3376, %v3376
        %v3441 = vpack.c.b16 %v3377, %v3377
        %v3442 = vpack.c.b16 %v3378, %v3378
        %v3443 = vpack.c.b16 %v3379, %v3379
        %v3444 = vpack.c.b16 %v3380, %v3380
        %v3445 = vpack.c.b16 %v3381, %v3381
        %v3446 = vpack.c.b16 %v3382, %v3382
        %v3447 = vpack.c.b16 %v3383, %v3383
        %v3448 = vpack.c.b16 %v3384, %v3384
        %v3449 = vpack.c.b16 %v3385, %v3385
        %v3450 = vpack.c.b16 %v3386, %v3386
        %v3451 = vpack.c.b16 %v3387, %v3387
        %v3452 = vpack.c.b16 %v3388, %v3388
        %v3453 = vpack.c.b16 %v3389, %v3389
        %v3454 = vpack.c.b16 %v3390, %v3390
        %v3455 = vpack.c.b16 %v3391, %v3391
        %v3456 = vpack.c.b16 %v3392, %v3392
        %v3457 = vpack.c.b16 %v3393, %v3393
        %v3458 = vpack.c.b16 %v3394, %v3394
        %v3459 = vpack.c.b16 %v3395, %v3395
        %v3460 = vpack.c.b16 %v3396, %v3396
        %v3461 = vpack.c.b16 %v3397, %v3397
        %v3462 = vpack.c.b16 %v3398, %v3398
        %v3463 = vpack.c.b16 %v3399, %v3399
        %v3464 = vpack.c.b16 %v3400, %v3400
        %v3465 = vpack.c.b16 %v3401, %v3401
        %v3466 = vpack.c.b16 %v3402, %v3402
        %v3467 = vpack.c.b16 %v3403, %v3403
        %v3468 = vpack.c.b16 %v3404, %v3404
        %v3469 = vpack.c.b16 %v3405, %v3405
        %v3470 = vpack.c.b16 %v3406, %v3406
        %v3471 = vpack.c.b16 %v3407, %v3407
        %v3472 = vpack.c.b16 %v3408, %v3408
        %v3473 = vpack.c.b16 %v3409, %v3409
        %v3474 = vpack.c.b16 %v3410, %v3410
        %v3475 = vpack.c.b16 %v3411, %v3411
        %v3476 = vpack.c.b16 %v3412, %v3412
        %v3477 = vpack.c.b16 %v3413, %v3413
        %v3478 = vpack.c.b16 %v3414, %v3414
        %3543 = vst [vmem:[%s299] sm:$0xf] %v3415
        %3544 = vst [vmem:[%s299 + $0x4] sm:$0xf] %v3416
        %3545 = vst [vmem:[%s299 + $0x8] sm:$0xf] %v3417
        %3546 = vst [vmem:[%s299 + $0xc] sm:$0xf] %v3418
        %3547 = vst [vmem:[%s299 + $0x10] sm:$0xf] %v3419
        %3548 = vst [vmem:[%s299 + $0x14] sm:$0xf] %v3420
        %3549 = vst [vmem:[%s299 + $0x18] sm:$0xf] %v3421
        %3550 = vst [vmem:[%s299 + $0x1c] sm:$0xf] %v3422
        %3551 = vst [vmem:[%s299 + $0x20] sm:$0xf] %v3423
        %3552 = vst [vmem:[%s299 + $0x24] sm:$0xf] %v3424
        %3553 = vst [vmem:[%s299 + $0x28] sm:$0xf] %v3425
        %3554 = vst [vmem:[%s299 + $0x2c] sm:$0xf] %v3426
        %3555 = vst [vmem:[%s299 + $0x30] sm:$0xf] %v3427
        %3556 = vst [vmem:[%s299 + $0x34] sm:$0xf] %v3428
        %3557 = vst [vmem:[%s299 + $0x38] sm:$0xf] %v3429
        %3558 = vst [vmem:[%s299 + $0x3c] sm:$0xf] %v3430
        %3559 = vst [vmem:[%s299 + $0x40] sm:$0xf] %v3431
        %3560 = vst [vmem:[%s299 + $0x44] sm:$0xf] %v3432
        %3561 = vst [vmem:[%s299 + $0x48] sm:$0xf] %v3433
        %3562 = vst [vmem:[%s299 + $0x4c] sm:$0xf] %v3434
        %3563 = vst [vmem:[%s299 + $0x50] sm:$0xf] %v3435
        %3564 = vst [vmem:[%s299 + $0x54] sm:$0xf] %v3436
        %3565 = vst [vmem:[%s299 + $0x58] sm:$0xf] %v3437
        %3566 = vst [vmem:[%s299 + $0x5c] sm:$0xf] %v3438
        %3567 = vst [vmem:[%s299 + $0x60] sm:$0xf] %v3439
        %3568 = vst [vmem:[%s299 + $0x64] sm:$0xf] %v3440
        %3569 = vst [vmem:[%s299 + $0x68] sm:$0xf] %v3441
        %3570 = vst [vmem:[%s299 + $0x6c] sm:$0xf] %v3442
        %3571 = vst [vmem:[%s299 + $0x70] sm:$0xf] %v3443
        %3572 = vst [vmem:[%s299 + $0x74] sm:$0xf] %v3444
        %3573 = vst [vmem:[%s299 + $0x78] sm:$0xf] %v3445
        %3574 = vst [vmem:[%s299 + $0x7c] sm:$0xf] %v3446
        %3575 = vst [vmem:[%s299 + $0x80] sm:$0xf] %v3447
        %3576 = vst [vmem:[%s299 + $0x84] sm:$0xf] %v3448
        %3577 = vst [vmem:[%s299 + $0x88] sm:$0xf] %v3449
        %3578 = vst [vmem:[%s299 + $0x8c] sm:$0xf] %v3450
        %3579 = vst [vmem:[%s299 + $0x90] sm:$0xf] %v3451
        %3580 = vst [vmem:[%s299 + $0x94] sm:$0xf] %v3452
        %3581 = vst [vmem:[%s299 + $0x98] sm:$0xf] %v3453
        %3582 = vst [vmem:[%s299 + $0x9c] sm:$0xf] %v3454
        %3583 = vst [vmem:[%s299 + $0xa0] sm:$0xf] %v3455
        %3584 = vst [vmem:[%s299 + $0xa4] sm:$0xf] %v3456
        %3585 = vst [vmem:[%s299 + $0xa8] sm:$0xf] %v3457
        %3586 = vst [vmem:[%s299 + $0xac] sm:$0xf] %v3458
        %3587 = vst [vmem:[%s299 + $0xb0] sm:$0xf] %v3459
        %3588 = vst [vmem:[%s299 + $0xb4] sm:$0xf] %v3460
        %3589 = vst [vmem:[%s299 + $0xb8] sm:$0xf] %v3461
        %3590 = vst [vmem:[%s299 + $0xbc] sm:$0xf] %v3462
        %3591 = vst [vmem:[%s299 + $0xc0] sm:$0xf] %v3463
        %3592 = vst [vmem:[%s299 + $0xc4] sm:$0xf] %v3464
        %3593 = vst [vmem:[%s299 + $0xc8] sm:$0xf] %v3465
        %3594 = vst [vmem:[%s299 + $0xcc] sm:$0xf] %v3466
        %3595 = vst [vmem:[%s299 + $0xd0] sm:$0xf] %v3467
        %3596 = vst [vmem:[%s299 + $0xd4] sm:$0xf] %v3468
        %3597 = vst [vmem:[%s299 + $0xd8] sm:$0xf] %v3469
        %3598 = vst [vmem:[%s299 + $0xdc] sm:$0xf] %v3470
        %3599 = vst [vmem:[%s299 + $0xe0] sm:$0xf] %v3471
        %3600 = vst [vmem:[%s299 + $0xe4] sm:$0xf] %v3472
        %3601 = vst [vmem:[%s299 + $0xe8] sm:$0xf] %v3473
        %3602 = vst [vmem:[%s299 + $0xec] sm:$0xf] %v3474
        %3603 = vst [vmem:[%s299 + $0xf0] sm:$0xf] %v3475
        %3604 = vst [vmem:[%s299 + $0xf4] sm:$0xf] %v3476
        %3605 = vst [vmem:[%s299 + $0xf8] sm:$0xf] %v3477
        %3606 = vst [vmem:[%s299 + $0xfc] sm:$0xf] %v3478
        %s3607 = sand.u32 %s203, 1
        %s3608 = scalar_lea.sflag [#allocation3], %s3607
        %s3609 = sand.u32 %s203, 1
        %s3610 = smul.addr %s3609, 256
        %s3611 = scalar_lea.vmem [#allocation2], %s3610
        // Predicated region
        $region53: #{tpu_custom_call.1} parent=51 // pred_check
          %p3612 = pneg %p213
        $region54: #{tpu_custom_call.1} parent=51 // pred_check_branch
          %3614 = sbr.rel (%p3612) target = $region56
        $region55: #{tpu_custom_call.1} parent=51 // pred_region
          %s3615 = smul.u32 64, %s22
          %s3617 = ssub.s32 4096, 4096
          %3618 = vsyncadd %s3608, %s3617
          %s3619 = smul.addr %s3615, 64
          %s3620 = scalar_lea.hbm %s8, %s3619
          %s3621 = sshll.u32 %s3611, 4
          %s3622 = int_to_ptr.vmem [resolvable:$true] %s3621
          %3627 = dma.vmem_to_hbm [thread:$0]  %s3622, 4096, %s3620, %s3608, 64, 64, 4
        $region56: #{tpu_custom_call.1} parent=51 // pred_fallthru
          _
      $region52: #{tpu_custom_call.1} parent=5 // pred_fallthru
        _
      %p3628 = scmp.le.s32.totalorder 2, %s17
      // Predicated region
      $region57: #{tpu_custom_call.1} parent=5 // pred_check
        %p3629 = pneg %p3628
      $region58: #{tpu_custom_call.1} parent=5 // pred_check_branch
        %3631 = sbr.rel (%p3629) target = $region60
      $region59: #{tpu_custom_call.1} parent=5 // pred_region
        %s3632 = ssub.s32 %s17, 2
        // Predicated region
        $region61: #{tpu_custom_call.1} parent=59 // pred_check
          %p3633 = pneg %p219
        $region62: #{tpu_custom_call.1} parent=59 // pred_check_branch
          %3635 = sbr.rel (%p3633) target = $region64
        $region63: #{tpu_custom_call.1} parent=59 // pred_region
          %s3636 = sand.u32 %s204, 1
          %s3637 = scalar_lea.sflag [#allocation3], %s3636
          %s3638 = sand.u32 %s204, 1
          %s3639 = smul.addr %s3638, 256
          %s3640 = scalar_lea.vmem [#allocation2], %s3639
          %3641 = dma.done %s3637, 4096
        $region64: #{tpu_custom_call.1} parent=59 // pred_fallthru
          _
      $region60: #{tpu_custom_call.1} parent=5 // pred_fallthru
        _
    $region6: #{tpu_custom_call.1} parent=1 // loop_footer
      %s21 = sadd.s32 1, %s17
    $region7: #{tpu_custom_call.1} parent=1 // loop_footer_branch
      %16 = sbr.rel target = $region3
    $region8: #{tpu_custom_call.1} parent=1 // loop_exit
      _
    %3642 = vsyncpa [#allocation3], 1
    %s3643 = scalar_lea.sflag [#allocation3], 1
    %3644 = vsyncpa %s3643, 1

</llo_original>
